<compile_context>
chip_gen: v6e
topology: v6e:2x2x1
jax: 0.10.0
libtpu: 0.0.40
codegen_flags: <defaults>
</compile_context>

<pallas_src>
import jax
import jax.numpy as jnp
from jax import lax
from jax.experimental import pallas as pl
from jax.experimental.pallas import tpu as pltpu

NUM_LAYERS = 3   # self.iter
HIDDEN = 32      # `hidden` constructor arg (default is 75; lane-friendly size here)

# Matmul operand dtype fed to the MXU (accumulation stays f32 via
# preferred_element_type).  Set to jnp.bfloat16 on v6e/v7x for throughput at
# large N; kept float32 so the tight 2e-4 reference check below holds.
MXU_DTYPE = jnp.float32


def _gnn_triangles_kernel(src_col_ref, dst_row_ref, x_ref,
                          w_main_ref, w_cat_ref, bias_ref, out_ref):
    f32 = jnp.float32
    H = HIDDEN
    n = x_ref.shape[0]
    e = dst_row_ref.shape[1]
    cdt = w_main_ref.dtype             # MXU operand dtype (f32 or bf16)

    # ---- adjacency built in-kernel: adj[i, j] = #edges j -> i ----------------
    # One-hot rows/cols from iota compares (VPU), contracted on the MXU;
    # (1 + eps) (stashed at bias[6, 0]) folded onto the diagonal so the GIN
    # aggregation per layer is a single matmul adj_eps @ x.
    src_col = src_col_ref[...]                                     # [E, 1] int32
    dst_row = dst_row_ref[...]                                     # [1, E] int32
    oh_dst_t = (lax.broadcasted_iota(jnp.int32, (n, e), 0)
                == dst_row).astype(cdt)                            # [N, E]
    oh_src = (lax.broadcasted_iota(jnp.int32, (e, n), 1)
              == src_col).astype(cdt)                              # [E, N]
    adj = jnp.dot(oh_dst_t, oh_src, preferred_element_type=f32)    # [N, N]

    bias = bias_ref[...]                                           # [8, 4H]
    one_plus_eps = bias[6:7, 0:1]                                  # [1, 1]
    eye = (lax.broadcasted_iota(jnp.int32, (n, n), 0)
           == lax.broadcasted_iota(jnp.int32, (n, n), 1)).astype(f32)
    adj_eps = (adj + one_plus_eps * eye).astype(cdt)               # [N, N]

    # ---- unpack packed weight / bias slabs (once, outside the layer loop) ----
    wm = w_main_ref[...]                   # [2H, 4H]
    w1 = wm[:H, :H]                        # GIN mlp layer 1            [H, H]
    w2 = wm[H:, :H]                        # GIN mlp layer 2            [H, H]
    wi3 = wm[:H, H:]                       # GRU input weights  r|z|n   [H, 3H]
    wh3 = wm[H:, H:]                       # GRU hidden weights r|z|n   [H, 3H]
    wc = w_cat_ref[...]                    # [3H, 3H]
    wc1 = wc[:, :2 * H]                    # fc_cat layer 1             [3H, 2H]
    wc2 = wc[:2 * H, 2 * H:]               # fc_cat layer 2             [2H, H]

    # Hoisted broadcasts for biases used inside the (unrolled) layer loop.
    b1 = jnp.broadcast_to(bias[0:1, :H], (n, H))
    b2 = jnp.broadcast_to(bias[1:2, :H], (n, H))
    bi3 = jnp.broadcast_to(bias[2:3, :3 * H], (n, 3 * H))   # bir | biz | bin
    bh3 = jnp.broadcast_to(bias[3:4, :3 * H], (n, 3 * H))   # bhr | bhz | bhn
    bc1 = bias[4:5, :2 * H]
    bc2 = bias[5:6, :H]

    x = x_ref[...]                         # [N, H] f32
    h = x                                  # initial GRU hidden state = x
    r1_acc = jnp.zeros((n, 2 * H), f32)    # fc_cat layer-1 pre-activation accumulator

    for layer in range(NUM_LAYERS):
        # GINConv + outer ReLU: relu(mlp((1+eps) x + sum_j x_j)) == relu(mlp(adj_eps @ x))
        agg = jnp.dot(adj_eps, x.astype(cdt), preferred_element_type=f32)
        hid = jnp.maximum(
            jnp.dot(agg.astype(cdt), w1, preferred_element_type=f32) + b1, 0.0)
        m = jnp.maximum(
            jnp.dot(hid.astype(cdt), w2, preferred_element_type=f32) + b2, 0.0)

        # GRU cell (seq len 1): two 3H-wide gate dots — no lane concat, no zero blocks.
        gi = jnp.dot(m.astype(cdt), wi3, preferred_element_type=f32) + bi3   # [N, 3H]
        gh = jnp.dot(h.astype(cdt), wh3, preferred_element_type=f32) + bh3   # [N, 3H]
        r = jax.nn.sigmoid(gi[:, :H] + gh[:, :H])
        z = jax.nn.sigmoid(gi[:, H:2 * H] + gh[:, H:2 * H])
        n_cand = jnp.tanh(gi[:, 2 * H:] + r * gh[:, 2 * H:])
        h = (1.0 - z) * n_cand + z * h
        x = h

        # Per-layer state goes straight into the lane-dense output slab (no concat).
        out_ref[:, layer * H:(layer + 1) * H] = x.astype(out_ref.dtype)

        # fc_cat layer 1 accumulated across layers: cat @ wc1 == sum_l s_l @ wc1_l.
        r1_acc = r1_acc + jnp.dot(
            x.astype(cdt), wc1[layer * H:(layer + 1) * H, :],
            preferred_element_type=f32)

    # ---- readout = fc_cat(cat(nodelst, dim=1)) --------------------------------
    r1 = jnp.maximum(r1_acc + bc1, 0.0)
    readout = jnp.dot(r1.astype(cdt), wc2, preferred_element_type=f32) + bc2
    out_ref[:, NUM_LAYERS * H:] = readout.astype(out_ref.dtype)


def gnn_triangles_forward(x, edge_index, params):
    """x: [N, H] float32; edge_index: [2, E] int32 (row 0 = source, row 1 = target)."""
    n, hdim = x.shape
    e = edge_index.shape[1]
    H = hdim
    assert hdim == HIDDEN
    f32 = jnp.float32

    # Edge list in the two orientations the kernel needs (tiny int32 arrays; the
    # O(E*N^2) one-hot / adjacency work now happens inside the kernel).
    src_col = edge_index[0].reshape(e, 1).astype(jnp.int32)   # [E, 1]
    dst_row = edge_index[1].reshape(1, e).astype(jnp.int32)   # [1, E]

    # --- packed, lane-dense parameter slabs (cheap; built from params per call) ---
    # w_main [2H, 4H]: cols 0:H = [w1 ; w2], cols H:4H = [Wi(r|z|n) ; Wh(r|z|n)].
    w_main = jnp.concatenate(
        [
            jnp.concatenate(
                [params["w1"], params["wir"], params["wiz"], params["win"]], axis=1),
            jnp.concatenate(
                [params["w2"], params["whr"], params["whz"], params["whn"]], axis=1),
        ],
        axis=0,
    )
    # w_cat [3H, 3H]: cols 0:2H = wc1, cols 2H:3H rows 0:2H = wc2 (rest zero pad).
    w_cat = jnp.concatenate(
        [params["wc1"],
         jnp.concatenate([params["wc2"], jnp.zeros((H, H), f32)], axis=0)],
        axis=1,
    )
    # bias slab [8, 4H]; row 6 lane 0 carries (1 + eps) for the in-kernel diag fold.
    bias = jnp.zeros((8, 4 * H), f32)
    bias = bias.at[0, :H].set(params["b1"][0])
    bias = bias.at[1, :H].set(params["b2"][0])
    bias = bias.at[2, :3 * H].set(
        jnp.concatenate([params["bir"], params["biz"], params["bin"]], axis=1)[0])
    bias = bias.at[3, :3 * H].set(
        jnp.concatenate([params["bhr"], params["bhz"], params["bhn"]], axis=1)[0])
    bias = bias.at[4, :2 * H].set(params["bc1"][0])
    bias = bias.at[5, :H].set(params["bc2"][0])
    bias = bias.at[6, 0].set(1.0 + params["eps"][0, 0])

    inputs = (src_col, dst_row, x,
              w_main.astype(MXU_DTYPE), w_cat.astype(MXU_DTYPE), bias)

    # Advisory cost estimate for the XLA scheduler.
    flops = (
        2 * n * e * n                                        # in-kernel one-hot adjacency
        + NUM_LAYERS * (2 * n * n * H                        # GIN aggregation
                        + 2 * 2 * n * H * H                  # GIN MLP
                        + 2 * 2 * n * H * (3 * H)            # GRU gate dots
                        + 2 * n * H * (2 * H))               # fc_cat layer-1 accumulation
        + 2 * n * (2 * H) * H                                # fc_cat layer 2
    )
    transcendentals = NUM_LAYERS * 3 * n * H                 # 2 sigmoid + 1 tanh per layer
    bytes_accessed = (sum(int(a.size) * a.dtype.itemsize for a in inputs)
                      + n * 4 * H * 4)

    vmem_spec = lambda: pl.BlockSpec(memory_space=pltpu.MemorySpace.VMEM)
    out = pl.pallas_call(
        _gnn_triangles_kernel,
        out_shape=jax.ShapeDtypeStruct((n, 4 * H), f32),
        in_specs=[vmem_spec() for _ in inputs],
        out_specs=vmem_spec(),
        compiler_params=pltpu.CompilerParams(vmem_limit_bytes=32 * 1024 * 1024),
        cost_estimate=pl.CostEstimate(
            flops=flops, transcendentals=transcendentals,
            bytes_accessed=bytes_accessed),
    )(*inputs)

    # TODO(synk): for large N (>~2.8k at the 32 MiB VMEM limit) switch to a
    # row-blocked grid (one pallas_call per layer, BlockSpec (TILE_N, N) on adj,
    # "parallel" row axis for v7x's two TensorCores, TILE_N sized for v7x's
    # 64 MiB VMEM) and use bf16 adj (v6e/v7x) or int8 counts (v5e/v6e).
    # TODO(synk): if many graphs are processed per step, batch them into one call
    # (block-diagonal adjacency or a per-graph grid axis) to amortize launch/DMA.
    # TODO(synk): at the module default hidden=75, zero-pad H to 96/128 inside the
    # weight slabs so activations and the output slab stay lane-aligned.
    x_out = out[:, (NUM_LAYERS - 1) * H:NUM_LAYERS * H]
    readout = out[:, NUM_LAYERS * H:]
    return x_out, readout


def _reference_forward(x, edge_index, params):
    """Pure-JAX reference of the same math (unfused; for correctness check only)."""
    n = x.shape[0]
    src, dst = edge_index[0], edge_index[1]
    adj = jnp.zeros((n, n), jnp.float32).at[dst, src].add(1.0)
    eps = params["eps"][0, 0]
    h = x
    states = []
    for _ in range(NUM_LAYERS):
        gin_in = (1.0 + eps) * x + adj @ x
        m = jnp.maximum(
            jnp.maximum(gin_in @ params["w1"] + params["b1"], 0.0) @ params["w2"]
            + params["b2"],
            0.0,
        )
        r = jax.nn.sigmoid(m @ params["wir"] + params["bir"]
                           + h @ params["whr"] + params["bhr"])
        z = jax.nn.sigmoid(m @ params["wiz"] + params["biz"]
                           + h @ params["whz"] + params["bhz"])
        nn_ = jnp.tanh(m @ params["win"] + params["bin"]
                       + r * (h @ params["whn"] + params["bhn"]))
        h = (1.0 - z) * nn_ + z * h
        x = h
        states.append(x)
    cat = jnp.concatenate(states, axis=1)
    readout = (jnp.maximum(cat @ params["wc1"] + params["bc1"], 0.0) @ params["wc2"]
               + params["bc2"])
    return x, readout


def _init_params(key, hdim):
    """Deterministic synthetic parameters. Linear/GRU weights stored as [in, out]."""
    names_shapes = [
        ("w1", (hdim, hdim)), ("b1", (1, hdim)),
        ("w2", (hdim, hdim)), ("b2", (1, hdim)),
        ("wir", (hdim, hdim)), ("wiz", (hdim, hdim)), ("win", (hdim, hdim)),
        ("whr", (hdim, hdim)), ("whz", (hdim, hdim)), ("whn", (hdim, hdim)),
        ("bir", (1, hdim)), ("biz", (1, hdim)), ("bin", (1, hdim)),
        ("bhr", (1, hdim)), ("bhz", (1, hdim)), ("bhn", (1, hdim)),
        ("wc1", (NUM_LAYERS * hdim, 2 * hdim)), ("bc1", (1, 2 * hdim)),
        ("wc2", (2 * hdim, hdim)), ("bc2", (1, hdim)),
    ]
    params = {}
    keys = jax.random.split(key, len(names_shapes))
    for k, (name, shape) in zip(keys, names_shapes):
        params[name] = jax.random.normal(k, shape, jnp.float32) * 0.1
    # GINConv train_eps=True initializes eps to 0.
    params["eps"] = jnp.zeros((1, 1), jnp.float32)
    return params


if __name__ == "__main__":
    key = jax.random.PRNGKey(0)
    k_x, k_e, k_p = jax.random.split(key, 3)

    N, E = 64, 256
    x = jax.random.normal(k_x, (N, HIDDEN), jnp.float32)
    edge_index = jax.random.randint(k_e, (2, E), 0, N, jnp.int32)
    params = _init_params(k_p, HIDDEN)

    x_out, readout = jax.jit(gnn_triangles_forward)(x, edge_index, params)
    jax.block_until_ready((x_out, readout))

    x_ref, readout_ref = _reference_forward(x, edge_index, params)
    assert x_out.shape == (N, HIDDEN) and readout.shape == (N, HIDDEN)
    assert jnp.allclose(x_out, x_ref, atol=2e-4, rtol=2e-4)
    assert jnp.allclose(readout, readout_ref, atol=2e-4, rtol=2e-4)

    print("KERNEL_OK")
</pallas_src>

<mosaic_0001>
module attributes {stable_mosaic.version = 11 : i64} {
  func.func @_gnn_triangles_kernel(%arg0: memref<256x1xi32, #tpu.memory_space<vmem>>, %arg1: memref<1x256xi32, #tpu.memory_space<vmem>>, %arg2: memref<64x32xf32, #tpu.memory_space<vmem>>, %arg3: memref<64x128xf32, #tpu.memory_space<vmem>>, %arg4: memref<96x96xf32, #tpu.memory_space<vmem>>, %arg5: memref<8x128xf32, #tpu.memory_space<vmem>>, %arg6: memref<64x128xf32, #tpu.memory_space<vmem>>) attributes {dimension_semantics = [], scalar_prefetch = 0 : i64, scratch_operands = 0 : i64, tpu.core_type = #tpu.core_type<tc>} {
    %c0 = arith.constant 0 : index
    %c0_0 = arith.constant 0 : index
    %0 = vector.load %arg0[%c0, %c0_0] : memref<256x1xi32, #tpu.memory_space<vmem>>, vector<256x1xi32>
    %c0_1 = arith.constant 0 : index
    %c0_2 = arith.constant 0 : index
    %1 = vector.load %arg1[%c0_1, %c0_2] : memref<1x256xi32, #tpu.memory_space<vmem>>, vector<1x256xi32>
    %2 = tpu.iota {dimensions = array<i32: 0>} : vector<64x256xi32>
    %3 = vector.broadcast %1 : vector<1x256xi32> to vector<64x256xi32>
    %4 = arith.cmpi eq, %2, %3 : vector<64x256xi32>
    %5 = arith.extui %4 : vector<64x256xi1> to vector<64x256xi32>
    %6 = arith.sitofp %5 : vector<64x256xi32> to vector<64x256xf32>
    %7 = tpu.iota {dimensions = array<i32: 1>} : vector<256x64xi32>
    %8 = vector.broadcast %0 : vector<256x1xi32> to vector<256x64xi32>
    %9 = arith.cmpi eq, %7, %8 : vector<256x64xi32>
    %10 = arith.extui %9 : vector<256x64xi1> to vector<256x64xi32>
    %11 = arith.sitofp %10 : vector<256x64xi32> to vector<256x64xf32>
    %cst = arith.constant dense<0.000000e+00> : vector<64x64xf32>
    %12 = tpu.matmul %6, %11, %cst {dimension_numbers = #tpu.dot_dimension_numbers<[1], [0], [0], [1], [0, 0, 1, 1], [], []>} : vector<64x256xf32>, vector<256x64xf32>, vector<64x64xf32> -> vector<64x64xf32>
    %c0_3 = arith.constant 0 : index
    %c0_4 = arith.constant 0 : index
    %13 = vector.load %arg5[%c0_3, %c0_4] : memref<8x128xf32, #tpu.memory_space<vmem>>, vector<8x128xf32>
    %14 = vector.extract_strided_slice %13 {offsets = [6, 0], sizes = [1, 1], strides = [1, 1]} : vector<8x128xf32> to vector<1x1xf32>
    %15 = tpu.iota {dimensions = array<i32: 0>} : vector<64x64xi32>
    %16 = tpu.iota {dimensions = array<i32: 1>} : vector<64x64xi32>
    %17 = arith.cmpi eq, %15, %16 : vector<64x64xi32>
    %18 = arith.extui %17 : vector<64x64xi1> to vector<64x64xi32>
    %19 = arith.sitofp %18 : vector<64x64xi32> to vector<64x64xf32>
    %20 = vector.broadcast %14 : vector<1x1xf32> to vector<64x64xf32>
    %21 = arith.mulf %20, %19 : vector<64x64xf32>
    %22 = arith.addf %12, %21 : vector<64x64xf32>
    %c0_5 = arith.constant 0 : index
    %c0_6 = arith.constant 0 : index
    %23 = vector.load %arg3[%c0_5, %c0_6] : memref<64x128xf32, #tpu.memory_space<vmem>>, vector<64x128xf32>
    %24 = vector.extract_strided_slice %23 {offsets = [0, 0], sizes = [32, 32], strides = [1, 1]} : vector<64x128xf32> to vector<32x32xf32>
    %25 = vector.extract_strided_slice %23 {offsets = [32, 0], sizes = [32, 32], strides = [1, 1]} : vector<64x128xf32> to vector<32x32xf32>
    %26 = vector.extract_strided_slice %23 {offsets = [0, 32], sizes = [32, 96], strides = [1, 1]} : vector<64x128xf32> to vector<32x96xf32>
    %27 = vector.extract_strided_slice %23 {offsets = [32, 32], sizes = [32, 96], strides = [1, 1]} : vector<64x128xf32> to vector<32x96xf32>
    %c0_7 = arith.constant 0 : index
    %c0_8 = arith.constant 0 : index
    %28 = vector.load %arg4[%c0_7, %c0_8] : memref<96x96xf32, #tpu.memory_space<vmem>>, vector<96x96xf32>
    %29 = vector.extract_strided_slice %28 {offsets = [0, 0], sizes = [96, 64], strides = [1, 1]} : vector<96x96xf32> to vector<96x64xf32>
    %30 = vector.extract_strided_slice %28 {offsets = [0, 64], sizes = [64, 32], strides = [1, 1]} : vector<96x96xf32> to vector<64x32xf32>
    %31 = vector.extract_strided_slice %13 {offsets = [0, 0], sizes = [1, 32], strides = [1, 1]} : vector<8x128xf32> to vector<1x32xf32>
    %32 = vector.shape_cast %31 : vector<1x32xf32> to vector<1x32xf32>
    %33 = vector.broadcast %32 : vector<1x32xf32> to vector<64x32xf32>
    %34 = vector.extract_strided_slice %13 {offsets = [1, 0], sizes = [1, 32], strides = [1, 1]} : vector<8x128xf32> to vector<1x32xf32>
    %35 = vector.shape_cast %34 : vector<1x32xf32> to vector<1x32xf32>
    %36 = vector.broadcast %35 : vector<1x32xf32> to vector<64x32xf32>
    %37 = vector.extract_strided_slice %13 {offsets = [2, 0], sizes = [1, 96], strides = [1, 1]} : vector<8x128xf32> to vector<1x96xf32>
    %38 = vector.shape_cast %37 : vector<1x96xf32> to vector<1x96xf32>
    %39 = vector.broadcast %38 : vector<1x96xf32> to vector<64x96xf32>
    %40 = vector.extract_strided_slice %13 {offsets = [3, 0], sizes = [1, 96], strides = [1, 1]} : vector<8x128xf32> to vector<1x96xf32>
    %41 = vector.shape_cast %40 : vector<1x96xf32> to vector<1x96xf32>
    %42 = vector.broadcast %41 : vector<1x96xf32> to vector<64x96xf32>
    %43 = vector.extract_strided_slice %13 {offsets = [4, 0], sizes = [1, 64], strides = [1, 1]} : vector<8x128xf32> to vector<1x64xf32>
    %44 = vector.extract_strided_slice %13 {offsets = [5, 0], sizes = [1, 32], strides = [1, 1]} : vector<8x128xf32> to vector<1x32xf32>
    %c0_9 = arith.constant 0 : index
    %c0_10 = arith.constant 0 : index
    %45 = vector.load %arg2[%c0_9, %c0_10] : memref<64x32xf32, #tpu.memory_space<vmem>>, vector<64x32xf32>
    %cst_11 = arith.constant 0.000000e+00 : f32
    %46 = vector.broadcast %cst_11 : f32 to vector<64x64xf32>
    %cst_12 = arith.constant dense<0.000000e+00> : vector<64x32xf32>
    %47 = tpu.matmul %22, %45, %cst_12 {dimension_numbers = #tpu.dot_dimension_numbers<[1], [0], [0], [1], [0, 0, 1, 1], [], []>} : vector<64x64xf32>, vector<64x32xf32>, vector<64x32xf32> -> vector<64x32xf32>
    %cst_13 = arith.constant dense<0.000000e+00> : vector<64x32xf32>
    %48 = tpu.matmul %47, %24, %cst_13 {dimension_numbers = #tpu.dot_dimension_numbers<[1], [0], [0], [1], [0, 0, 1, 1], [], []>} : vector<64x32xf32>, vector<32x32xf32>, vector<64x32xf32> -> vector<64x32xf32>
    %49 = arith.addf %48, %33 : vector<64x32xf32>
    %cst_14 = arith.constant 0.000000e+00 : f32
    %50 = vector.broadcast %cst_14 : f32 to vector<64x32xf32>
    %51 = arith.maximumf %49, %50 : vector<64x32xf32>
    %cst_15 = arith.constant dense<0.000000e+00> : vector<64x32xf32>
    %52 = tpu.matmul %51, %25, %cst_15 {dimension_numbers = #tpu.dot_dimension_numbers<[1], [0], [0], [1], [0, 0, 1, 1], [], []>} : vector<64x32xf32>, vector<32x32xf32>, vector<64x32xf32> -> vector<64x32xf32>
    %53 = arith.addf %52, %36 : vector<64x32xf32>
    %cst_16 = arith.constant 0.000000e+00 : f32
    %54 = vector.broadcast %cst_16 : f32 to vector<64x32xf32>
    %55 = arith.maximumf %53, %54 : vector<64x32xf32>
    %cst_17 = arith.constant dense<0.000000e+00> : vector<64x96xf32>
    %56 = tpu.matmul %55, %26, %cst_17 {dimension_numbers = #tpu.dot_dimension_numbers<[1], [0], [0], [1], [0, 0, 1, 1], [], []>} : vector<64x32xf32>, vector<32x96xf32>, vector<64x96xf32> -> vector<64x96xf32>
    %57 = arith.addf %56, %39 : vector<64x96xf32>
    %cst_18 = arith.constant dense<0.000000e+00> : vector<64x96xf32>
    %58 = tpu.matmul %45, %27, %cst_18 {dimension_numbers = #tpu.dot_dimension_numbers<[1], [0], [0], [1], [0, 0, 1, 1], [], []>} : vector<64x32xf32>, vector<32x96xf32>, vector<64x96xf32> -> vector<64x96xf32>
    %59 = arith.addf %58, %42 : vector<64x96xf32>
    %60 = vector.extract_strided_slice %57 {offsets = [0, 0], sizes = [64, 32], strides = [1, 1]} : vector<64x96xf32> to vector<64x32xf32>
    %61 = vector.extract_strided_slice %59 {offsets = [0, 0], sizes = [64, 32], strides = [1, 1]} : vector<64x96xf32> to vector<64x32xf32>
    %62 = arith.addf %60, %61 : vector<64x32xf32>
    %63 = arith.negf %62 : vector<64x32xf32>
    %64 = math.exp %63 : vector<64x32xf32>
    %cst_19 = arith.constant 1.000000e+00 : f32
    %65 = vector.broadcast %cst_19 : f32 to vector<64x32xf32>
    %66 = arith.addf %65, %64 : vector<64x32xf32>
    %67 = arith.divf %65, %66 : vector<64x32xf32>
    %68 = vector.extract_strided_slice %57 {offsets = [0, 32], sizes = [64, 32], strides = [1, 1]} : vector<64x96xf32> to vector<64x32xf32>
    %69 = vector.extract_strided_slice %59 {offsets = [0, 32], sizes = [64, 32], strides = [1, 1]} : vector<64x96xf32> to vector<64x32xf32>
    %70 = arith.addf %68, %69 : vector<64x32xf32>
    %71 = arith.negf %70 : vector<64x32xf32>
    %72 = math.exp %71 : vector<64x32xf32>
    %cst_20 = arith.constant 1.000000e+00 : f32
    %73 = vector.broadcast %cst_20 : f32 to vector<64x32xf32>
    %74 = arith.addf %73, %72 : vector<64x32xf32>
    %75 = arith.divf %73, %74 : vector<64x32xf32>
    %76 = vector.extract_strided_slice %57 {offsets = [0, 64], sizes = [64, 32], strides = [1, 1]} : vector<64x96xf32> to vector<64x32xf32>
    %77 = vector.extract_strided_slice %59 {offsets = [0, 64], sizes = [64, 32], strides = [1, 1]} : vector<64x96xf32> to vector<64x32xf32>
    %78 = arith.mulf %67, %77 : vector<64x32xf32>
    %79 = arith.addf %76, %78 : vector<64x32xf32>
    %80 = math.tanh %79 : vector<64x32xf32>
    %cst_21 = arith.constant 1.000000e+00 : f32
    %81 = vector.broadcast %cst_21 : f32 to vector<64x32xf32>
    %82 = arith.subf %81, %75 : vector<64x32xf32>
    %83 = arith.mulf %82, %80 : vector<64x32xf32>
    %84 = arith.mulf %75, %45 : vector<64x32xf32>
    %85 = arith.addf %83, %84 : vector<64x32xf32>
    %c0_22 = arith.constant 0 : index
    %c0_23 = arith.constant 0 : index
    %86 = vector.load %arg6[%c0_22, %c0_23] : memref<64x128xf32, #tpu.memory_space<vmem>>, vector<64x32xf32>
    tpu.vector_store %arg6[%c0_22, %c0_23], %85 {strides = array<i32>} : memref<64x128xf32, #tpu.memory_space<vmem>>, vector<64x32xf32>,
    %87 = vector.extract_strided_slice %29 {offsets = [0, 0], sizes = [32, 64], strides = [1, 1]} : vector<96x64xf32> to vector<32x64xf32>
    %cst_24 = arith.constant dense<0.000000e+00> : vector<64x64xf32>
    %88 = tpu.matmul %85, %87, %cst_24 {dimension_numbers = #tpu.dot_dimension_numbers<[1], [0], [0], [1], [0, 0, 1, 1], [], []>} : vector<64x32xf32>, vector<32x64xf32>, vector<64x64xf32> -> vector<64x64xf32>
    %89 = arith.addf %46, %88 : vector<64x64xf32>
    %cst_25 = arith.constant dense<0.000000e+00> : vector<64x32xf32>
    %90 = tpu.matmul %22, %85, %cst_25 {dimension_numbers = #tpu.dot_dimension_numbers<[1], [0], [0], [1], [0, 0, 1, 1], [], []>} : vector<64x64xf32>, vector<64x32xf32>, vector<64x32xf32> -> vector<64x32xf32>
    %cst_26 = arith.constant dense<0.000000e+00> : vector<64x32xf32>
    %91 = tpu.matmul %90, %24, %cst_26 {dimension_numbers = #tpu.dot_dimension_numbers<[1], [0], [0], [1], [0, 0, 1, 1], [], []>} : vector<64x32xf32>, vector<32x32xf32>, vector<64x32xf32> -> vector<64x32xf32>
    %92 = arith.addf %91, %33 : vector<64x32xf32>
    %cst_27 = arith.constant 0.000000e+00 : f32
    %93 = vector.broadcast %cst_27 : f32 to vector<64x32xf32>
    %94 = arith.maximumf %92, %93 : vector<64x32xf32>
    %cst_28 = arith.constant dense<0.000000e+00> : vector<64x32xf32>
    %95 = tpu.matmul %94, %25, %cst_28 {dimension_numbers = #tpu.dot_dimension_numbers<[1], [0], [0], [1], [0, 0, 1, 1], [], []>} : vector<64x32xf32>, vector<32x32xf32>, vector<64x32xf32> -> vector<64x32xf32>
    %96 = arith.addf %95, %36 : vector<64x32xf32>
    %cst_29 = arith.constant 0.000000e+00 : f32
    %97 = vector.broadcast %cst_29 : f32 to vector<64x32xf32>
    %98 = arith.maximumf %96, %97 : vector<64x32xf32>
    %cst_30 = arith.constant dense<0.000000e+00> : vector<64x96xf32>
    %99 = tpu.matmul %98, %26, %cst_30 {dimension_numbers = #tpu.dot_dimension_numbers<[1], [0], [0], [1], [0, 0, 1, 1], [], []>} : vector<64x32xf32>, vector<32x96xf32>, vector<64x96xf32> -> vector<64x96xf32>
    %100 = arith.addf %99, %39 : vector<64x96xf32>
    %cst_31 = arith.constant dense<0.000000e+00> : vector<64x96xf32>
    %101 = tpu.matmul %85, %27, %cst_31 {dimension_numbers = #tpu.dot_dimension_numbers<[1], [0], [0], [1], [0, 0, 1, 1], [], []>} : vector<64x32xf32>, vector<32x96xf32>, vector<64x96xf32> -> vector<64x96xf32>
    %102 = arith.addf %101, %42 : vector<64x96xf32>
    %103 = vector.extract_strided_slice %100 {offsets = [0, 0], sizes = [64, 32], strides = [1, 1]} : vector<64x96xf32> to vector<64x32xf32>
    %104 = vector.extract_strided_slice %102 {offsets = [0, 0], sizes = [64, 32], strides = [1, 1]} : vector<64x96xf32> to vector<64x32xf32>
    %105 = arith.addf %103, %104 : vector<64x32xf32>
    %106 = arith.negf %105 : vector<64x32xf32>
    %107 = math.exp %106 : vector<64x32xf32>
    %cst_32 = arith.constant 1.000000e+00 : f32
    %108 = vector.broadcast %cst_32 : f32 to vector<64x32xf32>
    %109 = arith.addf %108, %107 : vector<64x32xf32>
    %110 = arith.divf %108, %109 : vector<64x32xf32>
    %111 = vector.extract_strided_slice %100 {offsets = [0, 32], sizes = [64, 32], strides = [1, 1]} : vector<64x96xf32> to vector<64x32xf32>
    %112 = vector.extract_strided_slice %102 {offsets = [0, 32], sizes = [64, 32], strides = [1, 1]} : vector<64x96xf32> to vector<64x32xf32>
    %113 = arith.addf %111, %112 : vector<64x32xf32>
    %114 = arith.negf %113 : vector<64x32xf32>
    %115 = math.exp %114 : vector<64x32xf32>
    %cst_33 = arith.constant 1.000000e+00 : f32
    %116 = vector.broadcast %cst_33 : f32 to vector<64x32xf32>
    %117 = arith.addf %116, %115 : vector<64x32xf32>
    %118 = arith.divf %116, %117 : vector<64x32xf32>
    %119 = vector.extract_strided_slice %100 {offsets = [0, 64], sizes = [64, 32], strides = [1, 1]} : vector<64x96xf32> to vector<64x32xf32>
    %120 = vector.extract_strided_slice %102 {offsets = [0, 64], sizes = [64, 32], strides = [1, 1]} : vector<64x96xf32> to vector<64x32xf32>
    %121 = arith.mulf %110, %120 : vector<64x32xf32>
    %122 = arith.addf %119, %121 : vector<64x32xf32>
    %123 = math.tanh %122 : vector<64x32xf32>
    %cst_34 = arith.constant 1.000000e+00 : f32
    %124 = vector.broadcast %cst_34 : f32 to vector<64x32xf32>
    %125 = arith.subf %124, %118 : vector<64x32xf32>
    %126 = arith.mulf %125, %123 : vector<64x32xf32>
    %127 = arith.mulf %118, %85 : vector<64x32xf32>
    %128 = arith.addf %126, %127 : vector<64x32xf32>
    %c0_35 = arith.constant 0 : index
    %c32 = arith.constant 32 : index
    %129 = vector.load %arg6[%c0_35, %c32] : memref<64x128xf32, #tpu.memory_space<vmem>>, vector<64x32xf32>
    tpu.vector_store %arg6[%c0_35, %c32], %128 {strides = array<i32>} : memref<64x128xf32, #tpu.memory_space<vmem>>, vector<64x32xf32>,
    %130 = vector.extract_strided_slice %29 {offsets = [32, 0], sizes = [32, 64], strides = [1, 1]} : vector<96x64xf32> to vector<32x64xf32>
    %cst_36 = arith.constant dense<0.000000e+00> : vector<64x64xf32>
    %131 = tpu.matmul %128, %130, %cst_36 {dimension_numbers = #tpu.dot_dimension_numbers<[1], [0], [0], [1], [0, 0, 1, 1], [], []>} : vector<64x32xf32>, vector<32x64xf32>, vector<64x64xf32> -> vector<64x64xf32>
    %132 = arith.addf %89, %131 : vector<64x64xf32>
    %cst_37 = arith.constant dense<0.000000e+00> : vector<64x32xf32>
    %133 = tpu.matmul %22, %128, %cst_37 {dimension_numbers = #tpu.dot_dimension_numbers<[1], [0], [0], [1], [0, 0, 1, 1], [], []>} : vector<64x64xf32>, vector<64x32xf32>, vector<64x32xf32> -> vector<64x32xf32>
    %cst_38 = arith.constant dense<0.000000e+00> : vector<64x32xf32>
    %134 = tpu.matmul %133, %24, %cst_38 {dimension_numbers = #tpu.dot_dimension_numbers<[1], [0], [0], [1], [0, 0, 1, 1], [], []>} : vector<64x32xf32>, vector<32x32xf32>, vector<64x32xf32> -> vector<64x32xf32>
    %135 = arith.addf %134, %33 : vector<64x32xf32>
    %cst_39 = arith.constant 0.000000e+00 : f32
    %136 = vector.broadcast %cst_39 : f32 to vector<64x32xf32>
    %137 = arith.maximumf %135, %136 : vector<64x32xf32>
    %cst_40 = arith.constant dense<0.000000e+00> : vector<64x32xf32>
    %138 = tpu.matmul %137, %25, %cst_40 {dimension_numbers = #tpu.dot_dimension_numbers<[1], [0], [0], [1], [0, 0, 1, 1], [], []>} : vector<64x32xf32>, vector<32x32xf32>, vector<64x32xf32> -> vector<64x32xf32>
    %139 = arith.addf %138, %36 : vector<64x32xf32>
    %cst_41 = arith.constant 0.000000e+00 : f32
    %140 = vector.broadcast %cst_41 : f32 to vector<64x32xf32>
    %141 = arith.maximumf %139, %140 : vector<64x32xf32>
    %cst_42 = arith.constant dense<0.000000e+00> : vector<64x96xf32>
    %142 = tpu.matmul %141, %26, %cst_42 {dimension_numbers = #tpu.dot_dimension_numbers<[1], [0], [0], [1], [0, 0, 1, 1], [], []>} : vector<64x32xf32>, vector<32x96xf32>, vector<64x96xf32> -> vector<64x96xf32>
    %143 = arith.addf %142, %39 : vector<64x96xf32>
    %cst_43 = arith.constant dense<0.000000e+00> : vector<64x96xf32>
    %144 = tpu.matmul %128, %27, %cst_43 {dimension_numbers = #tpu.dot_dimension_numbers<[1], [0], [0], [1], [0, 0, 1, 1], [], []>} : vector<64x32xf32>, vector<32x96xf32>, vector<64x96xf32> -> vector<64x96xf32>
    %145 = arith.addf %144, %42 : vector<64x96xf32>
    %146 = vector.extract_strided_slice %143 {offsets = [0, 0], sizes = [64, 32], strides = [1, 1]} : vector<64x96xf32> to vector<64x32xf32>
    %147 = vector.extract_strided_slice %145 {offsets = [0, 0], sizes = [64, 32], strides = [1, 1]} : vector<64x96xf32> to vector<64x32xf32>
    %148 = arith.addf %146, %147 : vector<64x32xf32>
    %149 = arith.negf %148 : vector<64x32xf32>
    %150 = math.exp %149 : vector<64x32xf32>
    %cst_44 = arith.constant 1.000000e+00 : f32
    %151 = vector.broadcast %cst_44 : f32 to vector<64x32xf32>
    %152 = arith.addf %151, %150 : vector<64x32xf32>
    %153 = arith.divf %151, %152 : vector<64x32xf32>
    %154 = vector.extract_strided_slice %143 {offsets = [0, 32], sizes = [64, 32], strides = [1, 1]} : vector<64x96xf32> to vector<64x32xf32>
    %155 = vector.extract_strided_slice %145 {offsets = [0, 32], sizes = [64, 32], strides = [1, 1]} : vector<64x96xf32> to vector<64x32xf32>
    %156 = arith.addf %154, %155 : vector<64x32xf32>
    %157 = arith.negf %156 : vector<64x32xf32>
    %158 = math.exp %157 : vector<64x32xf32>
    %cst_45 = arith.constant 1.000000e+00 : f32
    %159 = vector.broadcast %cst_45 : f32 to vector<64x32xf32>
    %160 = arith.addf %159, %158 : vector<64x32xf32>
    %161 = arith.divf %159, %160 : vector<64x32xf32>
    %162 = vector.extract_strided_slice %143 {offsets = [0, 64], sizes = [64, 32], strides = [1, 1]} : vector<64x96xf32> to vector<64x32xf32>
    %163 = vector.extract_strided_slice %145 {offsets = [0, 64], sizes = [64, 32], strides = [1, 1]} : vector<64x96xf32> to vector<64x32xf32>
    %164 = arith.mulf %153, %163 : vector<64x32xf32>
    %165 = arith.addf %162, %164 : vector<64x32xf32>
    %166 = math.tanh %165 : vector<64x32xf32>
    %cst_46 = arith.constant 1.000000e+00 : f32
    %167 = vector.broadcast %cst_46 : f32 to vector<64x32xf32>
    %168 = arith.subf %167, %161 : vector<64x32xf32>
    %169 = arith.mulf %168, %166 : vector<64x32xf32>
    %170 = arith.mulf %161, %128 : vector<64x32xf32>
    %171 = arith.addf %169, %170 : vector<64x32xf32>
    %c0_47 = arith.constant 0 : index
    %c64 = arith.constant 64 : index
    %172 = vector.load %arg6[%c0_47, %c64] : memref<64x128xf32, #tpu.memory_space<vmem>>, vector<64x32xf32>
    tpu.vector_store %arg6[%c0_47, %c64], %171 {strides = array<i32>} : memref<64x128xf32, #tpu.memory_space<vmem>>, vector<64x32xf32>,
    %173 = vector.extract_strided_slice %29 {offsets = [64, 0], sizes = [32, 64], strides = [1, 1]} : vector<96x64xf32> to vector<32x64xf32>
    %cst_48 = arith.constant dense<0.000000e+00> : vector<64x64xf32>
    %174 = tpu.matmul %171, %173, %cst_48 {dimension_numbers = #tpu.dot_dimension_numbers<[1], [0], [0], [1], [0, 0, 1, 1], [], []>} : vector<64x32xf32>, vector<32x64xf32>, vector<64x64xf32> -> vector<64x64xf32>
    %175 = arith.addf %132, %174 : vector<64x64xf32>
    %176 = vector.broadcast %43 : vector<1x64xf32> to vector<64x64xf32>
    %177 = arith.addf %175, %176 : vector<64x64xf32>
    %cst_49 = arith.constant 0.000000e+00 : f32
    %178 = vector.broadcast %cst_49 : f32 to vector<64x64xf32>
    %179 = arith.maximumf %177, %178 : vector<64x64xf32>
    %cst_50 = arith.constant dense<0.000000e+00> : vector<64x32xf32>
    %180 = tpu.matmul %179, %30, %cst_50 {dimension_numbers = #tpu.dot_dimension_numbers<[1], [0], [0], [1], [0, 0, 1, 1], [], []>} : vector<64x64xf32>, vector<64x32xf32>, vector<64x32xf32> -> vector<64x32xf32>
    %181 = vector.broadcast %44 : vector<1x32xf32> to vector<64x32xf32>
    %182 = arith.addf %180, %181 : vector<64x32xf32>
    %c0_51 = arith.constant 0 : index
    %c96 = arith.constant 96 : index
    %183 = vector.load %arg6[%c0_51, %c96] : memref<64x128xf32, #tpu.memory_space<vmem>>, vector<64x32xf32>
    tpu.vector_store %arg6[%c0_51, %c96], %182 {strides = array<i32>} : memref<64x128xf32, #tpu.memory_space<vmem>>, vector<64x32xf32>,
    return
  }
}

</mosaic_0001>

<llo_original>
// kernel: gnn_triangles_forward.1
$region0: #{gnn_triangles_forward.1}
  #allocation0 [shape = 'u32[]', space=smem, size = 0x4, offset = 0x4, fixed_abs, tag = 'smem constant byte address 0x4 - core index']
  #allocation1 [shape = 'u32[144,128]{1,0:T(1,128)}', space=vmem, size = 0x12000, scoped, tag = 'internal scratch']
  %s0 = inlined_call_operand.vmem [shape: s32[256,1], index: 0, kind: input, shape index: {}]
  %s1 = inlined_call_operand.vmem [shape: s32[1,256], index: 1, kind: input, shape index: {}]
  %s2 = inlined_call_operand.vmem [shape: f32[64,32], index: 2, kind: input, shape index: {}]
  %s3 = inlined_call_operand.vmem [shape: f32[64,128], index: 3, kind: input, shape index: {}]
  %s4 = inlined_call_operand.vmem [shape: f32[96,96], index: 4, kind: input, shape index: {}]
  %s5 = inlined_call_operand.vmem [shape: f32[8,128], index: 5, kind: input, shape index: {}]
  %s6 = inlined_call_operand.vmem [shape: f32[64,128], index: 6, kind: output, shape index: {}]
  %s7 = sld [smem:[#allocation0]]
  $region34: #{gnn_triangles_forward.1} parent=0
    _
  %s9 = ssub.s32 1, %s7
  %s10 = scalar_select 0, %s9, %s7
  // Predicated region
  $region2: #{gnn_triangles_forward.1} parent=0 // pred_check
    _
  $region3: #{gnn_triangles_forward.1} parent=0 // pred_check_branch
    %12 = sbr.rel (0) target = $region5
  $region4: #{gnn_triangles_forward.1} parent=0 // pred_region
    _
  $region5: #{gnn_triangles_forward.1} parent=0 // pred_fallthru
    _
  // Predicated region
  $region6: #{gnn_triangles_forward.1} parent=0 // pred_check
    _
  $region7: #{gnn_triangles_forward.1} parent=0 // pred_check_branch
    %14 = sbr.rel (0) target = $region9
  $region8: #{gnn_triangles_forward.1} parent=0 // pred_region
    _
  $region9: #{gnn_triangles_forward.1} parent=0 // pred_fallthru
    _
  // Predicated region
  $region10: #{gnn_triangles_forward.1} parent=0 // pred_check
    _
  $region11: #{gnn_triangles_forward.1} parent=0 // pred_check_branch
    %16 = sbr.rel (0) target = $region13
  $region12: #{gnn_triangles_forward.1} parent=0 // pred_region
    _
  $region13: #{gnn_triangles_forward.1} parent=0 // pred_fallthru
    _
  // Predicated region
  $region14: #{gnn_triangles_forward.1} parent=0 // pred_check
    _
  $region15: #{gnn_triangles_forward.1} parent=0 // pred_check_branch
    %18 = sbr.rel (0) target = $region17
  $region16: #{gnn_triangles_forward.1} parent=0 // pred_region
    _
  $region17: #{gnn_triangles_forward.1} parent=0 // pred_fallthru
    _
  // Predicated region
  $region18: #{gnn_triangles_forward.1} parent=0 // pred_check
    _
  $region19: #{gnn_triangles_forward.1} parent=0 // pred_check_branch
    %20 = sbr.rel (0) target = $region21
  $region20: #{gnn_triangles_forward.1} parent=0 // pred_region
    _
  $region21: #{gnn_triangles_forward.1} parent=0 // pred_fallthru
    _
  // Predicated region
  $region22: #{gnn_triangles_forward.1} parent=0 // pred_check
    _
  $region23: #{gnn_triangles_forward.1} parent=0 // pred_check_branch
    %22 = sbr.rel (0) target = $region25
  $region24: #{gnn_triangles_forward.1} parent=0 // pred_region
    _
  $region25: #{gnn_triangles_forward.1} parent=0 // pred_fallthru
    _
  %v23 = vld [vmem:[%s0] sm:$0xff]
  %v24 = vld [vmem:[%s0 + $0x8] sm:$0xff]
  %v25 = vld [vmem:[%s0 + $0x10] sm:$0xff]
  %v26 = vld [vmem:[%s0 + $0x18] sm:$0xff]
  %v27 = vld [vmem:[%s0 + $0x20] sm:$0xff]
  %v28 = vld [vmem:[%s0 + $0x28] sm:$0xff]
  %v29 = vld [vmem:[%s0 + $0x30] sm:$0xff]
  %v30 = vld [vmem:[%s0 + $0x38] sm:$0xff]
  %v31 = vld [vmem:[%s0 + $0x40] sm:$0xff]
  %v32 = vld [vmem:[%s0 + $0x48] sm:$0xff]
  %v33 = vld [vmem:[%s0 + $0x50] sm:$0xff]
  %v34 = vld [vmem:[%s0 + $0x58] sm:$0xff]
  %v35 = vld [vmem:[%s0 + $0x60] sm:$0xff]
  %v36 = vld [vmem:[%s0 + $0x68] sm:$0xff]
  %v37 = vld [vmem:[%s0 + $0x70] sm:$0xff]
  %v38 = vld [vmem:[%s0 + $0x78] sm:$0xff]
  %v39 = vld [vmem:[%s0 + $0x80] sm:$0xff]
  %v40 = vld [vmem:[%s0 + $0x88] sm:$0xff]
  %v41 = vld [vmem:[%s0 + $0x90] sm:$0xff]
  %v42 = vld [vmem:[%s0 + $0x98] sm:$0xff]
  %v43 = vld [vmem:[%s0 + $0xa0] sm:$0xff]
  %v44 = vld [vmem:[%s0 + $0xa8] sm:$0xff]
  %v45 = vld [vmem:[%s0 + $0xb0] sm:$0xff]
  %v46 = vld [vmem:[%s0 + $0xb8] sm:$0xff]
  %v47 = vld [vmem:[%s0 + $0xc0] sm:$0xff]
  %v48 = vld [vmem:[%s0 + $0xc8] sm:$0xff]
  %v49 = vld [vmem:[%s0 + $0xd0] sm:$0xff]
  %v50 = vld [vmem:[%s0 + $0xd8] sm:$0xff]
  %v51 = vld [vmem:[%s0 + $0xe0] sm:$0xff]
  %v52 = vld [vmem:[%s0 + $0xe8] sm:$0xff]
  %v53 = vld [vmem:[%s0 + $0xf0] sm:$0xff]
  %v54 = vld [vmem:[%s0 + $0xf8] sm:$0xff]
  %v55 = vld [vmem:[%s1] sm:$0x3]
  %v56 = vlaneseq
  %v57 = vshrl.u32 %v56, 7
  %v58 = vadd.s32 %v57, 8
  %v59 = vadd.s32 %v57, 16
  %v60 = vadd.s32 %v57, 24
  %v61 = vadd.s32 %v57, 32
  %v62 = vadd.s32 %v57, 40
  %v63 = vadd.s32 %v57, 48
  %v64 = vadd.s32 %v57, 56
  %v65 = vlaneseq
  %v66 = vshrl.u32 %v65, 7
  %v67 = vsub.s32 0, %v66
  %v68 = vrot.slane %v55, %v67
  %v69 = vlaneseq
  %v70 = vshrl.u32 %v69, 7
  %v71 = vsub.s32 1, %v70
  %v72 = vrot.slane %v55, %v71
  %vm73 = vcmp.eq.s32.totalorder %v57, %v68
  %vm74 = vcmp.eq.s32.totalorder %v57, %v72
  %vm75 = vcmp.eq.s32.totalorder %v58, %v68
  %vm76 = vcmp.eq.s32.totalorder %v58, %v72
  %vm77 = vcmp.eq.s32.totalorder %v59, %v68
  %vm78 = vcmp.eq.s32.totalorder %v59, %v72
  %vm79 = vcmp.eq.s32.totalorder %v60, %v68
  %vm80 = vcmp.eq.s32.totalorder %v60, %v72
  %vm81 = vcmp.eq.s32.totalorder %v61, %v68
  %vm82 = vcmp.eq.s32.totalorder %v61, %v72
  %vm83 = vcmp.eq.s32.totalorder %v62, %v68
  %vm84 = vcmp.eq.s32.totalorder %v62, %v72
  %vm85 = vcmp.eq.s32.totalorder %v63, %v68
  %vm86 = vcmp.eq.s32.totalorder %v63, %v72
  %vm87 = vcmp.eq.s32.totalorder %v64, %v68
  %vm88 = vcmp.eq.s32.totalorder %v64, %v72
  %v89 = vsel %vm73, 1, 0
  %v90 = vsel %vm74, 1, 0
  %v91 = vsel %vm75, 1, 0
  %v92 = vsel %vm76, 1, 0
  %v93 = vsel %vm77, 1, 0
  %v94 = vsel %vm78, 1, 0
  %v95 = vsel %vm79, 1, 0
  %v96 = vsel %vm80, 1, 0
  %v97 = vsel %vm81, 1, 0
  %v98 = vsel %vm82, 1, 0
  %v99 = vsel %vm83, 1, 0
  %v100 = vsel %vm84, 1, 0
  %v101 = vsel %vm85, 1, 0
  %v102 = vsel %vm86, 1, 0
  %v103 = vsel %vm87, 1, 0
  %v104 = vsel %vm88, 1, 0
  %v105 = vcvt.s32.f32 %v89
  %v106 = vcvt.s32.f32 %v90
  %v107 = vcvt.s32.f32 %v91
  %v108 = vcvt.s32.f32 %v92
  %v109 = vcvt.s32.f32 %v93
  %v110 = vcvt.s32.f32 %v94
  %v111 = vcvt.s32.f32 %v95
  %v112 = vcvt.s32.f32 %v96
  %v113 = vcvt.s32.f32 %v97
  %v114 = vcvt.s32.f32 %v98
  %v115 = vcvt.s32.f32 %v99
  %v116 = vcvt.s32.f32 %v100
  %v117 = vcvt.s32.f32 %v101
  %v118 = vcvt.s32.f32 %v102
  %v119 = vcvt.s32.f32 %v103
  %v120 = vcvt.s32.f32 %v104
  %v121 = vlaneseq
  %v122 = vand.u32 %v121, 127
  %123 = vset.pattern.permute.xlu0 0
  %124 = vperm.xlu0 %123, %v23
  %v125 = vpop.permute.xlu0 %124
  %126 = vset.pattern.permute.xlu0 0
  %127 = vperm.xlu0 %126, %v24
  %v128 = vpop.permute.xlu0 %127
  %129 = vset.pattern.permute.xlu0 0
  %130 = vperm.xlu0 %129, %v25
  %v131 = vpop.permute.xlu0 %130
  %132 = vset.pattern.permute.xlu0 0
  %133 = vperm.xlu0 %132, %v26
  %v134 = vpop.permute.xlu0 %133
  %135 = vset.pattern.permute.xlu0 0
  %136 = vperm.xlu0 %135, %v27
  %v137 = vpop.permute.xlu0 %136
  %138 = vset.pattern.permute.xlu0 0
  %139 = vperm.xlu0 %138, %v28
  %v140 = vpop.permute.xlu0 %139
  %141 = vset.pattern.permute.xlu0 0
  %142 = vperm.xlu0 %141, %v29
  %v143 = vpop.permute.xlu0 %142
  %144 = vset.pattern.permute.xlu0 0
  %145 = vperm.xlu0 %144, %v30
  %v146 = vpop.permute.xlu0 %145
  %147 = vset.pattern.permute.xlu0 0
  %148 = vperm.xlu0 %147, %v31
  %v149 = vpop.permute.xlu0 %148
  %150 = vset.pattern.permute.xlu0 0
  %151 = vperm.xlu0 %150, %v32
  %v152 = vpop.permute.xlu0 %151
  %153 = vset.pattern.permute.xlu0 0
  %154 = vperm.xlu0 %153, %v33
  %v155 = vpop.permute.xlu0 %154
  %156 = vset.pattern.permute.xlu0 0
  %157 = vperm.xlu0 %156, %v34
  %v158 = vpop.permute.xlu0 %157
  %159 = vset.pattern.permute.xlu0 0
  %160 = vperm.xlu0 %159, %v35
  %v161 = vpop.permute.xlu0 %160
  %162 = vset.pattern.permute.xlu0 0
  %163 = vperm.xlu0 %162, %v36
  %v164 = vpop.permute.xlu0 %163
  %165 = vset.pattern.permute.xlu0 0
  %166 = vperm.xlu0 %165, %v37
  %v167 = vpop.permute.xlu0 %166
  %168 = vset.pattern.permute.xlu0 0
  %169 = vperm.xlu0 %168, %v38
  %v170 = vpop.permute.xlu0 %169
  %171 = vset.pattern.permute.xlu0 0
  %172 = vperm.xlu0 %171, %v39
  %v173 = vpop.permute.xlu0 %172
  %174 = vset.pattern.permute.xlu0 0
  %175 = vperm.xlu0 %174, %v40
  %v176 = vpop.permute.xlu0 %175
  %177 = vset.pattern.permute.xlu0 0
  %178 = vperm.xlu0 %177, %v41
  %v179 = vpop.permute.xlu0 %178
  %180 = vset.pattern.permute.xlu0 0
  %181 = vperm.xlu0 %180, %v42
  %v182 = vpop.permute.xlu0 %181
  %183 = vset.pattern.permute.xlu0 0
  %184 = vperm.xlu0 %183, %v43
  %v185 = vpop.permute.xlu0 %184
  %186 = vset.pattern.permute.xlu0 0
  %187 = vperm.xlu0 %186, %v44
  %v188 = vpop.permute.xlu0 %187
  %189 = vset.pattern.permute.xlu0 0
  %190 = vperm.xlu0 %189, %v45
  %v191 = vpop.permute.xlu0 %190
  %192 = vset.pattern.permute.xlu0 0
  %193 = vperm.xlu0 %192, %v46
  %v194 = vpop.permute.xlu0 %193
  %195 = vset.pattern.permute.xlu0 0
  %196 = vperm.xlu0 %195, %v47
  %v197 = vpop.permute.xlu0 %196
  %198 = vset.pattern.permute.xlu0 0
  %199 = vperm.xlu0 %198, %v48
  %v200 = vpop.permute.xlu0 %199
  %201 = vset.pattern.permute.xlu0 0
  %202 = vperm.xlu0 %201, %v49
  %v203 = vpop.permute.xlu0 %202
  %204 = vset.pattern.permute.xlu0 0
  %205 = vperm.xlu0 %204, %v50
  %v206 = vpop.permute.xlu0 %205
  %207 = vset.pattern.permute.xlu0 0
  %208 = vperm.xlu0 %207, %v51
  %v209 = vpop.permute.xlu0 %208
  %210 = vset.pattern.permute.xlu0 0
  %211 = vperm.xlu0 %210, %v52
  %v212 = vpop.permute.xlu0 %211
  %213 = vset.pattern.permute.xlu0 0
  %214 = vperm.xlu0 %213, %v53
  %v215 = vpop.permute.xlu0 %214
  %216 = vset.pattern.permute.xlu0 0
  %217 = vperm.xlu0 %216, %v54
  %v218 = vpop.permute.xlu0 %217
  %vm219 = vcmp.eq.s32.totalorder %v122, %v125
  %vm220 = vcmp.eq.s32.totalorder %v122, %v128
  %vm221 = vcmp.eq.s32.totalorder %v122, %v131
  %vm222 = vcmp.eq.s32.totalorder %v122, %v134
  %vm223 = vcmp.eq.s32.totalorder %v122, %v137
  %vm224 = vcmp.eq.s32.totalorder %v122, %v140
  %vm225 = vcmp.eq.s32.totalorder %v122, %v143
  %vm226 = vcmp.eq.s32.totalorder %v122, %v146
  %vm227 = vcmp.eq.s32.totalorder %v122, %v149
  %vm228 = vcmp.eq.s32.totalorder %v122, %v152
  %vm229 = vcmp.eq.s32.totalorder %v122, %v155
  %vm230 = vcmp.eq.s32.totalorder %v122, %v158
  %vm231 = vcmp.eq.s32.totalorder %v122, %v161
  %vm232 = vcmp.eq.s32.totalorder %v122, %v164
  %vm233 = vcmp.eq.s32.totalorder %v122, %v167
  %vm234 = vcmp.eq.s32.totalorder %v122, %v170
  %vm235 = vcmp.eq.s32.totalorder %v122, %v173
  %vm236 = vcmp.eq.s32.totalorder %v122, %v176
  %vm237 = vcmp.eq.s32.totalorder %v122, %v179
  %vm238 = vcmp.eq.s32.totalorder %v122, %v182
  %vm239 = vcmp.eq.s32.totalorder %v122, %v185
  %vm240 = vcmp.eq.s32.totalorder %v122, %v188
  %vm241 = vcmp.eq.s32.totalorder %v122, %v191
  %vm242 = vcmp.eq.s32.totalorder %v122, %v194
  %vm243 = vcmp.eq.s32.totalorder %v122, %v197
  %vm244 = vcmp.eq.s32.totalorder %v122, %v200
  %vm245 = vcmp.eq.s32.totalorder %v122, %v203
  %vm246 = vcmp.eq.s32.totalorder %v122, %v206
  %vm247 = vcmp.eq.s32.totalorder %v122, %v209
  %vm248 = vcmp.eq.s32.totalorder %v122, %v212
  %vm249 = vcmp.eq.s32.totalorder %v122, %v215
  %vm250 = vcmp.eq.s32.totalorder %v122, %v218
  %v251 = vsel %vm219, 1, 0
  %v252 = vsel %vm220, 1, 0
  %v253 = vsel %vm221, 1, 0
  %v254 = vsel %vm222, 1, 0
  %v255 = vsel %vm223, 1, 0
  %v256 = vsel %vm224, 1, 0
  %v257 = vsel %vm225, 1, 0
  %v258 = vsel %vm226, 1, 0
  %v259 = vsel %vm227, 1, 0
  %v260 = vsel %vm228, 1, 0
  %v261 = vsel %vm229, 1, 0
  %v262 = vsel %vm230, 1, 0
  %v263 = vsel %vm231, 1, 0
  %v264 = vsel %vm232, 1, 0
  %v265 = vsel %vm233, 1, 0
  %v266 = vsel %vm234, 1, 0
  %v267 = vsel %vm235, 1, 0
  %v268 = vsel %vm236, 1, 0
  %v269 = vsel %vm237, 1, 0
  %v270 = vsel %vm238, 1, 0
  %v271 = vsel %vm239, 1, 0
  %v272 = vsel %vm240, 1, 0
  %v273 = vsel %vm241, 1, 0
  %v274 = vsel %vm242, 1, 0
  %v275 = vsel %vm243, 1, 0
  %v276 = vsel %vm244, 1, 0
  %v277 = vsel %vm245, 1, 0
  %v278 = vsel %vm246, 1, 0
  %v279 = vsel %vm247, 1, 0
  %v280 = vsel %vm248, 1, 0
  %v281 = vsel %vm249, 1, 0
  %v282 = vsel %vm250, 1, 0
  %v283 = vcvt.s32.f32 %v251
  %v284 = vcvt.s32.f32 %v252
  %v285 = vcvt.s32.f32 %v253
  %v286 = vcvt.s32.f32 %v254
  %v287 = vcvt.s32.f32 %v255
  %v288 = vcvt.s32.f32 %v256
  %v289 = vcvt.s32.f32 %v257
  %v290 = vcvt.s32.f32 %v258
  %v291 = vcvt.s32.f32 %v259
  %v292 = vcvt.s32.f32 %v260
  %v293 = vcvt.s32.f32 %v261
  %v294 = vcvt.s32.f32 %v262
  %v295 = vcvt.s32.f32 %v263
  %v296 = vcvt.s32.f32 %v264
  %v297 = vcvt.s32.f32 %v265
  %v298 = vcvt.s32.f32 %v266
  %v299 = vcvt.s32.f32 %v267
  %v300 = vcvt.s32.f32 %v268
  %v301 = vcvt.s32.f32 %v269
  %v302 = vcvt.s32.f32 %v270
  %v303 = vcvt.s32.f32 %v271
  %v304 = vcvt.s32.f32 %v272
  %v305 = vcvt.s32.f32 %v273
  %v306 = vcvt.s32.f32 %v274
  %v307 = vcvt.s32.f32 %v275
  %v308 = vcvt.s32.f32 %v276
  %v309 = vcvt.s32.f32 %v277
  %v310 = vcvt.s32.f32 %v278
  %v311 = vcvt.s32.f32 %v279
  %v312 = vcvt.s32.f32 %v280
  %v313 = vcvt.s32.f32 %v281
  %v314 = vcvt.s32.f32 %v282
  %v315 = vld [vmem:[%s5] sm:$0xff]
  %vm316 = vcmp.eq.s32.totalorder %v57, %v122
  %vm317 = vcmp.eq.s32.totalorder %v58, %v122
  %vm318 = vcmp.eq.s32.totalorder %v59, %v122
  %vm319 = vcmp.eq.s32.totalorder %v60, %v122
  %vm320 = vcmp.eq.s32.totalorder %v61, %v122
  %vm321 = vcmp.eq.s32.totalorder %v62, %v122
  %vm322 = vcmp.eq.s32.totalorder %v63, %v122
  %vm323 = vcmp.eq.s32.totalorder %v64, %v122
  %v324 = vsel %vm316, 1, 0
  %v325 = vsel %vm317, 1, 0
  %v326 = vsel %vm318, 1, 0
  %v327 = vsel %vm319, 1, 0
  %v328 = vsel %vm320, 1, 0
  %v329 = vsel %vm321, 1, 0
  %v330 = vsel %vm322, 1, 0
  %v331 = vsel %vm323, 1, 0
  %v332 = vcvt.s32.f32 %v324
  %v333 = vcvt.s32.f32 %v325
  %v334 = vcvt.s32.f32 %v326
  %v335 = vcvt.s32.f32 %v327
  %v336 = vcvt.s32.f32 %v328
  %v337 = vcvt.s32.f32 %v329
  %v338 = vcvt.s32.f32 %v330
  %v339 = vcvt.s32.f32 %v331
  %v341 = vrot.slane %v315, 6
  %s342 = vtos %v341
  %v343 = vstv %s342
  %v345 = vmul.f32 %v343, %v332
  %v346 = vmul.f32 %v343, %v333
  %v347 = vmul.f32 %v343, %v334
  %v348 = vmul.f32 %v343, %v335
  %v349 = vmul.f32 %v343, %v336
  %v350 = vmul.f32 %v343, %v337
  %v351 = vmul.f32 %v343, %v338
  %v352 = vmul.f32 %v343, %v339
  %353 = vmatprep.subr.mxu0 0.0
  %354 = vmatpush1.msra.mxu0 %v298
  %355 = vmatprep.subr.mxu0 0.0
  %356 = vmatpush1.msra.mxu0 %v297
  %357 = vmatprep.subr.mxu0 0.0
  %358 = vmatpush1.msra.mxu0 %v296
  %359 = vmatprep.subr.mxu0 0.0
  %360 = vmatpush1.msra.mxu0 %v295
  %361 = vmatprep.subr.mxu0 0.0
  %362 = vmatpush1.msra.mxu0 %v294
  %363 = vmatprep.subr.mxu0 0.0
  %364 = vmatpush1.msra.mxu0 %v293
  %365 = vmatprep.subr.mxu0 0.0
  %366 = vmatpush1.msra.mxu0 %v292
  %367 = vmatprep.subr.mxu0 0.0
  %368 = vmatpush1.msra.mxu0 %v291
  %369 = vmatprep.subr.mxu0 0.0
  %370 = vmatpush1.msra.mxu0 %v290
  %371 = vmatprep.subr.mxu0 0.0
  %372 = vmatpush1.msra.mxu0 %v289
  %373 = vmatprep.subr.mxu0 0.0
  %374 = vmatpush1.msra.mxu0 %v288
  %375 = vmatprep.subr.mxu0 0.0
  %376 = vmatpush1.msra.mxu0 %v287
  %377 = vmatprep.subr.mxu0 0.0
  %378 = vmatpush1.msra.mxu0 %v286
  %379 = vmatprep.subr.mxu0 0.0
  %380 = vmatpush1.msra.mxu0 %v285
  %381 = vmatprep.subr.mxu0 0.0
  %382 = vmatpush1.msra.mxu0 %v284
  %383 = vmatprep.subr.mxu0 0.0
  %384 = vmatpush1.msra.mxu0 %v283
  %385 = vmatprep.subr.mxu0 0.0
  %386 = vmatpush2.msra.mxu0 %v314
  %387 = vmatprep.subr.mxu0 0.0
  %388 = vmatpush2.msra.mxu0 %v313
  %389 = vmatprep.subr.mxu0 0.0
  %390 = vmatpush2.msra.mxu0 %v312
  %391 = vmatprep.subr.mxu0 0.0
  %392 = vmatpush2.msra.mxu0 %v311
  %393 = vmatprep.subr.mxu0 0.0
  %394 = vmatpush2.msra.mxu0 %v310
  %395 = vmatprep.subr.mxu0 0.0
  %396 = vmatpush2.msra.mxu0 %v309
  %397 = vmatprep.subr.mxu0 0.0
  %398 = vmatpush2.msra.mxu0 %v308
  %399 = vmatprep.subr.mxu0 0.0
  %400 = vmatpush2.msra.mxu0 %v307
  %401 = vmatprep.subr.mxu0 0.0
  %402 = vmatpush2.msra.mxu0 %v306
  %403 = vmatprep.subr.mxu0 0.0
  %404 = vmatpush2.msra.mxu0 %v305
  %405 = vmatprep.subr.mxu0 0.0
  %406 = vmatpush2.msra.mxu0 %v304
  %407 = vmatprep.subr.mxu0 0.0
  %408 = vmatpush2.msra.mxu0 %v303
  %409 = vmatprep.subr.mxu0 0.0
  %410 = vmatpush2.msra.mxu0 %v302
  %411 = vmatprep.subr.mxu0 0.0
  %412 = vmatpush2.msra.mxu0 %v301
  %413 = vmatprep.subr.mxu0 0.0
  %414 = vmatpush2.msra.mxu0 %v300
  %415 = vmatprep.subr.mxu0 0.0
  %416 = vmatpush2.msra.mxu0 %v299
  %417 = vmatprep.mubr.f32.mxu0 %v106
  %418 = vmatmul.mubr.f32.gmra.mxu0 %v105
  %v419 = vpop.f32.mrf.mxu0
  %v420 = vadd.f32 %v345, %v419
  %v421 = vpop.f32.mrf.mxu0
  %422 = vmatprep.mubr.f32.mxu0 %v108
  %423 = vmatmul.mubr.f32.gmra.mxu0 %v107
  %v424 = vpop.f32.mrf.mxu0
  %v425 = vadd.f32 %v346, %v424
  %v426 = vpop.f32.mrf.mxu0
  %427 = vmatprep.mubr.f32.mxu0 %v110
  %428 = vmatmul.mubr.f32.gmra.mxu0 %v109
  %v429 = vpop.f32.mrf.mxu0
  %v430 = vadd.f32 %v347, %v429
  %v431 = vpop.f32.mrf.mxu0
  %432 = vmatprep.mubr.f32.mxu0 %v112
  %433 = vmatmul.mubr.f32.gmra.mxu0 %v111
  %v434 = vpop.f32.mrf.mxu0
  %v435 = vadd.f32 %v348, %v434
  %v436 = vpop.f32.mrf.mxu0
  %437 = vmatprep.mubr.f32.mxu0 %v114
  %438 = vmatmul.mubr.f32.gmra.mxu0 %v113
  %v439 = vpop.f32.mrf.mxu0
  %v440 = vadd.f32 %v349, %v439
  %v441 = vpop.f32.mrf.mxu0
  %442 = vmatprep.mubr.f32.mxu0 %v116
  %443 = vmatmul.mubr.f32.gmra.mxu0 %v115
  %v444 = vpop.f32.mrf.mxu0
  %v445 = vadd.f32 %v350, %v444
  %v446 = vpop.f32.mrf.mxu0
  %447 = vmatprep.mubr.f32.mxu0 %v118
  %448 = vmatmul.mubr.f32.gmra.mxu0 %v117
  %v449 = vpop.f32.mrf.mxu0
  %v450 = vadd.f32 %v351, %v449
  %v451 = vpop.f32.mrf.mxu0
  %452 = vmatprep.mubr.f32.mxu0 %v120
  %453 = vmatmul.mubr.f32.gmra.mxu0 %v119
  %v454 = vpop.f32.mrf.mxu0
  %v455 = vadd.f32 %v352, %v454
  %v456 = vpop.f32.mrf.mxu0
  %457 = vdwg.mxu0
  %v458 = vld [vmem:[%s3] sm:$0xff]
  %v459 = vld [vmem:[%s3 + $0x8] sm:$0xff]
  %v460 = vld [vmem:[%s3 + $0x10] sm:$0xff]
  %v461 = vld [vmem:[%s3 + $0x18] sm:$0xff]
  %v462 = vld [vmem:[%s3 + $0x20] sm:$0xff]
  %v463 = vld [vmem:[%s3 + $0x28] sm:$0xff]
  %v464 = vld [vmem:[%s3 + $0x30] sm:$0xff]
  %v465 = vld [vmem:[%s3 + $0x38] sm:$0xff]
  %v466 = vld [vmem:[%s4] sm:$0xff]
  %v467 = vld [vmem:[%s4 + $0x8] sm:$0xff]
  %v468 = vld [vmem:[%s4 + $0x10] sm:$0xff]
  %v469 = vld [vmem:[%s4 + $0x18] sm:$0xff]
  %v470 = vld [vmem:[%s4 + $0x20] sm:$0xff]
  %v471 = vld [vmem:[%s4 + $0x28] sm:$0xff]
  %v472 = vld [vmem:[%s4 + $0x30] sm:$0xff]
  %v473 = vld [vmem:[%s4 + $0x38] sm:$0xff]
  %v474 = vld [vmem:[%s4 + $0x40] sm:$0xff]
  %v475 = vld [vmem:[%s4 + $0x48] sm:$0xff]
  %v476 = vld [vmem:[%s4 + $0x50] sm:$0xff]
  %v477 = vld [vmem:[%s4 + $0x58] sm:$0xff]
  %v478 = vlaneseq
  %v479 = vshrl.u32 %v478, 7
  %v480 = vsub.s32 0, %v479
  %v481 = vrot.slane %v315, %v480
  %v482 = vlaneseq
  %v483 = vshrl.u32 %v482, 7
  %v484 = vsub.s32 1, %v483
  %v485 = vrot.slane %v315, %v484
  %v486 = vlaneseq
  %v487 = vshrl.u32 %v486, 7
  %v488 = vsub.s32 2, %v487
  %v489 = vrot.slane %v315, %v488
  %v490 = vlaneseq
  %v491 = vshrl.u32 %v490, 7
  %v492 = vsub.s32 3, %v491
  %v493 = vrot.slane %v315, %v492
  %v494 = vld [vmem:[%s2] sm:$0xff]
  %v495 = vld [vmem:[%s2 + $0x8] sm:$0xff]
  %v496 = vld [vmem:[%s2 + $0x10] sm:$0xff]
  %v497 = vld [vmem:[%s2 + $0x18] sm:$0xff]
  %v498 = vld [vmem:[%s2 + $0x20] sm:$0xff]
  %v499 = vld [vmem:[%s2 + $0x28] sm:$0xff]
  %v500 = vld [vmem:[%s2 + $0x30] sm:$0xff]
  %v501 = vld [vmem:[%s2 + $0x38] sm:$0xff]
  %vm502 = vcmask 523264
  %v504 = vsel %vm502, %v420, 0
  %v507 = vsel %vm502, %v425, 0
  %v510 = vsel %vm502, %v430, 0
  %v513 = vsel %vm502, %v435, 0
  %v516 = vsel %vm502, %v440, 0
  %v519 = vsel %vm502, %v445, 0
  %v522 = vsel %vm502, %v450, 0
  %v525 = vsel %vm502, %v455, 0
  %527 = vmatprep.subr.mxu0 0.0
  %528 = vmatpush1.msra.mxu0 0.0
  %529 = vmatprep.subr.mxu0 0.0
  %530 = vmatpush1.msra.mxu0 0.0
  %531 = vmatprep.subr.mxu0 0.0
  %532 = vmatpush1.msra.mxu0 0.0
  %533 = vmatprep.subr.mxu0 0.0
  %534 = vmatpush1.msra.mxu0 0.0
  %535 = vmatprep.subr.mxu0 0.0
  %536 = vmatpush1.msra.mxu0 0.0
  %537 = vmatprep.subr.mxu0 0.0
  %538 = vmatpush1.msra.mxu0 0.0
  %539 = vmatprep.subr.mxu0 0.0
  %540 = vmatpush1.msra.mxu0 0.0
  %541 = vmatprep.subr.mxu0 0.0
  %542 = vmatpush1.msra.mxu0 0.0
  %543 = vmatprep.subr.mxu0 0.0
  %544 = vmatpush1.msra.mxu0 %v501
  %545 = vmatprep.subr.mxu0 0.0
  %546 = vmatpush1.msra.mxu0 %v500
  %547 = vmatprep.subr.mxu0 0.0
  %548 = vmatpush1.msra.mxu0 %v499
  %549 = vmatprep.subr.mxu0 0.0
  %550 = vmatpush1.msra.mxu0 %v498
  %551 = vmatprep.subr.mxu0 0.0
  %552 = vmatpush1.msra.mxu0 %v497
  %553 = vmatprep.subr.mxu0 0.0
  %554 = vmatpush1.msra.mxu0 %v496
  %555 = vmatprep.subr.mxu0 0.0
  %556 = vmatpush1.msra.mxu0 %v495
  %557 = vmatprep.subr.mxu0 0.0
  %558 = vmatpush1.msra.mxu0 %v494
  %559 = vmatprep.subr.mxu0 0.0
  %560 = vmatpush2.msra.mxu0 0.0
  %561 = vmatprep.subr.mxu0 0.0
  %562 = vmatpush2.msra.mxu0 0.0
  %563 = vmatprep.subr.mxu0 0.0
  %564 = vmatpush2.msra.mxu0 0.0
  %565 = vmatprep.subr.mxu0 0.0
  %566 = vmatpush2.msra.mxu0 0.0
  %567 = vmatprep.subr.mxu0 0.0
  %568 = vmatpush2.msra.mxu0 0.0
  %569 = vmatprep.subr.mxu0 0.0
  %570 = vmatpush2.msra.mxu0 0.0
  %571 = vmatprep.subr.mxu0 0.0
  %572 = vmatpush2.msra.mxu0 0.0
  %573 = vmatprep.subr.mxu0 0.0
  %574 = vmatpush2.msra.mxu0 0.0
  %575 = vmatprep.subr.mxu0 0.0
  %576 = vmatpush2.msra.mxu0 0.0
  %577 = vmatprep.subr.mxu0 0.0
  %578 = vmatpush2.msra.mxu0 0.0
  %579 = vmatprep.subr.mxu0 0.0
  %580 = vmatpush2.msra.mxu0 0.0
  %581 = vmatprep.subr.mxu0 0.0
  %582 = vmatpush2.msra.mxu0 0.0
  %583 = vmatprep.subr.mxu0 0.0
  %584 = vmatpush2.msra.mxu0 0.0
  %585 = vmatprep.subr.mxu0 0.0
  %586 = vmatpush2.msra.mxu0 0.0
  %587 = vmatprep.subr.mxu0 0.0
  %588 = vmatpush2.msra.mxu0 0.0
  %589 = vmatprep.subr.mxu0 0.0
  %590 = vmatpush2.msra.mxu0 0.0
  %591 = vmatprep.mubr.f32.mxu0 0.0
  %592 = vmatmul.mubr.f32.gmra.mxu0 %v504
  %v593 = vpop.f32.mrf.mxu0
  %v594 = vadd.f32 0.0, %v593
  %v595 = vpop.f32.mrf.mxu0
  %596 = vmatprep.mubr.f32.mxu0 0.0
  %597 = vmatmul.mubr.f32.gmra.mxu0 %v507
  %v598 = vpop.f32.mrf.mxu0
  %v599 = vadd.f32 0.0, %v598
  %v600 = vpop.f32.mrf.mxu0
  %601 = vmatprep.mubr.f32.mxu0 0.0
  %602 = vmatmul.mubr.f32.gmra.mxu0 %v510
  %v603 = vpop.f32.mrf.mxu0
  %v604 = vadd.f32 0.0, %v603
  %v605 = vpop.f32.mrf.mxu0
  %606 = vmatprep.mubr.f32.mxu0 0.0
  %607 = vmatmul.mubr.f32.gmra.mxu0 %v513
  %v608 = vpop.f32.mrf.mxu0
  %v609 = vadd.f32 0.0, %v608
  %v610 = vpop.f32.mrf.mxu0
  %611 = vmatprep.mubr.f32.mxu0 0.0
  %612 = vmatmul.mubr.f32.gmra.mxu0 %v516
  %v613 = vpop.f32.mrf.mxu0
  %v614 = vadd.f32 0.0, %v613
  %v615 = vpop.f32.mrf.mxu0
  %616 = vmatprep.mubr.f32.mxu0 0.0
  %617 = vmatmul.mubr.f32.gmra.mxu0 %v519
  %v618 = vpop.f32.mrf.mxu0
  %v619 = vadd.f32 0.0, %v618
  %v620 = vpop.f32.mrf.mxu0
  %621 = vmatprep.mubr.f32.mxu0 0.0
  %622 = vmatmul.mubr.f32.gmra.mxu0 %v522
  %v623 = vpop.f32.mrf.mxu0
  %v624 = vadd.f32 0.0, %v623
  %v625 = vpop.f32.mrf.mxu0
  %626 = vmatprep.mubr.f32.mxu0 0.0
  %627 = vmatmul.mubr.f32.gmra.mxu0 %v525
  %v628 = vpop.f32.mrf.mxu0
  %v629 = vadd.f32 0.0, %v628
  %v630 = vpop.f32.mrf.mxu0
  %631 = vdwg.mxu0
  %vm632 = vcmask 261120
  %v634 = vsel %vm632, %v594, 0
  %v637 = vsel %vm632, %v599, 0
  %v640 = vsel %vm632, %v604, 0
  %v643 = vsel %vm632, %v609, 0
  %v646 = vsel %vm632, %v614, 0
  %v649 = vsel %vm632, %v619, 0
  %v652 = vsel %vm632, %v624, 0
  %v655 = vsel %vm632, %v629, 0
  %657 = vmatprep.subr.mxu0 0.0
  %658 = vmatpush1.msra.mxu0 0.0
  %659 = vmatprep.subr.mxu0 0.0
  %660 = vmatpush1.msra.mxu0 0.0
  %661 = vmatprep.subr.mxu0 0.0
  %662 = vmatpush1.msra.mxu0 0.0
  %663 = vmatprep.subr.mxu0 0.0
  %664 = vmatpush1.msra.mxu0 0.0
  %665 = vmatprep.subr.mxu0 0.0
  %666 = vmatpush1.msra.mxu0 0.0
  %667 = vmatprep.subr.mxu0 0.0
  %668 = vmatpush1.msra.mxu0 0.0
  %669 = vmatprep.subr.mxu0 0.0
  %670 = vmatpush1.msra.mxu0 0.0
  %671 = vmatprep.subr.mxu0 0.0
  %672 = vmatpush1.msra.mxu0 0.0
  %673 = vmatprep.subr.mxu0 0.0
  %674 = vmatpush1.msra.mxu0 0.0
  %675 = vmatprep.subr.mxu0 0.0
  %676 = vmatpush1.msra.mxu0 0.0
  %677 = vmatprep.subr.mxu0 0.0
  %678 = vmatpush1.msra.mxu0 0.0
  %679 = vmatprep.subr.mxu0 0.0
  %680 = vmatpush1.msra.mxu0 0.0
  %681 = vmatprep.subr.mxu0 0.0
  %682 = vmatpush1.msra.mxu0 %v461
  %683 = vmatprep.subr.mxu0 0.0
  %684 = vmatpush1.msra.mxu0 %v460
  %685 = vmatprep.subr.mxu0 0.0
  %686 = vmatpush1.msra.mxu0 %v459
  %687 = vmatprep.subr.mxu0 0.0
  %688 = vmatpush1.msra.mxu0 %v458
  %689 = vmatprep.subr.mxu0 0.0
  %690 = vmatpush2.msra.mxu0 0.0
  %691 = vmatprep.subr.mxu0 0.0
  %692 = vmatpush2.msra.mxu0 0.0
  %693 = vmatprep.subr.mxu0 0.0
  %694 = vmatpush2.msra.mxu0 0.0
  %695 = vmatprep.subr.mxu0 0.0
  %696 = vmatpush2.msra.mxu0 0.0
  %697 = vmatprep.subr.mxu0 0.0
  %698 = vmatpush2.msra.mxu0 0.0
  %699 = vmatprep.subr.mxu0 0.0
  %700 = vmatpush2.msra.mxu0 0.0
  %701 = vmatprep.subr.mxu0 0.0
  %702 = vmatpush2.msra.mxu0 0.0
  %703 = vmatprep.subr.mxu0 0.0
  %704 = vmatpush2.msra.mxu0 0.0
  %705 = vmatprep.subr.mxu0 0.0
  %706 = vmatpush2.msra.mxu0 0.0
  %707 = vmatprep.subr.mxu0 0.0
  %708 = vmatpush2.msra.mxu0 0.0
  %709 = vmatprep.subr.mxu0 0.0
  %710 = vmatpush2.msra.mxu0 0.0
  %711 = vmatprep.subr.mxu0 0.0
  %712 = vmatpush2.msra.mxu0 0.0
  %713 = vmatprep.subr.mxu0 0.0
  %714 = vmatpush2.msra.mxu0 0.0
  %715 = vmatprep.subr.mxu0 0.0
  %716 = vmatpush2.msra.mxu0 0.0
  %717 = vmatprep.subr.mxu0 0.0
  %718 = vmatpush2.msra.mxu0 0.0
  %719 = vmatprep.subr.mxu0 0.0
  %720 = vmatpush2.msra.mxu0 0.0
  %721 = vmatprep.mubr.f32.mxu0 0.0
  %722 = vmatmul.mubr.f32.gmra.mxu0 %v634
  %v723 = vpop.f32.mrf.mxu0
  %v724 = vadd.f32 %v481, %v723
  %v725 = vpop.f32.mrf.mxu0
  %726 = vmatprep.mubr.f32.mxu0 0.0
  %727 = vmatmul.mubr.f32.gmra.mxu0 %v637
  %v728 = vpop.f32.mrf.mxu0
  %v729 = vadd.f32 %v481, %v728
  %v730 = vpop.f32.mrf.mxu0
  %731 = vmatprep.mubr.f32.mxu0 0.0
  %732 = vmatmul.mubr.f32.gmra.mxu0 %v640
  %v733 = vpop.f32.mrf.mxu0
  %v734 = vadd.f32 %v481, %v733
  %v735 = vpop.f32.mrf.mxu0
  %736 = vmatprep.mubr.f32.mxu0 0.0
  %737 = vmatmul.mubr.f32.gmra.mxu0 %v643
  %v738 = vpop.f32.mrf.mxu0
  %v739 = vadd.f32 %v481, %v738
  %v740 = vpop.f32.mrf.mxu0
  %741 = vmatprep.mubr.f32.mxu0 0.0
  %742 = vmatmul.mubr.f32.gmra.mxu0 %v646
  %v743 = vpop.f32.mrf.mxu0
  %v744 = vadd.f32 %v481, %v743
  %v745 = vpop.f32.mrf.mxu0
  %746 = vmatprep.mubr.f32.mxu0 0.0
  %747 = vmatmul.mubr.f32.gmra.mxu0 %v649
  %v748 = vpop.f32.mrf.mxu0
  %v749 = vadd.f32 %v481, %v748
  %v750 = vpop.f32.mrf.mxu0
  %751 = vmatprep.mubr.f32.mxu0 0.0
  %752 = vmatmul.mubr.f32.gmra.mxu0 %v652
  %v753 = vpop.f32.mrf.mxu0
  %v754 = vadd.f32 %v481, %v753
  %v755 = vpop.f32.mrf.mxu0
  %756 = vmatprep.mubr.f32.mxu0 0.0
  %757 = vmatmul.mubr.f32.gmra.mxu0 %v655
  %v758 = vpop.f32.mrf.mxu0
  %v759 = vadd.f32 %v481, %v758
  %v760 = vpop.f32.mrf.mxu0
  %761 = vdwg.mxu0
  %v762 = vmax.f32 %v724, 0.0
  %v763 = vmax.f32 %v729, 0.0
  %v764 = vmax.f32 %v734, 0.0
  %v765 = vmax.f32 %v739, 0.0
  %v766 = vmax.f32 %v744, 0.0
  %v767 = vmax.f32 %v749, 0.0
  %v768 = vmax.f32 %v754, 0.0
  %v769 = vmax.f32 %v759, 0.0
  %v771 = vsel %vm632, %v762, 0
  %v774 = vsel %vm632, %v763, 0
  %v777 = vsel %vm632, %v764, 0
  %v780 = vsel %vm632, %v765, 0
  %v783 = vsel %vm632, %v766, 0
  %v786 = vsel %vm632, %v767, 0
  %v789 = vsel %vm632, %v768, 0
  %v792 = vsel %vm632, %v769, 0
  %794 = vmatprep.subr.mxu0 0.0
  %795 = vmatpush1.msra.mxu0 0.0
  %796 = vmatprep.subr.mxu0 0.0
  %797 = vmatpush1.msra.mxu0 0.0
  %798 = vmatprep.subr.mxu0 0.0
  %799 = vmatpush1.msra.mxu0 0.0
  %800 = vmatprep.subr.mxu0 0.0
  %801 = vmatpush1.msra.mxu0 0.0
  %802 = vmatprep.subr.mxu0 0.0
  %803 = vmatpush1.msra.mxu0 0.0
  %804 = vmatprep.subr.mxu0 0.0
  %805 = vmatpush1.msra.mxu0 0.0
  %806 = vmatprep.subr.mxu0 0.0
  %807 = vmatpush1.msra.mxu0 0.0
  %808 = vmatprep.subr.mxu0 0.0
  %809 = vmatpush1.msra.mxu0 0.0
  %810 = vmatprep.subr.mxu0 0.0
  %811 = vmatpush1.msra.mxu0 0.0
  %812 = vmatprep.subr.mxu0 0.0
  %813 = vmatpush1.msra.mxu0 0.0
  %814 = vmatprep.subr.mxu0 0.0
  %815 = vmatpush1.msra.mxu0 0.0
  %816 = vmatprep.subr.mxu0 0.0
  %817 = vmatpush1.msra.mxu0 0.0
  %818 = vmatprep.subr.mxu0 0.0
  %819 = vmatpush1.msra.mxu0 %v465
  %820 = vmatprep.subr.mxu0 0.0
  %821 = vmatpush1.msra.mxu0 %v464
  %822 = vmatprep.subr.mxu0 0.0
  %823 = vmatpush1.msra.mxu0 %v463
  %824 = vmatprep.subr.mxu0 0.0
  %825 = vmatpush1.msra.mxu0 %v462
  %826 = vmatprep.subr.mxu0 0.0
  %827 = vmatpush2.msra.mxu0 0.0
  %828 = vmatprep.subr.mxu0 0.0
  %829 = vmatpush2.msra.mxu0 0.0
  %830 = vmatprep.subr.mxu0 0.0
  %831 = vmatpush2.msra.mxu0 0.0
  %832 = vmatprep.subr.mxu0 0.0
  %833 = vmatpush2.msra.mxu0 0.0
  %834 = vmatprep.subr.mxu0 0.0
  %835 = vmatpush2.msra.mxu0 0.0
  %836 = vmatprep.subr.mxu0 0.0
  %837 = vmatpush2.msra.mxu0 0.0
  %838 = vmatprep.subr.mxu0 0.0
  %839 = vmatpush2.msra.mxu0 0.0
  %840 = vmatprep.subr.mxu0 0.0
  %841 = vmatpush2.msra.mxu0 0.0
  %842 = vmatprep.subr.mxu0 0.0
  %843 = vmatpush2.msra.mxu0 0.0
  %844 = vmatprep.subr.mxu0 0.0
  %845 = vmatpush2.msra.mxu0 0.0
  %846 = vmatprep.subr.mxu0 0.0
  %847 = vmatpush2.msra.mxu0 0.0
  %848 = vmatprep.subr.mxu0 0.0
  %849 = vmatpush2.msra.mxu0 0.0
  %850 = vmatprep.subr.mxu0 0.0
  %851 = vmatpush2.msra.mxu0 0.0
  %852 = vmatprep.subr.mxu0 0.0
  %853 = vmatpush2.msra.mxu0 0.0
  %854 = vmatprep.subr.mxu0 0.0
  %855 = vmatpush2.msra.mxu0 0.0
  %856 = vmatprep.subr.mxu0 0.0
  %857 = vmatpush2.msra.mxu0 0.0
  %858 = vmatprep.mubr.f32.mxu0 0.0
  %859 = vmatmul.mubr.f32.gmra.mxu0 %v771
  %v860 = vpop.f32.mrf.mxu0
  %v861 = vadd.f32 %v485, %v860
  %v862 = vpop.f32.mrf.mxu0
  %863 = vmatprep.mubr.f32.mxu0 0.0
  %864 = vmatmul.mubr.f32.gmra.mxu0 %v774
  %v865 = vpop.f32.mrf.mxu0
  %v866 = vadd.f32 %v485, %v865
  %v867 = vpop.f32.mrf.mxu0
  %868 = vmatprep.mubr.f32.mxu0 0.0
  %869 = vmatmul.mubr.f32.gmra.mxu0 %v777
  %v870 = vpop.f32.mrf.mxu0
  %v871 = vadd.f32 %v485, %v870
  %v872 = vpop.f32.mrf.mxu0
  %873 = vmatprep.mubr.f32.mxu0 0.0
  %874 = vmatmul.mubr.f32.gmra.mxu0 %v780
  %v875 = vpop.f32.mrf.mxu0
  %v876 = vadd.f32 %v485, %v875
  %v877 = vpop.f32.mrf.mxu0
  %878 = vmatprep.mubr.f32.mxu0 0.0
  %879 = vmatmul.mubr.f32.gmra.mxu0 %v783
  %v880 = vpop.f32.mrf.mxu0
  %v881 = vadd.f32 %v485, %v880
  %v882 = vpop.f32.mrf.mxu0
  %883 = vmatprep.mubr.f32.mxu0 0.0
  %884 = vmatmul.mubr.f32.gmra.mxu0 %v786
  %v885 = vpop.f32.mrf.mxu0
  %v886 = vadd.f32 %v485, %v885
  %v887 = vpop.f32.mrf.mxu0
  %888 = vmatprep.mubr.f32.mxu0 0.0
  %889 = vmatmul.mubr.f32.gmra.mxu0 %v789
  %v890 = vpop.f32.mrf.mxu0
  %v891 = vadd.f32 %v485, %v890
  %v892 = vpop.f32.mrf.mxu0
  %893 = vmatprep.mubr.f32.mxu0 0.0
  %894 = vmatmul.mubr.f32.gmra.mxu0 %v792
  %v895 = vpop.f32.mrf.mxu0
  %v896 = vadd.f32 %v485, %v895
  %v897 = vpop.f32.mrf.mxu0
  %898 = vdwg.mxu0
  %v899 = vmax.f32 %v861, 0.0
  %v900 = vmax.f32 %v866, 0.0
  %v901 = vmax.f32 %v871, 0.0
  %v902 = vmax.f32 %v876, 0.0
  %v903 = vmax.f32 %v881, 0.0
  %v904 = vmax.f32 %v886, 0.0
  %v905 = vmax.f32 %v891, 0.0
  %v906 = vmax.f32 %v896, 0.0
  %911 = vrot.lane.b32.xlu0 %v458, 96
  %v912 = vpop.permute.xlu0 %911
  %913 = vrot.lane.b32.xlu0 %v459, 96
  %v914 = vpop.permute.xlu0 %913
  %915 = vrot.lane.b32.xlu0 %v460, 96
  %v916 = vpop.permute.xlu0 %915
  %917 = vrot.lane.b32.xlu0 %v461, 96
  %v918 = vpop.permute.xlu0 %917
  %v924 = vsel %vm632, %v899, 0
  %v927 = vsel %vm632, %v900, 0
  %v930 = vsel %vm632, %v901, 0
  %v933 = vsel %vm632, %v902, 0
  %v936 = vsel %vm632, %v903, 0
  %v939 = vsel %vm632, %v904, 0
  %v942 = vsel %vm632, %v905, 0
  %v945 = vsel %vm632, %v906, 0
  %947 = vmatprep.subr.mxu0 0.0
  %948 = vmatpush1.msra.mxu0 0.0
  %949 = vmatprep.subr.mxu0 0.0
  %950 = vmatpush1.msra.mxu0 0.0
  %951 = vmatprep.subr.mxu0 0.0
  %952 = vmatpush1.msra.mxu0 0.0
  %953 = vmatprep.subr.mxu0 0.0
  %954 = vmatpush1.msra.mxu0 0.0
  %955 = vmatprep.subr.mxu0 0.0
  %956 = vmatpush1.msra.mxu0 0.0
  %957 = vmatprep.subr.mxu0 0.0
  %958 = vmatpush1.msra.mxu0 0.0
  %959 = vmatprep.subr.mxu0 0.0
  %960 = vmatpush1.msra.mxu0 0.0
  %961 = vmatprep.subr.mxu0 0.0
  %962 = vmatpush1.msra.mxu0 0.0
  %963 = vmatprep.subr.mxu0 0.0
  %964 = vmatpush1.msra.mxu0 0.0
  %965 = vmatprep.subr.mxu0 0.0
  %966 = vmatpush1.msra.mxu0 0.0
  %967 = vmatprep.subr.mxu0 0.0
  %968 = vmatpush1.msra.mxu0 0.0
  %969 = vmatprep.subr.mxu0 0.0
  %970 = vmatpush1.msra.mxu0 0.0
  %971 = vmatprep.subr.mxu0 0.0
  %972 = vmatpush1.msra.mxu0 %v918
  %973 = vmatprep.subr.mxu0 0.0
  %974 = vmatpush1.msra.mxu0 %v916
  %975 = vmatprep.subr.mxu0 0.0
  %976 = vmatpush1.msra.mxu0 %v914
  %977 = vmatprep.subr.mxu0 0.0
  %978 = vmatpush1.msra.mxu0 %v912
  %979 = vmatprep.subr.mxu0 0.0
  %980 = vmatpush2.msra.mxu0 0.0
  %981 = vmatprep.subr.mxu0 0.0
  %982 = vmatpush2.msra.mxu0 0.0
  %983 = vmatprep.subr.mxu0 0.0
  %984 = vmatpush2.msra.mxu0 0.0
  %985 = vmatprep.subr.mxu0 0.0
  %986 = vmatpush2.msra.mxu0 0.0
  %987 = vmatprep.subr.mxu0 0.0
  %988 = vmatpush2.msra.mxu0 0.0
  %989 = vmatprep.subr.mxu0 0.0
  %990 = vmatpush2.msra.mxu0 0.0
  %991 = vmatprep.subr.mxu0 0.0
  %992 = vmatpush2.msra.mxu0 0.0
  %993 = vmatprep.subr.mxu0 0.0
  %994 = vmatpush2.msra.mxu0 0.0
  %995 = vmatprep.subr.mxu0 0.0
  %996 = vmatpush2.msra.mxu0 0.0
  %997 = vmatprep.subr.mxu0 0.0
  %998 = vmatpush2.msra.mxu0 0.0
  %999 = vmatprep.subr.mxu0 0.0
  %1000 = vmatpush2.msra.mxu0 0.0
  %1001 = vmatprep.subr.mxu0 0.0
  %1002 = vmatpush2.msra.mxu0 0.0
  %1003 = vmatprep.subr.mxu0 0.0
  %1004 = vmatpush2.msra.mxu0 0.0
  %1005 = vmatprep.subr.mxu0 0.0
  %1006 = vmatpush2.msra.mxu0 0.0
  %1007 = vmatprep.subr.mxu0 0.0
  %1008 = vmatpush2.msra.mxu0 0.0
  %1009 = vmatprep.subr.mxu0 0.0
  %1010 = vmatpush2.msra.mxu0 0.0
  %1011 = vmatprep.mubr.f32.mxu0 0.0
  %1012 = vmatmul.mubr.f32.gmra.mxu0 %v924
  %v1013 = vpop.f32.mrf.mxu0
  %v1014 = vadd.f32 %v489, %v1013
  %v1015 = vpop.f32.mrf.mxu0
  %1016 = vmatprep.mubr.f32.mxu0 0.0
  %1017 = vmatmul.mubr.f32.gmra.mxu0 %v927
  %v1018 = vpop.f32.mrf.mxu0
  %v1019 = vadd.f32 %v489, %v1018
  %v1020 = vpop.f32.mrf.mxu0
  %1021 = vmatprep.mubr.f32.mxu0 0.0
  %1022 = vmatmul.mubr.f32.gmra.mxu0 %v930
  %v1023 = vpop.f32.mrf.mxu0
  %v1024 = vadd.f32 %v489, %v1023
  %v1025 = vpop.f32.mrf.mxu0
  %1026 = vmatprep.mubr.f32.mxu0 0.0
  %1027 = vmatmul.mubr.f32.gmra.mxu0 %v933
  %v1028 = vpop.f32.mrf.mxu0
  %v1029 = vadd.f32 %v489, %v1028
  %v1030 = vpop.f32.mrf.mxu0
  %1031 = vmatprep.mubr.f32.mxu0 0.0
  %1032 = vmatmul.mubr.f32.gmra.mxu0 %v936
  %v1033 = vpop.f32.mrf.mxu0
  %v1034 = vadd.f32 %v489, %v1033
  %v1035 = vpop.f32.mrf.mxu0
  %1036 = vmatprep.mubr.f32.mxu0 0.0
  %1037 = vmatmul.mubr.f32.gmra.mxu0 %v939
  %v1038 = vpop.f32.mrf.mxu0
  %v1039 = vadd.f32 %v489, %v1038
  %v1040 = vpop.f32.mrf.mxu0
  %1041 = vmatprep.mubr.f32.mxu0 0.0
  %1042 = vmatmul.mubr.f32.gmra.mxu0 %v942
  %v1043 = vpop.f32.mrf.mxu0
  %v1044 = vadd.f32 %v489, %v1043
  %v1045 = vpop.f32.mrf.mxu0
  %1046 = vmatprep.mubr.f32.mxu0 0.0
  %1047 = vmatmul.mubr.f32.gmra.mxu0 %v945
  %v1048 = vpop.f32.mrf.mxu0
  %v1049 = vadd.f32 %v489, %v1048
  %v1050 = vpop.f32.mrf.mxu0
  %1051 = vdwg.mxu0
  %1056 = vrot.lane.b32.xlu0 %v462, 96
  %v1057 = vpop.permute.xlu0 %1056
  %1058 = vrot.lane.b32.xlu0 %v463, 96
  %v1059 = vpop.permute.xlu0 %1058
  %1060 = vrot.lane.b32.xlu0 %v464, 96
  %v1061 = vpop.permute.xlu0 %1060
  %1062 = vrot.lane.b32.xlu0 %v465, 96
  %v1063 = vpop.permute.xlu0 %1062
  %v1069 = vsel %vm632, %v494, 0
  %v1072 = vsel %vm632, %v495, 0
  %v1075 = vsel %vm632, %v496, 0
  %v1078 = vsel %vm632, %v497, 0
  %v1081 = vsel %vm632, %v498, 0
  %v1084 = vsel %vm632, %v499, 0
  %v1087 = vsel %vm632, %v500, 0
  %v1090 = vsel %vm632, %v501, 0
  %1092 = vmatprep.subr.mxu0 0.0
  %1093 = vmatpush1.msra.mxu0 0.0
  %1094 = vmatprep.subr.mxu0 0.0
  %1095 = vmatpush1.msra.mxu0 0.0
  %1096 = vmatprep.subr.mxu0 0.0
  %1097 = vmatpush1.msra.mxu0 0.0
  %1098 = vmatprep.subr.mxu0 0.0
  %1099 = vmatpush1.msra.mxu0 0.0
  %1100 = vmatprep.subr.mxu0 0.0
  %1101 = vmatpush1.msra.mxu0 0.0
  %1102 = vmatprep.subr.mxu0 0.0
  %1103 = vmatpush1.msra.mxu0 0.0
  %1104 = vmatprep.subr.mxu0 0.0
  %1105 = vmatpush1.msra.mxu0 0.0
  %1106 = vmatprep.subr.mxu0 0.0
  %1107 = vmatpush1.msra.mxu0 0.0
  %1108 = vmatprep.subr.mxu0 0.0
  %1109 = vmatpush1.msra.mxu0 0.0
  %1110 = vmatprep.subr.mxu0 0.0
  %1111 = vmatpush1.msra.mxu0 0.0
  %1112 = vmatprep.subr.mxu0 0.0
  %1113 = vmatpush1.msra.mxu0 0.0
  %1114 = vmatprep.subr.mxu0 0.0
  %1115 = vmatpush1.msra.mxu0 0.0
  %1116 = vmatprep.subr.mxu0 0.0
  %1117 = vmatpush1.msra.mxu0 %v1063
  %1118 = vmatprep.subr.mxu0 0.0
  %1119 = vmatpush1.msra.mxu0 %v1061
  %1120 = vmatprep.subr.mxu0 0.0
  %1121 = vmatpush1.msra.mxu0 %v1059
  %1122 = vmatprep.subr.mxu0 0.0
  %1123 = vmatpush1.msra.mxu0 %v1057
  %1124 = vmatprep.subr.mxu0 0.0
  %1125 = vmatpush2.msra.mxu0 0.0
  %1126 = vmatprep.subr.mxu0 0.0
  %1127 = vmatpush2.msra.mxu0 0.0
  %1128 = vmatprep.subr.mxu0 0.0
  %1129 = vmatpush2.msra.mxu0 0.0
  %1130 = vmatprep.subr.mxu0 0.0
  %1131 = vmatpush2.msra.mxu0 0.0
  %1132 = vmatprep.subr.mxu0 0.0
  %1133 = vmatpush2.msra.mxu0 0.0
  %1134 = vmatprep.subr.mxu0 0.0
  %1135 = vmatpush2.msra.mxu0 0.0
  %1136 = vmatprep.subr.mxu0 0.0
  %1137 = vmatpush2.msra.mxu0 0.0
  %1138 = vmatprep.subr.mxu0 0.0
  %1139 = vmatpush2.msra.mxu0 0.0
  %1140 = vmatprep.subr.mxu0 0.0
  %1141 = vmatpush2.msra.mxu0 0.0
  %1142 = vmatprep.subr.mxu0 0.0
  %1143 = vmatpush2.msra.mxu0 0.0
  %1144 = vmatprep.subr.mxu0 0.0
  %1145 = vmatpush2.msra.mxu0 0.0
  %1146 = vmatprep.subr.mxu0 0.0
  %1147 = vmatpush2.msra.mxu0 0.0
  %1148 = vmatprep.subr.mxu0 0.0
  %1149 = vmatpush2.msra.mxu0 0.0
  %1150 = vmatprep.subr.mxu0 0.0
  %1151 = vmatpush2.msra.mxu0 0.0
  %1152 = vmatprep.subr.mxu0 0.0
  %1153 = vmatpush2.msra.mxu0 0.0
  %1154 = vmatprep.subr.mxu0 0.0
  %1155 = vmatpush2.msra.mxu0 0.0
  %1156 = vmatprep.mubr.f32.mxu0 0.0
  %1157 = vmatmul.mubr.f32.gmra.mxu0 %v1069
  %v1158 = vpop.f32.mrf.mxu0
  %v1159 = vadd.f32 %v493, %v1158
  %v1160 = vpop.f32.mrf.mxu0
  %1161 = vmatprep.mubr.f32.mxu0 0.0
  %1162 = vmatmul.mubr.f32.gmra.mxu0 %v1072
  %v1163 = vpop.f32.mrf.mxu0
  %v1164 = vadd.f32 %v493, %v1163
  %v1165 = vpop.f32.mrf.mxu0
  %1166 = vmatprep.mubr.f32.mxu0 0.0
  %1167 = vmatmul.mubr.f32.gmra.mxu0 %v1075
  %v1168 = vpop.f32.mrf.mxu0
  %v1169 = vadd.f32 %v493, %v1168
  %v1170 = vpop.f32.mrf.mxu0
  %1171 = vmatprep.mubr.f32.mxu0 0.0
  %1172 = vmatmul.mubr.f32.gmra.mxu0 %v1078
  %v1173 = vpop.f32.mrf.mxu0
  %v1174 = vadd.f32 %v493, %v1173
  %v1175 = vpop.f32.mrf.mxu0
  %1176 = vmatprep.mubr.f32.mxu0 0.0
  %1177 = vmatmul.mubr.f32.gmra.mxu0 %v1081
  %v1178 = vpop.f32.mrf.mxu0
  %v1179 = vadd.f32 %v493, %v1178
  %v1180 = vpop.f32.mrf.mxu0
  %1181 = vmatprep.mubr.f32.mxu0 0.0
  %1182 = vmatmul.mubr.f32.gmra.mxu0 %v1084
  %v1183 = vpop.f32.mrf.mxu0
  %v1184 = vadd.f32 %v493, %v1183
  %v1185 = vpop.f32.mrf.mxu0
  %1186 = vmatprep.mubr.f32.mxu0 0.0
  %1187 = vmatmul.mubr.f32.gmra.mxu0 %v1087
  %v1188 = vpop.f32.mrf.mxu0
  %v1189 = vadd.f32 %v493, %v1188
  %v1190 = vpop.f32.mrf.mxu0
  %1191 = vmatprep.mubr.f32.mxu0 0.0
  %1192 = vmatmul.mubr.f32.gmra.mxu0 %v1090
  %v1193 = vpop.f32.mrf.mxu0
  %v1194 = vadd.f32 %v493, %v1193
  %v1195 = vpop.f32.mrf.mxu0
  %1196 = vdwg.mxu0
  %v1197 = vadd.f32 %v1014, %v1159
  %v1198 = vadd.f32 %v1019, %v1164
  %v1199 = vadd.f32 %v1024, %v1169
  %v1200 = vadd.f32 %v1029, %v1174
  %v1201 = vadd.f32 %v1034, %v1179
  %v1202 = vadd.f32 %v1039, %v1184
  %v1203 = vadd.f32 %v1044, %v1189
  %v1204 = vadd.f32 %v1049, %v1194
  %v1205 = vxor.u32 %v1197, 2147483648
  %v1206 = vxor.u32 %v1198, 2147483648
  %v1207 = vxor.u32 %v1199, 2147483648
  %v1208 = vxor.u32 %v1200, 2147483648
  %v1209 = vxor.u32 %v1201, 2147483648
  %v1210 = vxor.u32 %v1202, 2147483648
  %v1211 = vxor.u32 %v1203, 2147483648
  %v1212 = vxor.u32 %v1204, 2147483648
  %v1213 = vmul.f32 %v1205, 1.442695
  %v1214 = vpow.pop %v1213
  %v1215 = vmul.f32 %v1206, 1.442695
  %v1216 = vpow.pop %v1215
  %v1217 = vmul.f32 %v1207, 1.442695
  %v1218 = vpow.pop %v1217
  %v1219 = vmul.f32 %v1208, 1.442695
  %v1220 = vpow.pop %v1219
  %v1221 = vmul.f32 %v1209, 1.442695
  %v1222 = vpow.pop %v1221
  %v1223 = vmul.f32 %v1210, 1.442695
  %v1224 = vpow.pop %v1223
  %v1225 = vmul.f32 %v1211, 1.442695
  %v1226 = vpow.pop %v1225
  %v1227 = vmul.f32 %v1212, 1.442695
  %v1228 = vpow.pop %v1227
  %v1229 = vadd.f32 %v1214, 1.0
  %v1230 = vadd.f32 %v1216, 1.0
  %v1231 = vadd.f32 %v1218, 1.0
  %v1232 = vadd.f32 %v1220, 1.0
  %v1233 = vadd.f32 %v1222, 1.0
  %v1234 = vadd.f32 %v1224, 1.0
  %v1235 = vadd.f32 %v1226, 1.0
  %v1236 = vadd.f32 %v1228, 1.0
  %v1237 = vrcp.pop %v1229
  %v1238 = vmul.f32 1.0, %v1237
  %v1239 = vrcp.pop %v1230
  %v1240 = vmul.f32 1.0, %v1239
  %v1241 = vrcp.pop %v1231
  %v1242 = vmul.f32 1.0, %v1241
  %v1243 = vrcp.pop %v1232
  %v1244 = vmul.f32 1.0, %v1243
  %v1245 = vrcp.pop %v1233
  %v1246 = vmul.f32 1.0, %v1245
  %v1247 = vrcp.pop %v1234
  %v1248 = vmul.f32 1.0, %v1247
  %v1249 = vrcp.pop %v1235
  %v1250 = vmul.f32 1.0, %v1249
  %v1251 = vrcp.pop %v1236
  %v1252 = vmul.f32 1.0, %v1251
  %1261 = vrot.lane.b32.xlu0 %v1159, 64
  %v1262 = vpop.permute.xlu0 %1261
  %1263 = vrot.lane.b32.xlu0 %v1164, 64
  %v1264 = vpop.permute.xlu0 %1263
  %1265 = vrot.lane.b32.xlu0 %v1169, 64
  %v1266 = vpop.permute.xlu0 %1265
  %1267 = vrot.lane.b32.xlu0 %v1174, 64
  %v1268 = vpop.permute.xlu0 %1267
  %1269 = vrot.lane.b32.xlu0 %v1179, 64
  %v1270 = vpop.permute.xlu0 %1269
  %1271 = vrot.lane.b32.xlu0 %v1184, 64
  %v1272 = vpop.permute.xlu0 %1271
  %1273 = vrot.lane.b32.xlu0 %v1189, 64
  %v1274 = vpop.permute.xlu0 %1273
  %1275 = vrot.lane.b32.xlu0 %v1194, 64
  %v1276 = vpop.permute.xlu0 %1275
  %v1285 = vmul.f32 %v1238, %v1262
  %v1286 = vmul.f32 %v1240, %v1264
  %v1287 = vmul.f32 %v1242, %v1266
  %v1288 = vmul.f32 %v1244, %v1268
  %v1289 = vmul.f32 %v1246, %v1270
  %v1290 = vmul.f32 %v1248, %v1272
  %v1291 = vmul.f32 %v1250, %v1274
  %v1292 = vmul.f32 %v1252, %v1276
  %1301 = vrot.lane.b32.xlu0 %v1285, 64
  %v1302 = vpop.permute.xlu0 %1301
  %1303 = vrot.lane.b32.xlu0 %v1286, 64
  %v1304 = vpop.permute.xlu0 %1303
  %1305 = vrot.lane.b32.xlu0 %v1287, 64
  %v1306 = vpop.permute.xlu0 %1305
  %1307 = vrot.lane.b32.xlu0 %v1288, 64
  %v1308 = vpop.permute.xlu0 %1307
  %1309 = vrot.lane.b32.xlu0 %v1289, 64
  %v1310 = vpop.permute.xlu0 %1309
  %1311 = vrot.lane.b32.xlu0 %v1290, 64
  %v1312 = vpop.permute.xlu0 %1311
  %1313 = vrot.lane.b32.xlu0 %v1291, 64
  %v1314 = vpop.permute.xlu0 %1313
  %1315 = vrot.lane.b32.xlu0 %v1292, 64
  %v1316 = vpop.permute.xlu0 %1315
  %v1325 = vadd.f32 %v1014, %v1302
  %v1326 = vadd.f32 %v1019, %v1304
  %v1327 = vadd.f32 %v1024, %v1306
  %v1328 = vadd.f32 %v1029, %v1308
  %v1329 = vadd.f32 %v1034, %v1310
  %v1330 = vadd.f32 %v1039, %v1312
  %v1331 = vadd.f32 %v1044, %v1314
  %v1332 = vadd.f32 %v1049, %v1316
  %v1333 = vtanh.pop %v1325
  %v1334 = vtanh.pop %v1326
  %v1335 = vtanh.pop %v1327
  %v1336 = vtanh.pop %v1328
  %v1337 = vtanh.pop %v1329
  %v1338 = vtanh.pop %v1330
  %v1339 = vtanh.pop %v1331
  %v1340 = vtanh.pop %v1332
  %v1341 = vsub.f32 1.0, %v1238
  %v1342 = vsub.f32 1.0, %v1240
  %v1343 = vsub.f32 1.0, %v1242
  %v1344 = vsub.f32 1.0, %v1244
  %v1345 = vsub.f32 1.0, %v1246
  %v1346 = vsub.f32 1.0, %v1248
  %v1347 = vsub.f32 1.0, %v1250
  %v1348 = vsub.f32 1.0, %v1252
  %1357 = vrot.lane.b32.xlu0 %v1333, 96
  %v1358 = vpop.permute.xlu0 %1357
  %1359 = vrot.lane.b32.xlu0 %v1334, 96
  %v1360 = vpop.permute.xlu0 %1359
  %1361 = vrot.lane.b32.xlu0 %v1335, 96
  %v1362 = vpop.permute.xlu0 %1361
  %1363 = vrot.lane.b32.xlu0 %v1336, 96
  %v1364 = vpop.permute.xlu0 %1363
  %1365 = vrot.lane.b32.xlu0 %v1337, 96
  %v1366 = vpop.permute.xlu0 %1365
  %1367 = vrot.lane.b32.xlu0 %v1338, 96
  %v1368 = vpop.permute.xlu0 %1367
  %1369 = vrot.lane.b32.xlu0 %v1339, 96
  %v1370 = vpop.permute.xlu0 %1369
  %1371 = vrot.lane.b32.xlu0 %v1340, 96
  %v1372 = vpop.permute.xlu0 %1371
  %v1381 = vmul.f32 %v1341, %v1358
  %v1382 = vmul.f32 %v1342, %v1360
  %v1383 = vmul.f32 %v1343, %v1362
  %v1384 = vmul.f32 %v1344, %v1364
  %v1385 = vmul.f32 %v1345, %v1366
  %v1386 = vmul.f32 %v1346, %v1368
  %v1387 = vmul.f32 %v1347, %v1370
  %v1388 = vmul.f32 %v1348, %v1372
  %1389 = vrot.lane.b32.xlu0 %v494, 32
  %v1390 = vpop.permute.xlu0 %1389
  %1391 = vrot.lane.b32.xlu0 %v495, 32
  %v1392 = vpop.permute.xlu0 %1391
  %1393 = vrot.lane.b32.xlu0 %v496, 32
  %v1394 = vpop.permute.xlu0 %1393
  %1395 = vrot.lane.b32.xlu0 %v497, 32
  %v1396 = vpop.permute.xlu0 %1395
  %1397 = vrot.lane.b32.xlu0 %v498, 32
  %v1398 = vpop.permute.xlu0 %1397
  %1399 = vrot.lane.b32.xlu0 %v499, 32
  %v1400 = vpop.permute.xlu0 %1399
  %1401 = vrot.lane.b32.xlu0 %v500, 32
  %v1402 = vpop.permute.xlu0 %1401
  %1403 = vrot.lane.b32.xlu0 %v501, 32
  %v1404 = vpop.permute.xlu0 %1403
  %v1413 = vmul.f32 %v1238, %v1390
  %v1414 = vmul.f32 %v1240, %v1392
  %v1415 = vmul.f32 %v1242, %v1394
  %v1416 = vmul.f32 %v1244, %v1396
  %v1417 = vmul.f32 %v1246, %v1398
  %v1418 = vmul.f32 %v1248, %v1400
  %v1419 = vmul.f32 %v1250, %v1402
  %v1420 = vmul.f32 %v1252, %v1404
  %v1421 = vadd.f32 %v1381, %v1413
  %v1422 = vadd.f32 %v1382, %v1414
  %v1423 = vadd.f32 %v1383, %v1415
  %v1424 = vadd.f32 %v1384, %v1416
  %v1425 = vadd.f32 %v1385, %v1417
  %v1426 = vadd.f32 %v1386, %v1418
  %v1427 = vadd.f32 %v1387, %v1419
  %v1428 = vadd.f32 %v1388, %v1420
  %1437 = vrot.lane.b32.xlu0 %v1421, 96
  %v1438 = vpop.permute.xlu0 %1437
  %1439 = vrot.lane.b32.xlu0 %v1422, 96
  %v1440 = vpop.permute.xlu0 %1439
  %1441 = vrot.lane.b32.xlu0 %v1423, 96
  %v1442 = vpop.permute.xlu0 %1441
  %1443 = vrot.lane.b32.xlu0 %v1424, 96
  %v1444 = vpop.permute.xlu0 %1443
  %1445 = vrot.lane.b32.xlu0 %v1425, 96
  %v1446 = vpop.permute.xlu0 %1445
  %1447 = vrot.lane.b32.xlu0 %v1426, 96
  %v1448 = vpop.permute.xlu0 %1447
  %1449 = vrot.lane.b32.xlu0 %v1427, 96
  %v1450 = vpop.permute.xlu0 %1449
  %1451 = vrot.lane.b32.xlu0 %v1428, 96
  %v1452 = vpop.permute.xlu0 %1451
  %1461 = vst.msk [vmem:[%s6] sm:$0xff] %vm632, %v1438
  %1462 = vst.msk [vmem:[%s6 + $0x8] sm:$0xff] %vm632, %v1440
  %1463 = vst.msk [vmem:[%s6 + $0x10] sm:$0xff] %vm632, %v1442
  %1464 = vst.msk [vmem:[%s6 + $0x18] sm:$0xff] %vm632, %v1444
  %1465 = vst.msk [vmem:[%s6 + $0x20] sm:$0xff] %vm632, %v1446
  %1466 = vst.msk [vmem:[%s6 + $0x28] sm:$0xff] %vm632, %v1448
  %1467 = vst.msk [vmem:[%s6 + $0x30] sm:$0xff] %vm632, %v1450
  %1468 = vst.msk [vmem:[%s6 + $0x38] sm:$0xff] %vm632, %v1452
  %1469 = vmatprep.subr.mxu0 0.0
  %1470 = vmatpush1.msra.mxu0 0.0
  %1471 = vmatprep.subr.mxu0 0.0
  %1472 = vmatpush1.msra.mxu0 0.0
  %1473 = vmatprep.subr.mxu0 0.0
  %1474 = vmatpush1.msra.mxu0 0.0
  %1475 = vmatprep.subr.mxu0 0.0
  %1476 = vmatpush1.msra.mxu0 0.0
  %1477 = vmatprep.subr.mxu0 0.0
  %1478 = vmatpush1.msra.mxu0 0.0
  %1479 = vmatprep.subr.mxu0 0.0
  %1480 = vmatpush1.msra.mxu0 0.0
  %1481 = vmatprep.subr.mxu0 0.0
  %1482 = vmatpush1.msra.mxu0 0.0
  %1483 = vmatprep.subr.mxu0 0.0
  %1484 = vmatpush1.msra.mxu0 0.0
  %1485 = vmatprep.subr.mxu0 0.0
  %1486 = vmatpush1.msra.mxu0 %v1452
  %1487 = vmatprep.subr.mxu0 0.0
  %1488 = vmatpush1.msra.mxu0 %v1450
  %1489 = vmatprep.subr.mxu0 0.0
  %1490 = vmatpush1.msra.mxu0 %v1448
  %1491 = vmatprep.subr.mxu0 0.0
  %1492 = vmatpush1.msra.mxu0 %v1446
  %1493 = vmatprep.subr.mxu0 0.0
  %1494 = vmatpush1.msra.mxu0 %v1444
  %1495 = vmatprep.subr.mxu0 0.0
  %1496 = vmatpush1.msra.mxu0 %v1442
  %1497 = vmatprep.subr.mxu0 0.0
  %1498 = vmatpush1.msra.mxu0 %v1440
  %1499 = vmatprep.subr.mxu0 0.0
  %1500 = vmatpush1.msra.mxu0 %v1438
  %1501 = vmatprep.subr.mxu0 0.0
  %1502 = vmatpush2.msra.mxu0 0.0
  %1503 = vmatprep.subr.mxu0 0.0
  %1504 = vmatpush2.msra.mxu0 0.0
  %1505 = vmatprep.subr.mxu0 0.0
  %1506 = vmatpush2.msra.mxu0 0.0
  %1507 = vmatprep.subr.mxu0 0.0
  %1508 = vmatpush2.msra.mxu0 0.0
  %1509 = vmatprep.subr.mxu0 0.0
  %1510 = vmatpush2.msra.mxu0 0.0
  %1511 = vmatprep.subr.mxu0 0.0
  %1512 = vmatpush2.msra.mxu0 0.0
  %1513 = vmatprep.subr.mxu0 0.0
  %1514 = vmatpush2.msra.mxu0 0.0
  %1515 = vmatprep.subr.mxu0 0.0
  %1516 = vmatpush2.msra.mxu0 0.0
  %1517 = vmatprep.subr.mxu0 0.0
  %1518 = vmatpush2.msra.mxu0 0.0
  %1519 = vmatprep.subr.mxu0 0.0
  %1520 = vmatpush2.msra.mxu0 0.0
  %1521 = vmatprep.subr.mxu0 0.0
  %1522 = vmatpush2.msra.mxu0 0.0
  %1523 = vmatprep.subr.mxu0 0.0
  %1524 = vmatpush2.msra.mxu0 0.0
  %1525 = vmatprep.subr.mxu0 0.0
  %1526 = vmatpush2.msra.mxu0 0.0
  %1527 = vmatprep.subr.mxu0 0.0
  %1528 = vmatpush2.msra.mxu0 0.0
  %1529 = vmatprep.subr.mxu0 0.0
  %1530 = vmatpush2.msra.mxu0 0.0
  %1531 = vmatprep.subr.mxu0 0.0
  %1532 = vmatpush2.msra.mxu0 0.0
  %1533 = vmatprep.mubr.f32.mxu0 0.0
  %1534 = vmatmul.mubr.f32.gmra.mxu0 %v504
  %v1535 = vpop.f32.mrf.mxu0
  %v1536 = vadd.f32 0.0, %v1535
  %v1537 = vpop.f32.mrf.mxu0
  %1538 = vmatprep.mubr.f32.mxu0 0.0
  %1539 = vmatmul.mubr.f32.gmra.mxu0 %v507
  %v1540 = vpop.f32.mrf.mxu0
  %v1541 = vadd.f32 0.0, %v1540
  %v1542 = vpop.f32.mrf.mxu0
  %1543 = vmatprep.mubr.f32.mxu0 0.0
  %1544 = vmatmul.mubr.f32.gmra.mxu0 %v510
  %v1545 = vpop.f32.mrf.mxu0
  %v1546 = vadd.f32 0.0, %v1545
  %v1547 = vpop.f32.mrf.mxu0
  %1548 = vmatprep.mubr.f32.mxu0 0.0
  %1549 = vmatmul.mubr.f32.gmra.mxu0 %v513
  %v1550 = vpop.f32.mrf.mxu0
  %v1551 = vadd.f32 0.0, %v1550
  %v1552 = vpop.f32.mrf.mxu0
  %1553 = vmatprep.mubr.f32.mxu0 0.0
  %1554 = vmatmul.mubr.f32.gmra.mxu0 %v516
  %v1555 = vpop.f32.mrf.mxu0
  %v1556 = vadd.f32 0.0, %v1555
  %v1557 = vpop.f32.mrf.mxu0
  %1558 = vmatprep.mubr.f32.mxu0 0.0
  %1559 = vmatmul.mubr.f32.gmra.mxu0 %v519
  %v1560 = vpop.f32.mrf.mxu0
  %v1561 = vadd.f32 0.0, %v1560
  %v1562 = vpop.f32.mrf.mxu0
  %1563 = vmatprep.mubr.f32.mxu0 0.0
  %1564 = vmatmul.mubr.f32.gmra.mxu0 %v522
  %v1565 = vpop.f32.mrf.mxu0
  %v1566 = vadd.f32 0.0, %v1565
  %v1567 = vpop.f32.mrf.mxu0
  %1568 = vmatprep.mubr.f32.mxu0 0.0
  %1569 = vmatmul.mubr.f32.gmra.mxu0 %v525
  %v1570 = vpop.f32.mrf.mxu0
  %v1571 = vadd.f32 0.0, %v1570
  %v1572 = vpop.f32.mrf.mxu0
  %1573 = vdwg.mxu0
  %v1575 = vsel %vm632, %v1536, 0
  %v1578 = vsel %vm632, %v1541, 0
  %v1581 = vsel %vm632, %v1546, 0
  %v1584 = vsel %vm632, %v1551, 0
  %v1587 = vsel %vm632, %v1556, 0
  %v1590 = vsel %vm632, %v1561, 0
  %v1593 = vsel %vm632, %v1566, 0
  %v1596 = vsel %vm632, %v1571, 0
  %1598 = vmatprep.subr.mxu0 0.0
  %1599 = vmatpush1.msra.mxu0 0.0
  %1600 = vmatprep.subr.mxu0 0.0
  %1601 = vmatpush1.msra.mxu0 0.0
  %1602 = vmatprep.subr.mxu0 0.0
  %1603 = vmatpush1.msra.mxu0 0.0
  %1604 = vmatprep.subr.mxu0 0.0
  %1605 = vmatpush1.msra.mxu0 0.0
  %1606 = vmatprep.subr.mxu0 0.0
  %1607 = vmatpush1.msra.mxu0 0.0
  %1608 = vmatprep.subr.mxu0 0.0
  %1609 = vmatpush1.msra.mxu0 0.0
  %1610 = vmatprep.subr.mxu0 0.0
  %1611 = vmatpush1.msra.mxu0 0.0
  %1612 = vmatprep.subr.mxu0 0.0
  %1613 = vmatpush1.msra.mxu0 0.0
  %1614 = vmatprep.subr.mxu0 0.0
  %1615 = vmatpush1.msra.mxu0 0.0
  %1616 = vmatprep.subr.mxu0 0.0
  %1617 = vmatpush1.msra.mxu0 0.0
  %1618 = vmatprep.subr.mxu0 0.0
  %1619 = vmatpush1.msra.mxu0 0.0
  %1620 = vmatprep.subr.mxu0 0.0
  %1621 = vmatpush1.msra.mxu0 0.0
  %1622 = vmatprep.subr.mxu0 0.0
  %1623 = vmatpush1.msra.mxu0 %v461
  %1624 = vmatprep.subr.mxu0 0.0
  %1625 = vmatpush1.msra.mxu0 %v460
  %1626 = vmatprep.subr.mxu0 0.0
  %1627 = vmatpush1.msra.mxu0 %v459
  %1628 = vmatprep.subr.mxu0 0.0
  %1629 = vmatpush1.msra.mxu0 %v458
  %1630 = vmatprep.subr.mxu0 0.0
  %1631 = vmatpush2.msra.mxu0 0.0
  %1632 = vmatprep.subr.mxu0 0.0
  %1633 = vmatpush2.msra.mxu0 0.0
  %1634 = vmatprep.subr.mxu0 0.0
  %1635 = vmatpush2.msra.mxu0 0.0
  %1636 = vmatprep.subr.mxu0 0.0
  %1637 = vmatpush2.msra.mxu0 0.0
  %1638 = vmatprep.subr.mxu0 0.0
  %1639 = vmatpush2.msra.mxu0 0.0
  %1640 = vmatprep.subr.mxu0 0.0
  %1641 = vmatpush2.msra.mxu0 0.0
  %1642 = vmatprep.subr.mxu0 0.0
  %1643 = vmatpush2.msra.mxu0 0.0
  %1644 = vmatprep.subr.mxu0 0.0
  %1645 = vmatpush2.msra.mxu0 0.0
  %1646 = vmatprep.subr.mxu0 0.0
  %1647 = vmatpush2.msra.mxu0 0.0
  %1648 = vmatprep.subr.mxu0 0.0
  %1649 = vmatpush2.msra.mxu0 0.0
  %1650 = vmatprep.subr.mxu0 0.0
  %1651 = vmatpush2.msra.mxu0 0.0
  %1652 = vmatprep.subr.mxu0 0.0
  %1653 = vmatpush2.msra.mxu0 0.0
  %1654 = vmatprep.subr.mxu0 0.0
  %1655 = vmatpush2.msra.mxu0 0.0
  %1656 = vmatprep.subr.mxu0 0.0
  %1657 = vmatpush2.msra.mxu0 0.0
  %1658 = vmatprep.subr.mxu0 0.0
  %1659 = vmatpush2.msra.mxu0 0.0
  %1660 = vmatprep.subr.mxu0 0.0
  %1661 = vmatpush2.msra.mxu0 0.0
  %1662 = vmatprep.mubr.f32.mxu0 0.0
  %1663 = vmatmul.mubr.f32.gmra.mxu0 %v1575
  %v1664 = vpop.f32.mrf.mxu0
  %v1665 = vadd.f32 %v481, %v1664
  %v1666 = vpop.f32.mrf.mxu0
  %1667 = vmatprep.mubr.f32.mxu0 0.0
  %1668 = vmatmul.mubr.f32.gmra.mxu0 %v1578
  %v1669 = vpop.f32.mrf.mxu0
  %v1670 = vadd.f32 %v481, %v1669
  %v1671 = vpop.f32.mrf.mxu0
  %1672 = vmatprep.mubr.f32.mxu0 0.0
  %1673 = vmatmul.mubr.f32.gmra.mxu0 %v1581
  %v1674 = vpop.f32.mrf.mxu0
  %v1675 = vadd.f32 %v481, %v1674
  %v1676 = vpop.f32.mrf.mxu0
  %1677 = vmatprep.mubr.f32.mxu0 0.0
  %1678 = vmatmul.mubr.f32.gmra.mxu0 %v1584
  %v1679 = vpop.f32.mrf.mxu0
  %v1680 = vadd.f32 %v481, %v1679
  %v1681 = vpop.f32.mrf.mxu0
  %1682 = vmatprep.mubr.f32.mxu0 0.0
  %1683 = vmatmul.mubr.f32.gmra.mxu0 %v1587
  %v1684 = vpop.f32.mrf.mxu0
  %v1685 = vadd.f32 %v481, %v1684
  %v1686 = vpop.f32.mrf.mxu0
  %1687 = vmatprep.mubr.f32.mxu0 0.0
  %1688 = vmatmul.mubr.f32.gmra.mxu0 %v1590
  %v1689 = vpop.f32.mrf.mxu0
  %v1690 = vadd.f32 %v481, %v1689
  %v1691 = vpop.f32.mrf.mxu0
  %1692 = vmatprep.mubr.f32.mxu0 0.0
  %1693 = vmatmul.mubr.f32.gmra.mxu0 %v1593
  %v1694 = vpop.f32.mrf.mxu0
  %v1695 = vadd.f32 %v481, %v1694
  %v1696 = vpop.f32.mrf.mxu0
  %1697 = vmatprep.mubr.f32.mxu0 0.0
  %1698 = vmatmul.mubr.f32.gmra.mxu0 %v1596
  %v1699 = vpop.f32.mrf.mxu0
  %v1700 = vadd.f32 %v481, %v1699
  %v1701 = vpop.f32.mrf.mxu0
  %1702 = vdwg.mxu0
  %v1703 = vmax.f32 %v1665, 0.0
  %v1704 = vmax.f32 %v1670, 0.0
  %v1705 = vmax.f32 %v1675, 0.0
  %v1706 = vmax.f32 %v1680, 0.0
  %v1707 = vmax.f32 %v1685, 0.0
  %v1708 = vmax.f32 %v1690, 0.0
  %v1709 = vmax.f32 %v1695, 0.0
  %v1710 = vmax.f32 %v1700, 0.0
  %v1712 = vsel %vm632, %v1703, 0
  %v1715 = vsel %vm632, %v1704, 0
  %v1718 = vsel %vm632, %v1705, 0
  %v1721 = vsel %vm632, %v1706, 0
  %v1724 = vsel %vm632, %v1707, 0
  %v1727 = vsel %vm632, %v1708, 0
  %v1730 = vsel %vm632, %v1709, 0
  %v1733 = vsel %vm632, %v1710, 0
  %1735 = vmatprep.subr.mxu0 0.0
  %1736 = vmatpush1.msra.mxu0 0.0
  %1737 = vmatprep.subr.mxu0 0.0
  %1738 = vmatpush1.msra.mxu0 0.0
  %1739 = vmatprep.subr.mxu0 0.0
  %1740 = vmatpush1.msra.mxu0 0.0
  %1741 = vmatprep.subr.mxu0 0.0
  %1742 = vmatpush1.msra.mxu0 0.0
  %1743 = vmatprep.subr.mxu0 0.0
  %1744 = vmatpush1.msra.mxu0 0.0
  %1745 = vmatprep.subr.mxu0 0.0
  %1746 = vmatpush1.msra.mxu0 0.0
  %1747 = vmatprep.subr.mxu0 0.0
  %1748 = vmatpush1.msra.mxu0 0.0
  %1749 = vmatprep.subr.mxu0 0.0
  %1750 = vmatpush1.msra.mxu0 0.0
  %1751 = vmatprep.subr.mxu0 0.0
  %1752 = vmatpush1.msra.mxu0 0.0
  %1753 = vmatprep.subr.mxu0 0.0
  %1754 = vmatpush1.msra.mxu0 0.0
  %1755 = vmatprep.subr.mxu0 0.0
  %1756 = vmatpush1.msra.mxu0 0.0
  %1757 = vmatprep.subr.mxu0 0.0
  %1758 = vmatpush1.msra.mxu0 0.0
  %1759 = vmatprep.subr.mxu0 0.0
  %1760 = vmatpush1.msra.mxu0 %v465
  %1761 = vmatprep.subr.mxu0 0.0
  %1762 = vmatpush1.msra.mxu0 %v464
  %1763 = vmatprep.subr.mxu0 0.0
  %1764 = vmatpush1.msra.mxu0 %v463
  %1765 = vmatprep.subr.mxu0 0.0
  %1766 = vmatpush1.msra.mxu0 %v462
  %1767 = vmatprep.subr.mxu0 0.0
  %1768 = vmatpush2.msra.mxu0 0.0
  %1769 = vmatprep.subr.mxu0 0.0
  %1770 = vmatpush2.msra.mxu0 0.0
  %1771 = vmatprep.subr.mxu0 0.0
  %1772 = vmatpush2.msra.mxu0 0.0
  %1773 = vmatprep.subr.mxu0 0.0
  %1774 = vmatpush2.msra.mxu0 0.0
  %1775 = vmatprep.subr.mxu0 0.0
  %1776 = vmatpush2.msra.mxu0 0.0
  %1777 = vmatprep.subr.mxu0 0.0
  %1778 = vmatpush2.msra.mxu0 0.0
  %1779 = vmatprep.subr.mxu0 0.0
  %1780 = vmatpush2.msra.mxu0 0.0
  %1781 = vmatprep.subr.mxu0 0.0
  %1782 = vmatpush2.msra.mxu0 0.0
  %1783 = vmatprep.subr.mxu0 0.0
  %1784 = vmatpush2.msra.mxu0 0.0
  %1785 = vmatprep.subr.mxu0 0.0
  %1786 = vmatpush2.msra.mxu0 0.0
  %1787 = vmatprep.subr.mxu0 0.0
  %1788 = vmatpush2.msra.mxu0 0.0
  %1789 = vmatprep.subr.mxu0 0.0
  %1790 = vmatpush2.msra.mxu0 0.0
  %1791 = vmatprep.subr.mxu0 0.0
  %1792 = vmatpush2.msra.mxu0 0.0
  %1793 = vmatprep.subr.mxu0 0.0
  %1794 = vmatpush2.msra.mxu0 0.0
  %1795 = vmatprep.subr.mxu0 0.0
  %1796 = vmatpush2.msra.mxu0 0.0
  %1797 = vmatprep.subr.mxu0 0.0
  %1798 = vmatpush2.msra.mxu0 0.0
  %1799 = vmatprep.mubr.f32.mxu0 0.0
  %1800 = vmatmul.mubr.f32.gmra.mxu0 %v1712
  %v1801 = vpop.f32.mrf.mxu0
  %v1802 = vadd.f32 %v485, %v1801
  %v1803 = vpop.f32.mrf.mxu0
  %1804 = vmatprep.mubr.f32.mxu0 0.0
  %1805 = vmatmul.mubr.f32.gmra.mxu0 %v1715
  %v1806 = vpop.f32.mrf.mxu0
  %v1807 = vadd.f32 %v485, %v1806
  %v1808 = vpop.f32.mrf.mxu0
  %1809 = vmatprep.mubr.f32.mxu0 0.0
  %1810 = vmatmul.mubr.f32.gmra.mxu0 %v1718
  %v1811 = vpop.f32.mrf.mxu0
  %v1812 = vadd.f32 %v485, %v1811
  %v1813 = vpop.f32.mrf.mxu0
  %1814 = vmatprep.mubr.f32.mxu0 0.0
  %1815 = vmatmul.mubr.f32.gmra.mxu0 %v1721
  %v1816 = vpop.f32.mrf.mxu0
  %v1817 = vadd.f32 %v485, %v1816
  %v1818 = vpop.f32.mrf.mxu0
  %1819 = vmatprep.mubr.f32.mxu0 0.0
  %1820 = vmatmul.mubr.f32.gmra.mxu0 %v1724
  %v1821 = vpop.f32.mrf.mxu0
  %v1822 = vadd.f32 %v485, %v1821
  %v1823 = vpop.f32.mrf.mxu0
  %1824 = vmatprep.mubr.f32.mxu0 0.0
  %1825 = vmatmul.mubr.f32.gmra.mxu0 %v1727
  %v1826 = vpop.f32.mrf.mxu0
  %v1827 = vadd.f32 %v485, %v1826
  %v1828 = vpop.f32.mrf.mxu0
  %1829 = vmatprep.mubr.f32.mxu0 0.0
  %1830 = vmatmul.mubr.f32.gmra.mxu0 %v1730
  %v1831 = vpop.f32.mrf.mxu0
  %v1832 = vadd.f32 %v485, %v1831
  %v1833 = vpop.f32.mrf.mxu0
  %1834 = vmatprep.mubr.f32.mxu0 0.0
  %1835 = vmatmul.mubr.f32.gmra.mxu0 %v1733
  %v1836 = vpop.f32.mrf.mxu0
  %v1837 = vadd.f32 %v485, %v1836
  %v1838 = vpop.f32.mrf.mxu0
  %1839 = vdwg.mxu0
  %v1840 = vmax.f32 %v1802, 0.0
  %v1841 = vmax.f32 %v1807, 0.0
  %v1842 = vmax.f32 %v1812, 0.0
  %v1843 = vmax.f32 %v1817, 0.0
  %v1844 = vmax.f32 %v1822, 0.0
  %v1845 = vmax.f32 %v1827, 0.0
  %v1846 = vmax.f32 %v1832, 0.0
  %v1847 = vmax.f32 %v1837, 0.0
  %v1849 = vsel %vm632, %v1840, 0
  %v1852 = vsel %vm632, %v1841, 0
  %v1855 = vsel %vm632, %v1842, 0
  %v1858 = vsel %vm632, %v1843, 0
  %v1861 = vsel %vm632, %v1844, 0
  %v1864 = vsel %vm632, %v1845, 0
  %v1867 = vsel %vm632, %v1846, 0
  %v1870 = vsel %vm632, %v1847, 0
  %1872 = vmatprep.subr.mxu0 0.0
  %1873 = vmatpush1.msra.mxu0 0.0
  %1874 = vmatprep.subr.mxu0 0.0
  %1875 = vmatpush1.msra.mxu0 0.0
  %1876 = vmatprep.subr.mxu0 0.0
  %1877 = vmatpush1.msra.mxu0 0.0
  %1878 = vmatprep.subr.mxu0 0.0
  %1879 = vmatpush1.msra.mxu0 0.0
  %1880 = vmatprep.subr.mxu0 0.0
  %1881 = vmatpush1.msra.mxu0 0.0
  %1882 = vmatprep.subr.mxu0 0.0
  %1883 = vmatpush1.msra.mxu0 0.0
  %1884 = vmatprep.subr.mxu0 0.0
  %1885 = vmatpush1.msra.mxu0 0.0
  %1886 = vmatprep.subr.mxu0 0.0
  %1887 = vmatpush1.msra.mxu0 0.0
  %1888 = vmatprep.subr.mxu0 0.0
  %1889 = vmatpush1.msra.mxu0 0.0
  %1890 = vmatprep.subr.mxu0 0.0
  %1891 = vmatpush1.msra.mxu0 0.0
  %1892 = vmatprep.subr.mxu0 0.0
  %1893 = vmatpush1.msra.mxu0 0.0
  %1894 = vmatprep.subr.mxu0 0.0
  %1895 = vmatpush1.msra.mxu0 0.0
  %1896 = vmatprep.subr.mxu0 0.0
  %1897 = vmatpush1.msra.mxu0 %v918
  %1898 = vmatprep.subr.mxu0 0.0
  %1899 = vmatpush1.msra.mxu0 %v916
  %1900 = vmatprep.subr.mxu0 0.0
  %1901 = vmatpush1.msra.mxu0 %v914
  %1902 = vmatprep.subr.mxu0 0.0
  %1903 = vmatpush1.msra.mxu0 %v912
  %1904 = vmatprep.subr.mxu0 0.0
  %1905 = vmatpush2.msra.mxu0 0.0
  %1906 = vmatprep.subr.mxu0 0.0
  %1907 = vmatpush2.msra.mxu0 0.0
  %1908 = vmatprep.subr.mxu0 0.0
  %1909 = vmatpush2.msra.mxu0 0.0
  %1910 = vmatprep.subr.mxu0 0.0
  %1911 = vmatpush2.msra.mxu0 0.0
  %1912 = vmatprep.subr.mxu0 0.0
  %1913 = vmatpush2.msra.mxu0 0.0
  %1914 = vmatprep.subr.mxu0 0.0
  %1915 = vmatpush2.msra.mxu0 0.0
  %1916 = vmatprep.subr.mxu0 0.0
  %1917 = vmatpush2.msra.mxu0 0.0
  %1918 = vmatprep.subr.mxu0 0.0
  %1919 = vmatpush2.msra.mxu0 0.0
  %1920 = vmatprep.subr.mxu0 0.0
  %1921 = vmatpush2.msra.mxu0 0.0
  %1922 = vmatprep.subr.mxu0 0.0
  %1923 = vmatpush2.msra.mxu0 0.0
  %1924 = vmatprep.subr.mxu0 0.0
  %1925 = vmatpush2.msra.mxu0 0.0
  %1926 = vmatprep.subr.mxu0 0.0
  %1927 = vmatpush2.msra.mxu0 0.0
  %1928 = vmatprep.subr.mxu0 0.0
  %1929 = vmatpush2.msra.mxu0 0.0
  %1930 = vmatprep.subr.mxu0 0.0
  %1931 = vmatpush2.msra.mxu0 0.0
  %1932 = vmatprep.subr.mxu0 0.0
  %1933 = vmatpush2.msra.mxu0 0.0
  %1934 = vmatprep.subr.mxu0 0.0
  %1935 = vmatpush2.msra.mxu0 0.0
  %1936 = vmatprep.mubr.f32.mxu0 0.0
  %1937 = vmatmul.mubr.f32.gmra.mxu0 %v1849
  %v1938 = vpop.f32.mrf.mxu0
  %v1939 = vadd.f32 %v489, %v1938
  %v1940 = vpop.f32.mrf.mxu0
  %1941 = vmatprep.mubr.f32.mxu0 0.0
  %1942 = vmatmul.mubr.f32.gmra.mxu0 %v1852
  %v1943 = vpop.f32.mrf.mxu0
  %v1944 = vadd.f32 %v489, %v1943
  %v1945 = vpop.f32.mrf.mxu0
  %1946 = vmatprep.mubr.f32.mxu0 0.0
  %1947 = vmatmul.mubr.f32.gmra.mxu0 %v1855
  %v1948 = vpop.f32.mrf.mxu0
  %v1949 = vadd.f32 %v489, %v1948
  %v1950 = vpop.f32.mrf.mxu0
  %1951 = vmatprep.mubr.f32.mxu0 0.0
  %1952 = vmatmul.mubr.f32.gmra.mxu0 %v1858
  %v1953 = vpop.f32.mrf.mxu0
  %v1954 = vadd.f32 %v489, %v1953
  %v1955 = vpop.f32.mrf.mxu0
  %1956 = vmatprep.mubr.f32.mxu0 0.0
  %1957 = vmatmul.mubr.f32.gmra.mxu0 %v1861
  %v1958 = vpop.f32.mrf.mxu0
  %v1959 = vadd.f32 %v489, %v1958
  %v1960 = vpop.f32.mrf.mxu0
  %1961 = vmatprep.mubr.f32.mxu0 0.0
  %1962 = vmatmul.mubr.f32.gmra.mxu0 %v1864
  %v1963 = vpop.f32.mrf.mxu0
  %v1964 = vadd.f32 %v489, %v1963
  %v1965 = vpop.f32.mrf.mxu0
  %1966 = vmatprep.mubr.f32.mxu0 0.0
  %1967 = vmatmul.mubr.f32.gmra.mxu0 %v1867
  %v1968 = vpop.f32.mrf.mxu0
  %v1969 = vadd.f32 %v489, %v1968
  %v1970 = vpop.f32.mrf.mxu0
  %1971 = vmatprep.mubr.f32.mxu0 0.0
  %1972 = vmatmul.mubr.f32.gmra.mxu0 %v1870
  %v1973 = vpop.f32.mrf.mxu0
  %v1974 = vadd.f32 %v489, %v1973
  %v1975 = vpop.f32.mrf.mxu0
  %1976 = vdwg.mxu0
  %v1977 = vsel %vm632, %v1438, 0
  %v1979 = vsel %vm632, %v1440, 0
  %v1981 = vsel %vm632, %v1442, 0
  %v1983 = vsel %vm632, %v1444, 0
  %v1985 = vsel %vm632, %v1446, 0
  %v1987 = vsel %vm632, %v1448, 0
  %v1989 = vsel %vm632, %v1450, 0
  %v1991 = vsel %vm632, %v1452, 0
  %1993 = vmatprep.subr.mxu0 0.0
  %1994 = vmatpush1.msra.mxu0 0.0
  %1995 = vmatprep.subr.mxu0 0.0
  %1996 = vmatpush1.msra.mxu0 0.0
  %1997 = vmatprep.subr.mxu0 0.0
  %1998 = vmatpush1.msra.mxu0 0.0
  %1999 = vmatprep.subr.mxu0 0.0
  %2000 = vmatpush1.msra.mxu0 0.0
  %2001 = vmatprep.subr.mxu0 0.0
  %2002 = vmatpush1.msra.mxu0 0.0
  %2003 = vmatprep.subr.mxu0 0.0
  %2004 = vmatpush1.msra.mxu0 0.0
  %2005 = vmatprep.subr.mxu0 0.0
  %2006 = vmatpush1.msra.mxu0 0.0
  %2007 = vmatprep.subr.mxu0 0.0
  %2008 = vmatpush1.msra.mxu0 0.0
  %2009 = vmatprep.subr.mxu0 0.0
  %2010 = vmatpush1.msra.mxu0 0.0
  %2011 = vmatprep.subr.mxu0 0.0
  %2012 = vmatpush1.msra.mxu0 0.0
  %2013 = vmatprep.subr.mxu0 0.0
  %2014 = vmatpush1.msra.mxu0 0.0
  %2015 = vmatprep.subr.mxu0 0.0
  %2016 = vmatpush1.msra.mxu0 0.0
  %2017 = vmatprep.subr.mxu0 0.0
  %2018 = vmatpush1.msra.mxu0 %v1063
  %2019 = vmatprep.subr.mxu0 0.0
  %2020 = vmatpush1.msra.mxu0 %v1061
  %2021 = vmatprep.subr.mxu0 0.0
  %2022 = vmatpush1.msra.mxu0 %v1059
  %2023 = vmatprep.subr.mxu0 0.0
  %2024 = vmatpush1.msra.mxu0 %v1057
  %2025 = vmatprep.subr.mxu0 0.0
  %2026 = vmatpush2.msra.mxu0 0.0
  %2027 = vmatprep.subr.mxu0 0.0
  %2028 = vmatpush2.msra.mxu0 0.0
  %2029 = vmatprep.subr.mxu0 0.0
  %2030 = vmatpush2.msra.mxu0 0.0
  %2031 = vmatprep.subr.mxu0 0.0
  %2032 = vmatpush2.msra.mxu0 0.0
  %2033 = vmatprep.subr.mxu0 0.0
  %2034 = vmatpush2.msra.mxu0 0.0
  %2035 = vmatprep.subr.mxu0 0.0
  %2036 = vmatpush2.msra.mxu0 0.0
  %2037 = vmatprep.subr.mxu0 0.0
  %2038 = vmatpush2.msra.mxu0 0.0
  %2039 = vmatprep.subr.mxu0 0.0
  %2040 = vmatpush2.msra.mxu0 0.0
  %2041 = vmatprep.subr.mxu0 0.0
  %2042 = vmatpush2.msra.mxu0 0.0
  %2043 = vmatprep.subr.mxu0 0.0
  %2044 = vmatpush2.msra.mxu0 0.0
  %2045 = vmatprep.subr.mxu0 0.0
  %2046 = vmatpush2.msra.mxu0 0.0
  %2047 = vmatprep.subr.mxu0 0.0
  %2048 = vmatpush2.msra.mxu0 0.0
  %2049 = vmatprep.subr.mxu0 0.0
  %2050 = vmatpush2.msra.mxu0 0.0
  %2051 = vmatprep.subr.mxu0 0.0
  %2052 = vmatpush2.msra.mxu0 0.0
  %2053 = vmatprep.subr.mxu0 0.0
  %2054 = vmatpush2.msra.mxu0 0.0
  %2055 = vmatprep.subr.mxu0 0.0
  %2056 = vmatpush2.msra.mxu0 0.0
  %2057 = vmatprep.mubr.f32.mxu0 0.0
  %2058 = vmatmul.mubr.f32.gmra.mxu0 %v1977
  %v2059 = vpop.f32.mrf.mxu0
  %v2060 = vadd.f32 %v493, %v2059
  %v2061 = vpop.f32.mrf.mxu0
  %2062 = vmatprep.mubr.f32.mxu0 0.0
  %2063 = vmatmul.mubr.f32.gmra.mxu0 %v1979
  %v2064 = vpop.f32.mrf.mxu0
  %v2065 = vadd.f32 %v493, %v2064
  %v2066 = vpop.f32.mrf.mxu0
  %2067 = vmatprep.mubr.f32.mxu0 0.0
  %2068 = vmatmul.mubr.f32.gmra.mxu0 %v1981
  %v2069 = vpop.f32.mrf.mxu0
  %v2070 = vadd.f32 %v493, %v2069
  %v2071 = vpop.f32.mrf.mxu0
  %2072 = vmatprep.mubr.f32.mxu0 0.0
  %2073 = vmatmul.mubr.f32.gmra.mxu0 %v1983
  %v2074 = vpop.f32.mrf.mxu0
  %v2075 = vadd.f32 %v493, %v2074
  %v2076 = vpop.f32.mrf.mxu0
  %2077 = vmatprep.mubr.f32.mxu0 0.0
  %2078 = vmatmul.mubr.f32.gmra.mxu0 %v1985
  %v2079 = vpop.f32.mrf.mxu0
  %v2080 = vadd.f32 %v493, %v2079
  %v2081 = vpop.f32.mrf.mxu0
  %2082 = vmatprep.mubr.f32.mxu0 0.0
  %2083 = vmatmul.mubr.f32.gmra.mxu0 %v1987
  %v2084 = vpop.f32.mrf.mxu0
  %v2085 = vadd.f32 %v493, %v2084
  %v2086 = vpop.f32.mrf.mxu0
  %2087 = vmatprep.mubr.f32.mxu0 0.0
  %2088 = vmatmul.mubr.f32.gmra.mxu0 %v1989
  %v2089 = vpop.f32.mrf.mxu0
  %v2090 = vadd.f32 %v493, %v2089
  %v2091 = vpop.f32.mrf.mxu0
  %2092 = vmatprep.mubr.f32.mxu0 0.0
  %2093 = vmatmul.mubr.f32.gmra.mxu0 %v1991
  %v2094 = vpop.f32.mrf.mxu0
  %v2095 = vadd.f32 %v493, %v2094
  %v2096 = vpop.f32.mrf.mxu0
  %2097 = vdwg.mxu0
  %v2098 = vadd.f32 %v1939, %v2060
  %v2099 = vadd.f32 %v1944, %v2065
  %v2100 = vadd.f32 %v1949, %v2070
  %v2101 = vadd.f32 %v1954, %v2075
  %v2102 = vadd.f32 %v1959, %v2080
  %v2103 = vadd.f32 %v1964, %v2085
  %v2104 = vadd.f32 %v1969, %v2090
  %v2105 = vadd.f32 %v1974, %v2095
  %v2106 = vxor.u32 %v2098, 2147483648
  %v2107 = vxor.u32 %v2099, 2147483648
  %v2108 = vxor.u32 %v2100, 2147483648
  %v2109 = vxor.u32 %v2101, 2147483648
  %v2110 = vxor.u32 %v2102, 2147483648
  %v2111 = vxor.u32 %v2103, 2147483648
  %v2112 = vxor.u32 %v2104, 2147483648
  %v2113 = vxor.u32 %v2105, 2147483648
  %v2114 = vmul.f32 %v2106, 1.442695
  %v2115 = vpow.pop %v2114
  %v2116 = vmul.f32 %v2107, 1.442695
  %v2117 = vpow.pop %v2116
  %v2118 = vmul.f32 %v2108, 1.442695
  %v2119 = vpow.pop %v2118
  %v2120 = vmul.f32 %v2109, 1.442695
  %v2121 = vpow.pop %v2120
  %v2122 = vmul.f32 %v2110, 1.442695
  %v2123 = vpow.pop %v2122
  %v2124 = vmul.f32 %v2111, 1.442695
  %v2125 = vpow.pop %v2124
  %v2126 = vmul.f32 %v2112, 1.442695
  %v2127 = vpow.pop %v2126
  %v2128 = vmul.f32 %v2113, 1.442695
  %v2129 = vpow.pop %v2128
  %v2130 = vadd.f32 %v2115, 1.0
  %v2131 = vadd.f32 %v2117, 1.0
  %v2132 = vadd.f32 %v2119, 1.0
  %v2133 = vadd.f32 %v2121, 1.0
  %v2134 = vadd.f32 %v2123, 1.0
  %v2135 = vadd.f32 %v2125, 1.0
  %v2136 = vadd.f32 %v2127, 1.0
  %v2137 = vadd.f32 %v2129, 1.0
  %v2138 = vrcp.pop %v2130
  %v2139 = vmul.f32 1.0, %v2138
  %v2140 = vrcp.pop %v2131
  %v2141 = vmul.f32 1.0, %v2140
  %v2142 = vrcp.pop %v2132
  %v2143 = vmul.f32 1.0, %v2142
  %v2144 = vrcp.pop %v2133
  %v2145 = vmul.f32 1.0, %v2144
  %v2146 = vrcp.pop %v2134
  %v2147 = vmul.f32 1.0, %v2146
  %v2148 = vrcp.pop %v2135
  %v2149 = vmul.f32 1.0, %v2148
  %v2150 = vrcp.pop %v2136
  %v2151 = vmul.f32 1.0, %v2150
  %v2152 = vrcp.pop %v2137
  %v2153 = vmul.f32 1.0, %v2152
  %2162 = vrot.lane.b32.xlu0 %v2060, 64
  %v2163 = vpop.permute.xlu0 %2162
  %2164 = vrot.lane.b32.xlu0 %v2065, 64
  %v2165 = vpop.permute.xlu0 %2164
  %2166 = vrot.lane.b32.xlu0 %v2070, 64
  %v2167 = vpop.permute.xlu0 %2166
  %2168 = vrot.lane.b32.xlu0 %v2075, 64
  %v2169 = vpop.permute.xlu0 %2168
  %2170 = vrot.lane.b32.xlu0 %v2080, 64
  %v2171 = vpop.permute.xlu0 %2170
  %2172 = vrot.lane.b32.xlu0 %v2085, 64
  %v2173 = vpop.permute.xlu0 %2172
  %2174 = vrot.lane.b32.xlu0 %v2090, 64
  %v2175 = vpop.permute.xlu0 %2174
  %2176 = vrot.lane.b32.xlu0 %v2095, 64
  %v2177 = vpop.permute.xlu0 %2176
  %v2186 = vmul.f32 %v2139, %v2163
  %v2187 = vmul.f32 %v2141, %v2165
  %v2188 = vmul.f32 %v2143, %v2167
  %v2189 = vmul.f32 %v2145, %v2169
  %v2190 = vmul.f32 %v2147, %v2171
  %v2191 = vmul.f32 %v2149, %v2173
  %v2192 = vmul.f32 %v2151, %v2175
  %v2193 = vmul.f32 %v2153, %v2177
  %2202 = vrot.lane.b32.xlu0 %v2186, 64
  %v2203 = vpop.permute.xlu0 %2202
  %2204 = vrot.lane.b32.xlu0 %v2187, 64
  %v2205 = vpop.permute.xlu0 %2204
  %2206 = vrot.lane.b32.xlu0 %v2188, 64
  %v2207 = vpop.permute.xlu0 %2206
  %2208 = vrot.lane.b32.xlu0 %v2189, 64
  %v2209 = vpop.permute.xlu0 %2208
  %2210 = vrot.lane.b32.xlu0 %v2190, 64
  %v2211 = vpop.permute.xlu0 %2210
  %2212 = vrot.lane.b32.xlu0 %v2191, 64
  %v2213 = vpop.permute.xlu0 %2212
  %2214 = vrot.lane.b32.xlu0 %v2192, 64
  %v2215 = vpop.permute.xlu0 %2214
  %2216 = vrot.lane.b32.xlu0 %v2193, 64
  %v2217 = vpop.permute.xlu0 %2216
  %v2226 = vadd.f32 %v1939, %v2203
  %v2227 = vadd.f32 %v1944, %v2205
  %v2228 = vadd.f32 %v1949, %v2207
  %v2229 = vadd.f32 %v1954, %v2209
  %v2230 = vadd.f32 %v1959, %v2211
  %v2231 = vadd.f32 %v1964, %v2213
  %v2232 = vadd.f32 %v1969, %v2215
  %v2233 = vadd.f32 %v1974, %v2217
  %v2234 = vtanh.pop %v2226
  %v2235 = vtanh.pop %v2227
  %v2236 = vtanh.pop %v2228
  %v2237 = vtanh.pop %v2229
  %v2238 = vtanh.pop %v2230
  %v2239 = vtanh.pop %v2231
  %v2240 = vtanh.pop %v2232
  %v2241 = vtanh.pop %v2233
  %v2242 = vsub.f32 1.0, %v2139
  %v2243 = vsub.f32 1.0, %v2141
  %v2244 = vsub.f32 1.0, %v2143
  %v2245 = vsub.f32 1.0, %v2145
  %v2246 = vsub.f32 1.0, %v2147
  %v2247 = vsub.f32 1.0, %v2149
  %v2248 = vsub.f32 1.0, %v2151
  %v2249 = vsub.f32 1.0, %v2153
  %2258 = vrot.lane.b32.xlu0 %v2234, 96
  %v2259 = vpop.permute.xlu0 %2258
  %2260 = vrot.lane.b32.xlu0 %v2235, 96
  %v2261 = vpop.permute.xlu0 %2260
  %2262 = vrot.lane.b32.xlu0 %v2236, 96
  %v2263 = vpop.permute.xlu0 %2262
  %2264 = vrot.lane.b32.xlu0 %v2237, 96
  %v2265 = vpop.permute.xlu0 %2264
  %2266 = vrot.lane.b32.xlu0 %v2238, 96
  %v2267 = vpop.permute.xlu0 %2266
  %2268 = vrot.lane.b32.xlu0 %v2239, 96
  %v2269 = vpop.permute.xlu0 %2268
  %2270 = vrot.lane.b32.xlu0 %v2240, 96
  %v2271 = vpop.permute.xlu0 %2270
  %2272 = vrot.lane.b32.xlu0 %v2241, 96
  %v2273 = vpop.permute.xlu0 %2272
  %v2282 = vmul.f32 %v2242, %v2259
  %v2283 = vmul.f32 %v2243, %v2261
  %v2284 = vmul.f32 %v2244, %v2263
  %v2285 = vmul.f32 %v2245, %v2265
  %v2286 = vmul.f32 %v2246, %v2267
  %v2287 = vmul.f32 %v2247, %v2269
  %v2288 = vmul.f32 %v2248, %v2271
  %v2289 = vmul.f32 %v2249, %v2273
  %v2290 = vmul.f32 %v2139, %v1421
  %v2291 = vmul.f32 %v2141, %v1422
  %v2292 = vmul.f32 %v2143, %v1423
  %v2293 = vmul.f32 %v2145, %v1424
  %v2294 = vmul.f32 %v2147, %v1425
  %v2295 = vmul.f32 %v2149, %v1426
  %v2296 = vmul.f32 %v2151, %v1427
  %v2297 = vmul.f32 %v2153, %v1428
  %v2298 = vadd.f32 %v2282, %v2290
  %v2299 = vadd.f32 %v2283, %v2291
  %v2300 = vadd.f32 %v2284, %v2292
  %v2301 = vadd.f32 %v2285, %v2293
  %v2302 = vadd.f32 %v2286, %v2294
  %v2303 = vadd.f32 %v2287, %v2295
  %v2304 = vadd.f32 %v2288, %v2296
  %v2305 = vadd.f32 %v2289, %v2297
  %vm2306 = vcmask 523520
  %2307 = vst.msk [vmem:[%s6] sm:$0xff] %vm2306, %v2298
  %2308 = vst.msk [vmem:[%s6 + $0x8] sm:$0xff] %vm2306, %v2299
  %2309 = vst.msk [vmem:[%s6 + $0x10] sm:$0xff] %vm2306, %v2300
  %2310 = vst.msk [vmem:[%s6 + $0x18] sm:$0xff] %vm2306, %v2301
  %2311 = vst.msk [vmem:[%s6 + $0x20] sm:$0xff] %vm2306, %v2302
  %2312 = vst.msk [vmem:[%s6 + $0x28] sm:$0xff] %vm2306, %v2303
  %2313 = vst.msk [vmem:[%s6 + $0x30] sm:$0xff] %vm2306, %v2304
  %2314 = vst.msk [vmem:[%s6 + $0x38] sm:$0xff] %vm2306, %v2305
  %2323 = vrot.lane.b32.xlu0 %v2298, 96
  %v2324 = vpop.permute.xlu0 %2323
  %2325 = vrot.lane.b32.xlu0 %v2299, 96
  %v2326 = vpop.permute.xlu0 %2325
  %2327 = vrot.lane.b32.xlu0 %v2300, 96
  %v2328 = vpop.permute.xlu0 %2327
  %2329 = vrot.lane.b32.xlu0 %v2301, 96
  %v2330 = vpop.permute.xlu0 %2329
  %2331 = vrot.lane.b32.xlu0 %v2302, 96
  %v2332 = vpop.permute.xlu0 %2331
  %2333 = vrot.lane.b32.xlu0 %v2303, 96
  %v2334 = vpop.permute.xlu0 %2333
  %2335 = vrot.lane.b32.xlu0 %v2304, 96
  %v2336 = vpop.permute.xlu0 %2335
  %2337 = vrot.lane.b32.xlu0 %v2305, 96
  %v2338 = vpop.permute.xlu0 %2337
  %v2339 = vsel %vm632, %v2324, 0
  %v2341 = vsel %vm632, %v2326, 0
  %v2343 = vsel %vm632, %v2328, 0
  %v2345 = vsel %vm632, %v2330, 0
  %v2347 = vsel %vm632, %v2332, 0
  %v2349 = vsel %vm632, %v2334, 0
  %v2351 = vsel %vm632, %v2336, 0
  %v2353 = vsel %vm632, %v2338, 0
  %2355 = vmatprep.subr.mxu0 0.0
  %2356 = vmatpush1.msra.mxu0 0.0
  %2357 = vmatprep.subr.mxu0 0.0
  %2358 = vmatpush1.msra.mxu0 0.0
  %2359 = vmatprep.subr.mxu0 0.0
  %2360 = vmatpush1.msra.mxu0 0.0
  %2361 = vmatprep.subr.mxu0 0.0
  %2362 = vmatpush1.msra.mxu0 0.0
  %2363 = vmatprep.subr.mxu0 0.0
  %2364 = vmatpush1.msra.mxu0 0.0
  %2365 = vmatprep.subr.mxu0 0.0
  %2366 = vmatpush1.msra.mxu0 0.0
  %2367 = vmatprep.subr.mxu0 0.0
  %2368 = vmatpush1.msra.mxu0 0.0
  %2369 = vmatprep.subr.mxu0 0.0
  %2370 = vmatpush1.msra.mxu0 0.0
  %2371 = vmatprep.subr.mxu0 0.0
  %2372 = vmatpush1.msra.mxu0 0.0
  %2373 = vmatprep.subr.mxu0 0.0
  %2374 = vmatpush1.msra.mxu0 0.0
  %2375 = vmatprep.subr.mxu0 0.0
  %2376 = vmatpush1.msra.mxu0 0.0
  %2377 = vmatprep.subr.mxu0 0.0
  %2378 = vmatpush1.msra.mxu0 0.0
  %2379 = vmatprep.subr.mxu0 0.0
  %2380 = vmatpush1.msra.mxu0 %v473
  %2381 = vmatprep.subr.mxu0 0.0
  %2382 = vmatpush1.msra.mxu0 %v472
  %2383 = vmatprep.subr.mxu0 0.0
  %2384 = vmatpush1.msra.mxu0 %v471
  %2385 = vmatprep.subr.mxu0 0.0
  %2386 = vmatpush1.msra.mxu0 %v470
  %2387 = vmatprep.subr.mxu0 0.0
  %2388 = vmatpush2.msra.mxu0 0.0
  %2389 = vmatprep.subr.mxu0 0.0
  %2390 = vmatpush2.msra.mxu0 0.0
  %2391 = vmatprep.subr.mxu0 0.0
  %2392 = vmatpush2.msra.mxu0 0.0
  %2393 = vmatprep.subr.mxu0 0.0
  %2394 = vmatpush2.msra.mxu0 0.0
  %2395 = vmatprep.subr.mxu0 0.0
  %2396 = vmatpush2.msra.mxu0 0.0
  %2397 = vmatprep.subr.mxu0 0.0
  %2398 = vmatpush2.msra.mxu0 0.0
  %2399 = vmatprep.subr.mxu0 0.0
  %2400 = vmatpush2.msra.mxu0 0.0
  %2401 = vmatprep.subr.mxu0 0.0
  %2402 = vmatpush2.msra.mxu0 0.0
  %2403 = vmatprep.subr.mxu0 0.0
  %2404 = vmatpush2.msra.mxu0 0.0
  %2405 = vmatprep.subr.mxu0 0.0
  %2406 = vmatpush2.msra.mxu0 0.0
  %2407 = vmatprep.subr.mxu0 0.0
  %2408 = vmatpush2.msra.mxu0 0.0
  %2409 = vmatprep.subr.mxu0 0.0
  %2410 = vmatpush2.msra.mxu0 0.0
  %2411 = vmatprep.subr.mxu0 0.0
  %2412 = vmatpush2.msra.mxu0 0.0
  %2413 = vmatprep.subr.mxu0 0.0
  %2414 = vmatpush2.msra.mxu0 0.0
  %2415 = vmatprep.subr.mxu0 0.0
  %2416 = vmatpush2.msra.mxu0 0.0
  %2417 = vmatprep.subr.mxu0 0.0
  %2418 = vmatpush2.msra.mxu0 0.0
  %2419 = vmatprep.mubr.f32.mxu0 0.0
  %2420 = vmatmul.mubr.f32.gmra.mxu0 %v2339
  %v2421 = vpop.f32.mrf.mxu0
  %v2422 = vadd.f32 0.0, %v2421
  %v2423 = vpop.f32.mrf.mxu0
  %2424 = vmatprep.mubr.f32.mxu0 0.0
  %2425 = vmatmul.mubr.f32.gmra.mxu0 %v2341
  %v2426 = vpop.f32.mrf.mxu0
  %v2427 = vadd.f32 0.0, %v2426
  %v2428 = vpop.f32.mrf.mxu0
  %2429 = vmatprep.mubr.f32.mxu0 0.0
  %2430 = vmatmul.mubr.f32.gmra.mxu0 %v2343
  %v2431 = vpop.f32.mrf.mxu0
  %v2432 = vadd.f32 0.0, %v2431
  %v2433 = vpop.f32.mrf.mxu0
  %2434 = vmatprep.mubr.f32.mxu0 0.0
  %2435 = vmatmul.mubr.f32.gmra.mxu0 %v2345
  %v2436 = vpop.f32.mrf.mxu0
  %v2437 = vadd.f32 0.0, %v2436
  %v2438 = vpop.f32.mrf.mxu0
  %2439 = vmatprep.mubr.f32.mxu0 0.0
  %2440 = vmatmul.mubr.f32.gmra.mxu0 %v2347
  %v2441 = vpop.f32.mrf.mxu0
  %v2442 = vadd.f32 0.0, %v2441
  %v2443 = vpop.f32.mrf.mxu0
  %2444 = vmatprep.mubr.f32.mxu0 0.0
  %2445 = vmatmul.mubr.f32.gmra.mxu0 %v2349
  %v2446 = vpop.f32.mrf.mxu0
  %v2447 = vadd.f32 0.0, %v2446
  %v2448 = vpop.f32.mrf.mxu0
  %2449 = vmatprep.mubr.f32.mxu0 0.0
  %2450 = vmatmul.mubr.f32.gmra.mxu0 %v2351
  %v2451 = vpop.f32.mrf.mxu0
  %v2452 = vadd.f32 0.0, %v2451
  %v2453 = vpop.f32.mrf.mxu0
  %2454 = vmatprep.mubr.f32.mxu0 0.0
  %2455 = vmatmul.mubr.f32.gmra.mxu0 %v2353
  %v2456 = vpop.f32.mrf.mxu0
  %v2457 = vadd.f32 0.0, %v2456
  %v2458 = vpop.f32.mrf.mxu0
  %2459 = vdwg.mxu0
  %2460 = vmatprep.subr.mxu0 0.0
  %2461 = vmatpush1.msra.mxu0 0.0
  %2462 = vmatprep.subr.mxu0 0.0
  %2463 = vmatpush1.msra.mxu0 0.0
  %2464 = vmatprep.subr.mxu0 0.0
  %2465 = vmatpush1.msra.mxu0 0.0
  %2466 = vmatprep.subr.mxu0 0.0
  %2467 = vmatpush1.msra.mxu0 0.0
  %2468 = vmatprep.subr.mxu0 0.0
  %2469 = vmatpush1.msra.mxu0 0.0
  %2470 = vmatprep.subr.mxu0 0.0
  %2471 = vmatpush1.msra.mxu0 0.0
  %2472 = vmatprep.subr.mxu0 0.0
  %2473 = vmatpush1.msra.mxu0 0.0
  %2474 = vmatprep.subr.mxu0 0.0
  %2475 = vmatpush1.msra.mxu0 0.0
  %2476 = vmatprep.subr.mxu0 0.0
  %2477 = vmatpush1.msra.mxu0 0.0
  %2478 = vmatprep.subr.mxu0 0.0
  %2479 = vmatpush1.msra.mxu0 0.0
  %2480 = vmatprep.subr.mxu0 0.0
  %2481 = vmatpush1.msra.mxu0 0.0
  %2482 = vmatprep.subr.mxu0 0.0
  %2483 = vmatpush1.msra.mxu0 0.0
  %2484 = vmatprep.subr.mxu0 0.0
  %2485 = vmatpush1.msra.mxu0 %v469
  %2486 = vmatprep.subr.mxu0 0.0
  %2487 = vmatpush1.msra.mxu0 %v468
  %2488 = vmatprep.subr.mxu0 0.0
  %2489 = vmatpush1.msra.mxu0 %v467
  %2490 = vmatprep.subr.mxu0 0.0
  %2491 = vmatpush1.msra.mxu0 %v466
  %2492 = vmatprep.subr.mxu0 0.0
  %2493 = vmatpush2.msra.mxu0 0.0
  %2494 = vmatprep.subr.mxu0 0.0
  %2495 = vmatpush2.msra.mxu0 0.0
  %2496 = vmatprep.subr.mxu0 0.0
  %2497 = vmatpush2.msra.mxu0 0.0
  %2498 = vmatprep.subr.mxu0 0.0
  %2499 = vmatpush2.msra.mxu0 0.0
  %2500 = vmatprep.subr.mxu0 0.0
  %2501 = vmatpush2.msra.mxu0 0.0
  %2502 = vmatprep.subr.mxu0 0.0
  %2503 = vmatpush2.msra.mxu0 0.0
  %2504 = vmatprep.subr.mxu0 0.0
  %2505 = vmatpush2.msra.mxu0 0.0
  %2506 = vmatprep.subr.mxu0 0.0
  %2507 = vmatpush2.msra.mxu0 0.0
  %2508 = vmatprep.subr.mxu0 0.0
  %2509 = vmatpush2.msra.mxu0 0.0
  %2510 = vmatprep.subr.mxu0 0.0
  %2511 = vmatpush2.msra.mxu0 0.0
  %2512 = vmatprep.subr.mxu0 0.0
  %2513 = vmatpush2.msra.mxu0 0.0
  %2514 = vmatprep.subr.mxu0 0.0
  %2515 = vmatpush2.msra.mxu0 0.0
  %2516 = vmatprep.subr.mxu0 0.0
  %2517 = vmatpush2.msra.mxu0 0.0
  %2518 = vmatprep.subr.mxu0 0.0
  %2519 = vmatpush2.msra.mxu0 0.0
  %2520 = vmatprep.subr.mxu0 0.0
  %2521 = vmatpush2.msra.mxu0 0.0
  %2522 = vmatprep.subr.mxu0 0.0
  %2523 = vmatpush2.msra.mxu0 0.0
  %2524 = vmatprep.mubr.f32.mxu0 0.0
  %2525 = vmatmul.mubr.f32.gmra.mxu0 %v1977
  %v2526 = vpop.f32.mrf.mxu0
  %v2527 = vadd.f32 %v2422, %v2526
  %v2528 = vpop.f32.mrf.mxu0
  %2529 = vmatprep.mubr.f32.mxu0 0.0
  %2530 = vmatmul.mubr.f32.gmra.mxu0 %v1979
  %v2531 = vpop.f32.mrf.mxu0
  %v2532 = vadd.f32 %v2427, %v2531
  %v2533 = vpop.f32.mrf.mxu0
  %2534 = vmatprep.mubr.f32.mxu0 0.0
  %2535 = vmatmul.mubr.f32.gmra.mxu0 %v1981
  %v2536 = vpop.f32.mrf.mxu0
  %v2537 = vadd.f32 %v2432, %v2536
  %v2538 = vpop.f32.mrf.mxu0
  %2539 = vmatprep.mubr.f32.mxu0 0.0
  %2540 = vmatmul.mubr.f32.gmra.mxu0 %v1983
  %v2541 = vpop.f32.mrf.mxu0
  %v2542 = vadd.f32 %v2437, %v2541
  %v2543 = vpop.f32.mrf.mxu0
  %2544 = vmatprep.mubr.f32.mxu0 0.0
  %2545 = vmatmul.mubr.f32.gmra.mxu0 %v1985
  %v2546 = vpop.f32.mrf.mxu0
  %v2547 = vadd.f32 %v2442, %v2546
  %v2548 = vpop.f32.mrf.mxu0
  %2549 = vmatprep.mubr.f32.mxu0 0.0
  %2550 = vmatmul.mubr.f32.gmra.mxu0 %v1987
  %v2551 = vpop.f32.mrf.mxu0
  %v2552 = vadd.f32 %v2447, %v2551
  %v2553 = vpop.f32.mrf.mxu0
  %2554 = vmatprep.mubr.f32.mxu0 0.0
  %2555 = vmatmul.mubr.f32.gmra.mxu0 %v1989
  %v2556 = vpop.f32.mrf.mxu0
  %v2557 = vadd.f32 %v2452, %v2556
  %v2558 = vpop.f32.mrf.mxu0
  %2559 = vmatprep.mubr.f32.mxu0 0.0
  %2560 = vmatmul.mubr.f32.gmra.mxu0 %v1991
  %v2561 = vpop.f32.mrf.mxu0
  %v2562 = vadd.f32 %v2457, %v2561
  %v2563 = vpop.f32.mrf.mxu0
  %2564 = vdwg.mxu0
  %2573 = vmatprep.subr.mxu0 0.0
  %2574 = vmatpush1.msra.mxu0 0.0
  %2575 = vmatprep.subr.mxu0 0.0
  %2576 = vmatpush1.msra.mxu0 0.0
  %2577 = vmatprep.subr.mxu0 0.0
  %2578 = vmatpush1.msra.mxu0 0.0
  %2579 = vmatprep.subr.mxu0 0.0
  %2580 = vmatpush1.msra.mxu0 0.0
  %2581 = vmatprep.subr.mxu0 0.0
  %2582 = vmatpush1.msra.mxu0 0.0
  %2583 = vmatprep.subr.mxu0 0.0
  %2584 = vmatpush1.msra.mxu0 0.0
  %2585 = vmatprep.subr.mxu0 0.0
  %2586 = vmatpush1.msra.mxu0 0.0
  %2587 = vmatprep.subr.mxu0 0.0
  %2588 = vmatpush1.msra.mxu0 0.0
  %2589 = vmatprep.subr.mxu0 0.0
  %2590 = vmatpush1.msra.mxu0 %v2338
  %2591 = vmatprep.subr.mxu0 0.0
  %2592 = vmatpush1.msra.mxu0 %v2336
  %2593 = vmatprep.subr.mxu0 0.0
  %2594 = vmatpush1.msra.mxu0 %v2334
  %2595 = vmatprep.subr.mxu0 0.0
  %2596 = vmatpush1.msra.mxu0 %v2332
  %2597 = vmatprep.subr.mxu0 0.0
  %2598 = vmatpush1.msra.mxu0 %v2330
  %2599 = vmatprep.subr.mxu0 0.0
  %2600 = vmatpush1.msra.mxu0 %v2328
  %2601 = vmatprep.subr.mxu0 0.0
  %2602 = vmatpush1.msra.mxu0 %v2326
  %2603 = vmatprep.subr.mxu0 0.0
  %2604 = vmatpush1.msra.mxu0 %v2324
  %2605 = vmatprep.subr.mxu0 0.0
  %2606 = vmatpush2.msra.mxu0 0.0
  %2607 = vmatprep.subr.mxu0 0.0
  %2608 = vmatpush2.msra.mxu0 0.0
  %2609 = vmatprep.subr.mxu0 0.0
  %2610 = vmatpush2.msra.mxu0 0.0
  %2611 = vmatprep.subr.mxu0 0.0
  %2612 = vmatpush2.msra.mxu0 0.0
  %2613 = vmatprep.subr.mxu0 0.0
  %2614 = vmatpush2.msra.mxu0 0.0
  %2615 = vmatprep.subr.mxu0 0.0
  %2616 = vmatpush2.msra.mxu0 0.0
  %2617 = vmatprep.subr.mxu0 0.0
  %2618 = vmatpush2.msra.mxu0 0.0
  %2619 = vmatprep.subr.mxu0 0.0
  %2620 = vmatpush2.msra.mxu0 0.0
  %2621 = vmatprep.subr.mxu0 0.0
  %2622 = vmatpush2.msra.mxu0 0.0
  %2623 = vmatprep.subr.mxu0 0.0
  %2624 = vmatpush2.msra.mxu0 0.0
  %2625 = vmatprep.subr.mxu0 0.0
  %2626 = vmatpush2.msra.mxu0 0.0
  %2627 = vmatprep.subr.mxu0 0.0
  %2628 = vmatpush2.msra.mxu0 0.0
  %2629 = vmatprep.subr.mxu0 0.0
  %2630 = vmatpush2.msra.mxu0 0.0
  %2631 = vmatprep.subr.mxu0 0.0
  %2632 = vmatpush2.msra.mxu0 0.0
  %2633 = vmatprep.subr.mxu0 0.0
  %2634 = vmatpush2.msra.mxu0 0.0
  %2635 = vmatprep.subr.mxu0 0.0
  %2636 = vmatpush2.msra.mxu0 0.0
  %2637 = vmatprep.mubr.f32.mxu0 0.0
  %2638 = vmatmul.mubr.f32.gmra.mxu0 %v504
  %v2639 = vpop.f32.mrf.mxu0
  %v2640 = vadd.f32 0.0, %v2639
  %v2641 = vpop.f32.mrf.mxu0
  %2642 = vmatprep.mubr.f32.mxu0 0.0
  %2643 = vmatmul.mubr.f32.gmra.mxu0 %v507
  %v2644 = vpop.f32.mrf.mxu0
  %v2645 = vadd.f32 0.0, %v2644
  %v2646 = vpop.f32.mrf.mxu0
  %2647 = vmatprep.mubr.f32.mxu0 0.0
  %2648 = vmatmul.mubr.f32.gmra.mxu0 %v510
  %v2649 = vpop.f32.mrf.mxu0
  %v2650 = vadd.f32 0.0, %v2649
  %v2651 = vpop.f32.mrf.mxu0
  %2652 = vmatprep.mubr.f32.mxu0 0.0
  %2653 = vmatmul.mubr.f32.gmra.mxu0 %v513
  %v2654 = vpop.f32.mrf.mxu0
  %v2655 = vadd.f32 0.0, %v2654
  %v2656 = vpop.f32.mrf.mxu0
  %2657 = vmatprep.mubr.f32.mxu0 0.0
  %2658 = vmatmul.mubr.f32.gmra.mxu0 %v516
  %v2659 = vpop.f32.mrf.mxu0
  %v2660 = vadd.f32 0.0, %v2659
  %v2661 = vpop.f32.mrf.mxu0
  %2662 = vmatprep.mubr.f32.mxu0 0.0
  %2663 = vmatmul.mubr.f32.gmra.mxu0 %v519
  %v2664 = vpop.f32.mrf.mxu0
  %v2665 = vadd.f32 0.0, %v2664
  %v2666 = vpop.f32.mrf.mxu0
  %2667 = vmatprep.mubr.f32.mxu0 0.0
  %2668 = vmatmul.mubr.f32.gmra.mxu0 %v522
  %v2669 = vpop.f32.mrf.mxu0
  %v2670 = vadd.f32 0.0, %v2669
  %v2671 = vpop.f32.mrf.mxu0
  %2672 = vmatprep.mubr.f32.mxu0 0.0
  %2673 = vmatmul.mubr.f32.gmra.mxu0 %v525
  %v2674 = vpop.f32.mrf.mxu0
  %v2675 = vadd.f32 0.0, %v2674
  %v2676 = vpop.f32.mrf.mxu0
  %2677 = vdwg.mxu0
  %v2679 = vsel %vm632, %v2640, 0
  %v2682 = vsel %vm632, %v2645, 0
  %v2685 = vsel %vm632, %v2650, 0
  %v2688 = vsel %vm632, %v2655, 0
  %v2691 = vsel %vm632, %v2660, 0
  %v2694 = vsel %vm632, %v2665, 0
  %v2697 = vsel %vm632, %v2670, 0
  %v2700 = vsel %vm632, %v2675, 0
  %2702 = vmatprep.subr.mxu0 0.0
  %2703 = vmatpush1.msra.mxu0 0.0
  %2704 = vmatprep.subr.mxu0 0.0
  %2705 = vmatpush1.msra.mxu0 0.0
  %2706 = vmatprep.subr.mxu0 0.0
  %2707 = vmatpush1.msra.mxu0 0.0
  %2708 = vmatprep.subr.mxu0 0.0
  %2709 = vmatpush1.msra.mxu0 0.0
  %2710 = vmatprep.subr.mxu0 0.0
  %2711 = vmatpush1.msra.mxu0 0.0
  %2712 = vmatprep.subr.mxu0 0.0
  %2713 = vmatpush1.msra.mxu0 0.0
  %2714 = vmatprep.subr.mxu0 0.0
  %2715 = vmatpush1.msra.mxu0 0.0
  %2716 = vmatprep.subr.mxu0 0.0
  %2717 = vmatpush1.msra.mxu0 0.0
  %2718 = vmatprep.subr.mxu0 0.0
  %2719 = vmatpush1.msra.mxu0 0.0
  %2720 = vmatprep.subr.mxu0 0.0
  %2721 = vmatpush1.msra.mxu0 0.0
  %2722 = vmatprep.subr.mxu0 0.0
  %2723 = vmatpush1.msra.mxu0 0.0
  %2724 = vmatprep.subr.mxu0 0.0
  %2725 = vmatpush1.msra.mxu0 0.0
  %2726 = vmatprep.subr.mxu0 0.0
  %2727 = vmatpush1.msra.mxu0 %v461
  %2728 = vmatprep.subr.mxu0 0.0
  %2729 = vmatpush1.msra.mxu0 %v460
  %2730 = vmatprep.subr.mxu0 0.0
  %2731 = vmatpush1.msra.mxu0 %v459
  %2732 = vmatprep.subr.mxu0 0.0
  %2733 = vmatpush1.msra.mxu0 %v458
  %2734 = vmatprep.subr.mxu0 0.0
  %2735 = vmatpush2.msra.mxu0 0.0
  %2736 = vmatprep.subr.mxu0 0.0
  %2737 = vmatpush2.msra.mxu0 0.0
  %2738 = vmatprep.subr.mxu0 0.0
  %2739 = vmatpush2.msra.mxu0 0.0
  %2740 = vmatprep.subr.mxu0 0.0
  %2741 = vmatpush2.msra.mxu0 0.0
  %2742 = vmatprep.subr.mxu0 0.0
  %2743 = vmatpush2.msra.mxu0 0.0
  %2744 = vmatprep.subr.mxu0 0.0
  %2745 = vmatpush2.msra.mxu0 0.0
  %2746 = vmatprep.subr.mxu0 0.0
  %2747 = vmatpush2.msra.mxu0 0.0
  %2748 = vmatprep.subr.mxu0 0.0
  %2749 = vmatpush2.msra.mxu0 0.0
  %2750 = vmatprep.subr.mxu0 0.0
  %2751 = vmatpush2.msra.mxu0 0.0
  %2752 = vmatprep.subr.mxu0 0.0
  %2753 = vmatpush2.msra.mxu0 0.0
  %2754 = vmatprep.subr.mxu0 0.0
  %2755 = vmatpush2.msra.mxu0 0.0
  %2756 = vmatprep.subr.mxu0 0.0
  %2757 = vmatpush2.msra.mxu0 0.0
  %2758 = vmatprep.subr.mxu0 0.0
  %2759 = vmatpush2.msra.mxu0 0.0
  %2760 = vmatprep.subr.mxu0 0.0
  %2761 = vmatpush2.msra.mxu0 0.0
  %2762 = vmatprep.subr.mxu0 0.0
  %2763 = vmatpush2.msra.mxu0 0.0
  %2764 = vmatprep.subr.mxu0 0.0
  %2765 = vmatpush2.msra.mxu0 0.0
  %2766 = vmatprep.mubr.f32.mxu0 0.0
  %2767 = vmatmul.mubr.f32.gmra.mxu0 %v2679
  %v2768 = vpop.f32.mrf.mxu0
  %v2769 = vadd.f32 %v481, %v2768
  %v2770 = vpop.f32.mrf.mxu0
  %2771 = vmatprep.mubr.f32.mxu0 0.0
  %2772 = vmatmul.mubr.f32.gmra.mxu0 %v2682
  %v2773 = vpop.f32.mrf.mxu0
  %v2774 = vadd.f32 %v481, %v2773
  %v2775 = vpop.f32.mrf.mxu0
  %2776 = vmatprep.mubr.f32.mxu0 0.0
  %2777 = vmatmul.mubr.f32.gmra.mxu0 %v2685
  %v2778 = vpop.f32.mrf.mxu0
  %v2779 = vadd.f32 %v481, %v2778
  %v2780 = vpop.f32.mrf.mxu0
  %2781 = vmatprep.mubr.f32.mxu0 0.0
  %2782 = vmatmul.mubr.f32.gmra.mxu0 %v2688
  %v2783 = vpop.f32.mrf.mxu0
  %v2784 = vadd.f32 %v481, %v2783
  %v2785 = vpop.f32.mrf.mxu0
  %2786 = vmatprep.mubr.f32.mxu0 0.0
  %2787 = vmatmul.mubr.f32.gmra.mxu0 %v2691
  %v2788 = vpop.f32.mrf.mxu0
  %v2789 = vadd.f32 %v481, %v2788
  %v2790 = vpop.f32.mrf.mxu0
  %2791 = vmatprep.mubr.f32.mxu0 0.0
  %2792 = vmatmul.mubr.f32.gmra.mxu0 %v2694
  %v2793 = vpop.f32.mrf.mxu0
  %v2794 = vadd.f32 %v481, %v2793
  %v2795 = vpop.f32.mrf.mxu0
  %2796 = vmatprep.mubr.f32.mxu0 0.0
  %2797 = vmatmul.mubr.f32.gmra.mxu0 %v2697
  %v2798 = vpop.f32.mrf.mxu0
  %v2799 = vadd.f32 %v481, %v2798
  %v2800 = vpop.f32.mrf.mxu0
  %2801 = vmatprep.mubr.f32.mxu0 0.0
  %2802 = vmatmul.mubr.f32.gmra.mxu0 %v2700
  %v2803 = vpop.f32.mrf.mxu0
  %v2804 = vadd.f32 %v481, %v2803
  %v2805 = vpop.f32.mrf.mxu0
  %2806 = vdwg.mxu0
  %v2807 = vmax.f32 %v2769, 0.0
  %v2808 = vmax.f32 %v2774, 0.0
  %v2809 = vmax.f32 %v2779, 0.0
  %v2810 = vmax.f32 %v2784, 0.0
  %v2811 = vmax.f32 %v2789, 0.0
  %v2812 = vmax.f32 %v2794, 0.0
  %v2813 = vmax.f32 %v2799, 0.0
  %v2814 = vmax.f32 %v2804, 0.0
  %v2816 = vsel %vm632, %v2807, 0
  %v2819 = vsel %vm632, %v2808, 0
  %v2822 = vsel %vm632, %v2809, 0
  %v2825 = vsel %vm632, %v2810, 0
  %v2828 = vsel %vm632, %v2811, 0
  %v2831 = vsel %vm632, %v2812, 0
  %v2834 = vsel %vm632, %v2813, 0
  %v2837 = vsel %vm632, %v2814, 0
  %2839 = vmatprep.subr.mxu0 0.0
  %2840 = vmatpush1.msra.mxu0 0.0
  %2841 = vmatprep.subr.mxu0 0.0
  %2842 = vmatpush1.msra.mxu0 0.0
  %2843 = vmatprep.subr.mxu0 0.0
  %2844 = vmatpush1.msra.mxu0 0.0
  %2845 = vmatprep.subr.mxu0 0.0
  %2846 = vmatpush1.msra.mxu0 0.0
  %2847 = vmatprep.subr.mxu0 0.0
  %2848 = vmatpush1.msra.mxu0 0.0
  %2849 = vmatprep.subr.mxu0 0.0
  %2850 = vmatpush1.msra.mxu0 0.0
  %2851 = vmatprep.subr.mxu0 0.0
  %2852 = vmatpush1.msra.mxu0 0.0
  %2853 = vmatprep.subr.mxu0 0.0
  %2854 = vmatpush1.msra.mxu0 0.0
  %2855 = vmatprep.subr.mxu0 0.0
  %2856 = vmatpush1.msra.mxu0 0.0
  %2857 = vmatprep.subr.mxu0 0.0
  %2858 = vmatpush1.msra.mxu0 0.0
  %2859 = vmatprep.subr.mxu0 0.0
  %2860 = vmatpush1.msra.mxu0 0.0
  %2861 = vmatprep.subr.mxu0 0.0
  %2862 = vmatpush1.msra.mxu0 0.0
  %2863 = vmatprep.subr.mxu0 0.0
  %2864 = vmatpush1.msra.mxu0 %v465
  %2865 = vmatprep.subr.mxu0 0.0
  %2866 = vmatpush1.msra.mxu0 %v464
  %2867 = vmatprep.subr.mxu0 0.0
  %2868 = vmatpush1.msra.mxu0 %v463
  %2869 = vmatprep.subr.mxu0 0.0
  %2870 = vmatpush1.msra.mxu0 %v462
  %2871 = vmatprep.subr.mxu0 0.0
  %2872 = vmatpush2.msra.mxu0 0.0
  %2873 = vmatprep.subr.mxu0 0.0
  %2874 = vmatpush2.msra.mxu0 0.0
  %2875 = vmatprep.subr.mxu0 0.0
  %2876 = vmatpush2.msra.mxu0 0.0
  %2877 = vmatprep.subr.mxu0 0.0
  %2878 = vmatpush2.msra.mxu0 0.0
  %2879 = vmatprep.subr.mxu0 0.0
  %2880 = vmatpush2.msra.mxu0 0.0
  %2881 = vmatprep.subr.mxu0 0.0
  %2882 = vmatpush2.msra.mxu0 0.0
  %2883 = vmatprep.subr.mxu0 0.0
  %2884 = vmatpush2.msra.mxu0 0.0
  %2885 = vmatprep.subr.mxu0 0.0
  %2886 = vmatpush2.msra.mxu0 0.0
  %2887 = vmatprep.subr.mxu0 0.0
  %2888 = vmatpush2.msra.mxu0 0.0
  %2889 = vmatprep.subr.mxu0 0.0
  %2890 = vmatpush2.msra.mxu0 0.0
  %2891 = vmatprep.subr.mxu0 0.0
  %2892 = vmatpush2.msra.mxu0 0.0
  %2893 = vmatprep.subr.mxu0 0.0
  %2894 = vmatpush2.msra.mxu0 0.0
  %2895 = vmatprep.subr.mxu0 0.0
  %2896 = vmatpush2.msra.mxu0 0.0
  %2897 = vmatprep.subr.mxu0 0.0
  %2898 = vmatpush2.msra.mxu0 0.0
  %2899 = vmatprep.subr.mxu0 0.0
  %2900 = vmatpush2.msra.mxu0 0.0
  %2901 = vmatprep.subr.mxu0 0.0
  %2902 = vmatpush2.msra.mxu0 0.0
  %2903 = vmatprep.mubr.f32.mxu0 0.0
  %2904 = vmatmul.mubr.f32.gmra.mxu0 %v2816
  %v2905 = vpop.f32.mrf.mxu0
  %v2906 = vadd.f32 %v485, %v2905
  %v2907 = vpop.f32.mrf.mxu0
  %2908 = vmatprep.mubr.f32.mxu0 0.0
  %2909 = vmatmul.mubr.f32.gmra.mxu0 %v2819
  %v2910 = vpop.f32.mrf.mxu0
  %v2911 = vadd.f32 %v485, %v2910
  %v2912 = vpop.f32.mrf.mxu0
  %2913 = vmatprep.mubr.f32.mxu0 0.0
  %2914 = vmatmul.mubr.f32.gmra.mxu0 %v2822
  %v2915 = vpop.f32.mrf.mxu0
  %v2916 = vadd.f32 %v485, %v2915
  %v2917 = vpop.f32.mrf.mxu0
  %2918 = vmatprep.mubr.f32.mxu0 0.0
  %2919 = vmatmul.mubr.f32.gmra.mxu0 %v2825
  %v2920 = vpop.f32.mrf.mxu0
  %v2921 = vadd.f32 %v485, %v2920
  %v2922 = vpop.f32.mrf.mxu0
  %2923 = vmatprep.mubr.f32.mxu0 0.0
  %2924 = vmatmul.mubr.f32.gmra.mxu0 %v2828
  %v2925 = vpop.f32.mrf.mxu0
  %v2926 = vadd.f32 %v485, %v2925
  %v2927 = vpop.f32.mrf.mxu0
  %2928 = vmatprep.mubr.f32.mxu0 0.0
  %2929 = vmatmul.mubr.f32.gmra.mxu0 %v2831
  %v2930 = vpop.f32.mrf.mxu0
  %v2931 = vadd.f32 %v485, %v2930
  %v2932 = vpop.f32.mrf.mxu0
  %2933 = vmatprep.mubr.f32.mxu0 0.0
  %2934 = vmatmul.mubr.f32.gmra.mxu0 %v2834
  %v2935 = vpop.f32.mrf.mxu0
  %v2936 = vadd.f32 %v485, %v2935
  %v2937 = vpop.f32.mrf.mxu0
  %2938 = vmatprep.mubr.f32.mxu0 0.0
  %2939 = vmatmul.mubr.f32.gmra.mxu0 %v2837
  %v2940 = vpop.f32.mrf.mxu0
  %v2941 = vadd.f32 %v485, %v2940
  %v2942 = vpop.f32.mrf.mxu0
  %2943 = vdwg.mxu0
  %v2944 = vmax.f32 %v2906, 0.0
  %v2945 = vmax.f32 %v2911, 0.0
  %v2946 = vmax.f32 %v2916, 0.0
  %v2947 = vmax.f32 %v2921, 0.0
  %v2948 = vmax.f32 %v2926, 0.0
  %v2949 = vmax.f32 %v2931, 0.0
  %v2950 = vmax.f32 %v2936, 0.0
  %v2951 = vmax.f32 %v2941, 0.0
  %v2953 = vsel %vm632, %v2944, 0
  %v2956 = vsel %vm632, %v2945, 0
  %v2959 = vsel %vm632, %v2946, 0
  %v2962 = vsel %vm632, %v2947, 0
  %v2965 = vsel %vm632, %v2948, 0
  %v2968 = vsel %vm632, %v2949, 0
  %v2971 = vsel %vm632, %v2950, 0
  %v2974 = vsel %vm632, %v2951, 0
  %2976 = vmatprep.subr.mxu0 0.0
  %2977 = vmatpush1.msra.mxu0 0.0
  %2978 = vmatprep.subr.mxu0 0.0
  %2979 = vmatpush1.msra.mxu0 0.0
  %2980 = vmatprep.subr.mxu0 0.0
  %2981 = vmatpush1.msra.mxu0 0.0
  %2982 = vmatprep.subr.mxu0 0.0
  %2983 = vmatpush1.msra.mxu0 0.0
  %2984 = vmatprep.subr.mxu0 0.0
  %2985 = vmatpush1.msra.mxu0 0.0
  %2986 = vmatprep.subr.mxu0 0.0
  %2987 = vmatpush1.msra.mxu0 0.0
  %2988 = vmatprep.subr.mxu0 0.0
  %2989 = vmatpush1.msra.mxu0 0.0
  %2990 = vmatprep.subr.mxu0 0.0
  %2991 = vmatpush1.msra.mxu0 0.0
  %2992 = vmatprep.subr.mxu0 0.0
  %2993 = vmatpush1.msra.mxu0 0.0
  %2994 = vmatprep.subr.mxu0 0.0
  %2995 = vmatpush1.msra.mxu0 0.0
  %2996 = vmatprep.subr.mxu0 0.0
  %2997 = vmatpush1.msra.mxu0 0.0
  %2998 = vmatprep.subr.mxu0 0.0
  %2999 = vmatpush1.msra.mxu0 0.0
  %3000 = vmatprep.subr.mxu0 0.0
  %3001 = vmatpush1.msra.mxu0 %v918
  %3002 = vmatprep.subr.mxu0 0.0
  %3003 = vmatpush1.msra.mxu0 %v916
  %3004 = vmatprep.subr.mxu0 0.0
  %3005 = vmatpush1.msra.mxu0 %v914
  %3006 = vmatprep.subr.mxu0 0.0
  %3007 = vmatpush1.msra.mxu0 %v912
  %3008 = vmatprep.subr.mxu0 0.0
  %3009 = vmatpush2.msra.mxu0 0.0
  %3010 = vmatprep.subr.mxu0 0.0
  %3011 = vmatpush2.msra.mxu0 0.0
  %3012 = vmatprep.subr.mxu0 0.0
  %3013 = vmatpush2.msra.mxu0 0.0
  %3014 = vmatprep.subr.mxu0 0.0
  %3015 = vmatpush2.msra.mxu0 0.0
  %3016 = vmatprep.subr.mxu0 0.0
  %3017 = vmatpush2.msra.mxu0 0.0
  %3018 = vmatprep.subr.mxu0 0.0
  %3019 = vmatpush2.msra.mxu0 0.0
  %3020 = vmatprep.subr.mxu0 0.0
  %3021 = vmatpush2.msra.mxu0 0.0
  %3022 = vmatprep.subr.mxu0 0.0
  %3023 = vmatpush2.msra.mxu0 0.0
  %3024 = vmatprep.subr.mxu0 0.0
  %3025 = vmatpush2.msra.mxu0 0.0
  %3026 = vmatprep.subr.mxu0 0.0
  %3027 = vmatpush2.msra.mxu0 0.0
  %3028 = vmatprep.subr.mxu0 0.0
  %3029 = vmatpush2.msra.mxu0 0.0
  %3030 = vmatprep.subr.mxu0 0.0
  %3031 = vmatpush2.msra.mxu0 0.0
  %3032 = vmatprep.subr.mxu0 0.0
  %3033 = vmatpush2.msra.mxu0 0.0
  %3034 = vmatprep.subr.mxu0 0.0
  %3035 = vmatpush2.msra.mxu0 0.0
  %3036 = vmatprep.subr.mxu0 0.0
  %3037 = vmatpush2.msra.mxu0 0.0
  %3038 = vmatprep.subr.mxu0 0.0
  %3039 = vmatpush2.msra.mxu0 0.0
  %3040 = vmatprep.mubr.f32.mxu0 0.0
  %3041 = vmatmul.mubr.f32.gmra.mxu0 %v2953
  %v3042 = vpop.f32.mrf.mxu0
  %v3043 = vadd.f32 %v489, %v3042
  %v3044 = vpop.f32.mrf.mxu0
  %3045 = vmatprep.mubr.f32.mxu0 0.0
  %3046 = vmatmul.mubr.f32.gmra.mxu0 %v2956
  %v3047 = vpop.f32.mrf.mxu0
  %v3048 = vadd.f32 %v489, %v3047
  %v3049 = vpop.f32.mrf.mxu0
  %3050 = vmatprep.mubr.f32.mxu0 0.0
  %3051 = vmatmul.mubr.f32.gmra.mxu0 %v2959
  %v3052 = vpop.f32.mrf.mxu0
  %v3053 = vadd.f32 %v489, %v3052
  %v3054 = vpop.f32.mrf.mxu0
  %3055 = vmatprep.mubr.f32.mxu0 0.0
  %3056 = vmatmul.mubr.f32.gmra.mxu0 %v2962
  %v3057 = vpop.f32.mrf.mxu0
  %v3058 = vadd.f32 %v489, %v3057
  %v3059 = vpop.f32.mrf.mxu0
  %3060 = vmatprep.mubr.f32.mxu0 0.0
  %3061 = vmatmul.mubr.f32.gmra.mxu0 %v2965
  %v3062 = vpop.f32.mrf.mxu0
  %v3063 = vadd.f32 %v489, %v3062
  %v3064 = vpop.f32.mrf.mxu0
  %3065 = vmatprep.mubr.f32.mxu0 0.0
  %3066 = vmatmul.mubr.f32.gmra.mxu0 %v2968
  %v3067 = vpop.f32.mrf.mxu0
  %v3068 = vadd.f32 %v489, %v3067
  %v3069 = vpop.f32.mrf.mxu0
  %3070 = vmatprep.mubr.f32.mxu0 0.0
  %3071 = vmatmul.mubr.f32.gmra.mxu0 %v2971
  %v3072 = vpop.f32.mrf.mxu0
  %v3073 = vadd.f32 %v489, %v3072
  %v3074 = vpop.f32.mrf.mxu0
  %3075 = vmatprep.mubr.f32.mxu0 0.0
  %3076 = vmatmul.mubr.f32.gmra.mxu0 %v2974
  %v3077 = vpop.f32.mrf.mxu0
  %v3078 = vadd.f32 %v489, %v3077
  %v3079 = vpop.f32.mrf.mxu0
  %3080 = vdwg.mxu0
  %3081 = vmatprep.subr.mxu0 0.0
  %3082 = vmatpush1.msra.mxu0 0.0
  %3083 = vmatprep.subr.mxu0 0.0
  %3084 = vmatpush1.msra.mxu0 0.0
  %3085 = vmatprep.subr.mxu0 0.0
  %3086 = vmatpush1.msra.mxu0 0.0
  %3087 = vmatprep.subr.mxu0 0.0
  %3088 = vmatpush1.msra.mxu0 0.0
  %3089 = vmatprep.subr.mxu0 0.0
  %3090 = vmatpush1.msra.mxu0 0.0
  %3091 = vmatprep.subr.mxu0 0.0
  %3092 = vmatpush1.msra.mxu0 0.0
  %3093 = vmatprep.subr.mxu0 0.0
  %3094 = vmatpush1.msra.mxu0 0.0
  %3095 = vmatprep.subr.mxu0 0.0
  %3096 = vmatpush1.msra.mxu0 0.0
  %3097 = vmatprep.subr.mxu0 0.0
  %3098 = vmatpush1.msra.mxu0 0.0
  %3099 = vmatprep.subr.mxu0 0.0
  %3100 = vmatpush1.msra.mxu0 0.0
  %3101 = vmatprep.subr.mxu0 0.0
  %3102 = vmatpush1.msra.mxu0 0.0
  %3103 = vmatprep.subr.mxu0 0.0
  %3104 = vmatpush1.msra.mxu0 0.0
  %3105 = vmatprep.subr.mxu0 0.0
  %3106 = vmatpush1.msra.mxu0 %v1063
  %3107 = vmatprep.subr.mxu0 0.0
  %3108 = vmatpush1.msra.mxu0 %v1061
  %3109 = vmatprep.subr.mxu0 0.0
  %3110 = vmatpush1.msra.mxu0 %v1059
  %3111 = vmatprep.subr.mxu0 0.0
  %3112 = vmatpush1.msra.mxu0 %v1057
  %3113 = vmatprep.subr.mxu0 0.0
  %3114 = vmatpush2.msra.mxu0 0.0
  %3115 = vmatprep.subr.mxu0 0.0
  %3116 = vmatpush2.msra.mxu0 0.0
  %3117 = vmatprep.subr.mxu0 0.0
  %3118 = vmatpush2.msra.mxu0 0.0
  %3119 = vmatprep.subr.mxu0 0.0
  %3120 = vmatpush2.msra.mxu0 0.0
  %3121 = vmatprep.subr.mxu0 0.0
  %3122 = vmatpush2.msra.mxu0 0.0
  %3123 = vmatprep.subr.mxu0 0.0
  %3124 = vmatpush2.msra.mxu0 0.0
  %3125 = vmatprep.subr.mxu0 0.0
  %3126 = vmatpush2.msra.mxu0 0.0
  %3127 = vmatprep.subr.mxu0 0.0
  %3128 = vmatpush2.msra.mxu0 0.0
  %3129 = vmatprep.subr.mxu0 0.0
  %3130 = vmatpush2.msra.mxu0 0.0
  %3131 = vmatprep.subr.mxu0 0.0
  %3132 = vmatpush2.msra.mxu0 0.0
  %3133 = vmatprep.subr.mxu0 0.0
  %3134 = vmatpush2.msra.mxu0 0.0
  %3135 = vmatprep.subr.mxu0 0.0
  %3136 = vmatpush2.msra.mxu0 0.0
  %3137 = vmatprep.subr.mxu0 0.0
  %3138 = vmatpush2.msra.mxu0 0.0
  %3139 = vmatprep.subr.mxu0 0.0
  %3140 = vmatpush2.msra.mxu0 0.0
  %3141 = vmatprep.subr.mxu0 0.0
  %3142 = vmatpush2.msra.mxu0 0.0
  %3143 = vmatprep.subr.mxu0 0.0
  %3144 = vmatpush2.msra.mxu0 0.0
  %3145 = vmatprep.mubr.f32.mxu0 0.0
  %3146 = vmatmul.mubr.f32.gmra.mxu0 %v2339
  %v3147 = vpop.f32.mrf.mxu0
  %v3148 = vadd.f32 %v493, %v3147
  %v3149 = vpop.f32.mrf.mxu0
  %3150 = vmatprep.mubr.f32.mxu0 0.0
  %3151 = vmatmul.mubr.f32.gmra.mxu0 %v2341
  %v3152 = vpop.f32.mrf.mxu0
  %v3153 = vadd.f32 %v493, %v3152
  %v3154 = vpop.f32.mrf.mxu0
  %3155 = vmatprep.mubr.f32.mxu0 0.0
  %3156 = vmatmul.mubr.f32.gmra.mxu0 %v2343
  %v3157 = vpop.f32.mrf.mxu0
  %v3158 = vadd.f32 %v493, %v3157
  %v3159 = vpop.f32.mrf.mxu0
  %3160 = vmatprep.mubr.f32.mxu0 0.0
  %3161 = vmatmul.mubr.f32.gmra.mxu0 %v2345
  %v3162 = vpop.f32.mrf.mxu0
  %v3163 = vadd.f32 %v493, %v3162
  %v3164 = vpop.f32.mrf.mxu0
  %3165 = vmatprep.mubr.f32.mxu0 0.0
  %3166 = vmatmul.mubr.f32.gmra.mxu0 %v2347
  %v3167 = vpop.f32.mrf.mxu0
  %v3168 = vadd.f32 %v493, %v3167
  %v3169 = vpop.f32.mrf.mxu0
  %3170 = vmatprep.mubr.f32.mxu0 0.0
  %3171 = vmatmul.mubr.f32.gmra.mxu0 %v2349
  %v3172 = vpop.f32.mrf.mxu0
  %v3173 = vadd.f32 %v493, %v3172
  %v3174 = vpop.f32.mrf.mxu0
  %3175 = vmatprep.mubr.f32.mxu0 0.0
  %3176 = vmatmul.mubr.f32.gmra.mxu0 %v2351
  %v3177 = vpop.f32.mrf.mxu0
  %v3178 = vadd.f32 %v493, %v3177
  %v3179 = vpop.f32.mrf.mxu0
  %3180 = vmatprep.mubr.f32.mxu0 0.0
  %3181 = vmatmul.mubr.f32.gmra.mxu0 %v2353
  %v3182 = vpop.f32.mrf.mxu0
  %v3183 = vadd.f32 %v493, %v3182
  %v3184 = vpop.f32.mrf.mxu0
  %3185 = vdwg.mxu0
  %v3186 = vadd.f32 %v3043, %v3148
  %v3187 = vadd.f32 %v3048, %v3153
  %v3188 = vadd.f32 %v3053, %v3158
  %v3189 = vadd.f32 %v3058, %v3163
  %v3190 = vadd.f32 %v3063, %v3168
  %v3191 = vadd.f32 %v3068, %v3173
  %v3192 = vadd.f32 %v3073, %v3178
  %v3193 = vadd.f32 %v3078, %v3183
  %v3194 = vxor.u32 %v3186, 2147483648
  %v3195 = vxor.u32 %v3187, 2147483648
  %v3196 = vxor.u32 %v3188, 2147483648
  %v3197 = vxor.u32 %v3189, 2147483648
  %v3198 = vxor.u32 %v3190, 2147483648
  %v3199 = vxor.u32 %v3191, 2147483648
  %v3200 = vxor.u32 %v3192, 2147483648
  %v3201 = vxor.u32 %v3193, 2147483648
  %v3202 = vmul.f32 %v3194, 1.442695
  %v3203 = vpow.pop %v3202
  %v3204 = vmul.f32 %v3195, 1.442695
  %v3205 = vpow.pop %v3204
  %v3206 = vmul.f32 %v3196, 1.442695
  %v3207 = vpow.pop %v3206
  %v3208 = vmul.f32 %v3197, 1.442695
  %v3209 = vpow.pop %v3208
  %v3210 = vmul.f32 %v3198, 1.442695
  %v3211 = vpow.pop %v3210
  %v3212 = vmul.f32 %v3199, 1.442695
  %v3213 = vpow.pop %v3212
  %v3214 = vmul.f32 %v3200, 1.442695
  %v3215 = vpow.pop %v3214
  %v3216 = vmul.f32 %v3201, 1.442695
  %v3217 = vpow.pop %v3216
  %v3218 = vadd.f32 %v3203, 1.0
  %v3219 = vadd.f32 %v3205, 1.0
  %v3220 = vadd.f32 %v3207, 1.0
  %v3221 = vadd.f32 %v3209, 1.0
  %v3222 = vadd.f32 %v3211, 1.0
  %v3223 = vadd.f32 %v3213, 1.0
  %v3224 = vadd.f32 %v3215, 1.0
  %v3225 = vadd.f32 %v3217, 1.0
  %v3226 = vrcp.pop %v3218
  %v3227 = vmul.f32 1.0, %v3226
  %v3228 = vrcp.pop %v3219
  %v3229 = vmul.f32 1.0, %v3228
  %v3230 = vrcp.pop %v3220
  %v3231 = vmul.f32 1.0, %v3230
  %v3232 = vrcp.pop %v3221
  %v3233 = vmul.f32 1.0, %v3232
  %v3234 = vrcp.pop %v3222
  %v3235 = vmul.f32 1.0, %v3234
  %v3236 = vrcp.pop %v3223
  %v3237 = vmul.f32 1.0, %v3236
  %v3238 = vrcp.pop %v3224
  %v3239 = vmul.f32 1.0, %v3238
  %v3240 = vrcp.pop %v3225
  %v3241 = vmul.f32 1.0, %v3240
  %3250 = vrot.lane.b32.xlu0 %v3148, 64
  %v3251 = vpop.permute.xlu0 %3250
  %3252 = vrot.lane.b32.xlu0 %v3153, 64
  %v3253 = vpop.permute.xlu0 %3252
  %3254 = vrot.lane.b32.xlu0 %v3158, 64
  %v3255 = vpop.permute.xlu0 %3254
  %3256 = vrot.lane.b32.xlu0 %v3163, 64
  %v3257 = vpop.permute.xlu0 %3256
  %3258 = vrot.lane.b32.xlu0 %v3168, 64
  %v3259 = vpop.permute.xlu0 %3258
  %3260 = vrot.lane.b32.xlu0 %v3173, 64
  %v3261 = vpop.permute.xlu0 %3260
  %3262 = vrot.lane.b32.xlu0 %v3178, 64
  %v3263 = vpop.permute.xlu0 %3262
  %3264 = vrot.lane.b32.xlu0 %v3183, 64
  %v3265 = vpop.permute.xlu0 %3264
  %v3274 = vmul.f32 %v3227, %v3251
  %v3275 = vmul.f32 %v3229, %v3253
  %v3276 = vmul.f32 %v3231, %v3255
  %v3277 = vmul.f32 %v3233, %v3257
  %v3278 = vmul.f32 %v3235, %v3259
  %v3279 = vmul.f32 %v3237, %v3261
  %v3280 = vmul.f32 %v3239, %v3263
  %v3281 = vmul.f32 %v3241, %v3265
  %3290 = vrot.lane.b32.xlu0 %v3274, 64
  %v3291 = vpop.permute.xlu0 %3290
  %3292 = vrot.lane.b32.xlu0 %v3275, 64
  %v3293 = vpop.permute.xlu0 %3292
  %3294 = vrot.lane.b32.xlu0 %v3276, 64
  %v3295 = vpop.permute.xlu0 %3294
  %3296 = vrot.lane.b32.xlu0 %v3277, 64
  %v3297 = vpop.permute.xlu0 %3296
  %3298 = vrot.lane.b32.xlu0 %v3278, 64
  %v3299 = vpop.permute.xlu0 %3298
  %3300 = vrot.lane.b32.xlu0 %v3279, 64
  %v3301 = vpop.permute.xlu0 %3300
  %3302 = vrot.lane.b32.xlu0 %v3280, 64
  %v3303 = vpop.permute.xlu0 %3302
  %3304 = vrot.lane.b32.xlu0 %v3281, 64
  %v3305 = vpop.permute.xlu0 %3304
  %v3314 = vadd.f32 %v3043, %v3291
  %v3315 = vadd.f32 %v3048, %v3293
  %v3316 = vadd.f32 %v3053, %v3295
  %v3317 = vadd.f32 %v3058, %v3297
  %v3318 = vadd.f32 %v3063, %v3299
  %v3319 = vadd.f32 %v3068, %v3301
  %v3320 = vadd.f32 %v3073, %v3303
  %v3321 = vadd.f32 %v3078, %v3305
  %v3322 = vtanh.pop %v3314
  %v3323 = vtanh.pop %v3315
  %v3324 = vtanh.pop %v3316
  %v3325 = vtanh.pop %v3317
  %v3326 = vtanh.pop %v3318
  %v3327 = vtanh.pop %v3319
  %v3328 = vtanh.pop %v3320
  %v3329 = vtanh.pop %v3321
  %v3330 = vsub.f32 1.0, %v3227
  %v3331 = vsub.f32 1.0, %v3229
  %v3332 = vsub.f32 1.0, %v3231
  %v3333 = vsub.f32 1.0, %v3233
  %v3334 = vsub.f32 1.0, %v3235
  %v3335 = vsub.f32 1.0, %v3237
  %v3336 = vsub.f32 1.0, %v3239
  %v3337 = vsub.f32 1.0, %v3241
  %3346 = vrot.lane.b32.xlu0 %v3322, 96
  %v3347 = vpop.permute.xlu0 %3346
  %3348 = vrot.lane.b32.xlu0 %v3323, 96
  %v3349 = vpop.permute.xlu0 %3348
  %3350 = vrot.lane.b32.xlu0 %v3324, 96
  %v3351 = vpop.permute.xlu0 %3350
  %3352 = vrot.lane.b32.xlu0 %v3325, 96
  %v3353 = vpop.permute.xlu0 %3352
  %3354 = vrot.lane.b32.xlu0 %v3326, 96
  %v3355 = vpop.permute.xlu0 %3354
  %3356 = vrot.lane.b32.xlu0 %v3327, 96
  %v3357 = vpop.permute.xlu0 %3356
  %3358 = vrot.lane.b32.xlu0 %v3328, 96
  %v3359 = vpop.permute.xlu0 %3358
  %3360 = vrot.lane.b32.xlu0 %v3329, 96
  %v3361 = vpop.permute.xlu0 %3360
  %v3370 = vmul.f32 %v3330, %v3347
  %v3371 = vmul.f32 %v3331, %v3349
  %v3372 = vmul.f32 %v3332, %v3351
  %v3373 = vmul.f32 %v3333, %v3353
  %v3374 = vmul.f32 %v3334, %v3355
  %v3375 = vmul.f32 %v3335, %v3357
  %v3376 = vmul.f32 %v3336, %v3359
  %v3377 = vmul.f32 %v3337, %v3361
  %v3378 = vmul.f32 %v3227, %v2298
  %v3379 = vmul.f32 %v3229, %v2299
  %v3380 = vmul.f32 %v3231, %v2300
  %v3381 = vmul.f32 %v3233, %v2301
  %v3382 = vmul.f32 %v3235, %v2302
  %v3383 = vmul.f32 %v3237, %v2303
  %v3384 = vmul.f32 %v3239, %v2304
  %v3385 = vmul.f32 %v3241, %v2305
  %v3386 = vadd.f32 %v3370, %v3378
  %v3387 = vadd.f32 %v3371, %v3379
  %v3388 = vadd.f32 %v3372, %v3380
  %v3389 = vadd.f32 %v3373, %v3381
  %v3390 = vadd.f32 %v3374, %v3382
  %v3391 = vadd.f32 %v3375, %v3383
  %v3392 = vadd.f32 %v3376, %v3384
  %v3393 = vadd.f32 %v3377, %v3385
  %3402 = vrot.lane.b32.xlu0 %v3386, 32
  %v3403 = vpop.permute.xlu0 %3402
  %3404 = vrot.lane.b32.xlu0 %v3387, 32
  %v3405 = vpop.permute.xlu0 %3404
  %3406 = vrot.lane.b32.xlu0 %v3388, 32
  %v3407 = vpop.permute.xlu0 %3406
  %3408 = vrot.lane.b32.xlu0 %v3389, 32
  %v3409 = vpop.permute.xlu0 %3408
  %3410 = vrot.lane.b32.xlu0 %v3390, 32
  %v3411 = vpop.permute.xlu0 %3410
  %3412 = vrot.lane.b32.xlu0 %v3391, 32
  %v3413 = vpop.permute.xlu0 %3412
  %3414 = vrot.lane.b32.xlu0 %v3392, 32
  %v3415 = vpop.permute.xlu0 %3414
  %3416 = vrot.lane.b32.xlu0 %v3393, 32
  %v3417 = vpop.permute.xlu0 %3416
  %vm3426 = vcmask 785920
  %3427 = vst.msk [vmem:[%s6] sm:$0xff] %vm3426, %v3403
  %3428 = vst.msk [vmem:[%s6 + $0x8] sm:$0xff] %vm3426, %v3405
  %3429 = vst.msk [vmem:[%s6 + $0x10] sm:$0xff] %vm3426, %v3407
  %3430 = vst.msk [vmem:[%s6 + $0x18] sm:$0xff] %vm3426, %v3409
  %3431 = vst.msk [vmem:[%s6 + $0x20] sm:$0xff] %vm3426, %v3411
  %3432 = vst.msk [vmem:[%s6 + $0x28] sm:$0xff] %vm3426, %v3413
  %3433 = vst.msk [vmem:[%s6 + $0x30] sm:$0xff] %vm3426, %v3415
  %3434 = vst.msk [vmem:[%s6 + $0x38] sm:$0xff] %vm3426, %v3417
  %3435 = vrot.lane.b32.xlu0 %v3386, 96
  %v3436 = vpop.permute.xlu0 %3435
  %3437 = vrot.lane.b32.xlu0 %v3387, 96
  %v3438 = vpop.permute.xlu0 %3437
  %3439 = vrot.lane.b32.xlu0 %v3388, 96
  %v3440 = vpop.permute.xlu0 %3439
  %3441 = vrot.lane.b32.xlu0 %v3389, 96
  %v3442 = vpop.permute.xlu0 %3441
  %3443 = vrot.lane.b32.xlu0 %v3390, 96
  %v3444 = vpop.permute.xlu0 %3443
  %3445 = vrot.lane.b32.xlu0 %v3391, 96
  %v3446 = vpop.permute.xlu0 %3445
  %3447 = vrot.lane.b32.xlu0 %v3392, 96
  %v3448 = vpop.permute.xlu0 %3447
  %3449 = vrot.lane.b32.xlu0 %v3393, 96
  %v3450 = vpop.permute.xlu0 %3449
  %v3451 = vsel %vm632, %v3436, 0
  %v3453 = vsel %vm632, %v3438, 0
  %v3455 = vsel %vm632, %v3440, 0
  %v3457 = vsel %vm632, %v3442, 0
  %v3459 = vsel %vm632, %v3444, 0
  %v3461 = vsel %vm632, %v3446, 0
  %v3463 = vsel %vm632, %v3448, 0
  %v3465 = vsel %vm632, %v3450, 0
  %3467 = vmatprep.subr.mxu0 0.0
  %3468 = vmatpush1.msra.mxu0 0.0
  %3469 = vmatprep.subr.mxu0 0.0
  %3470 = vmatpush1.msra.mxu0 0.0
  %3471 = vmatprep.subr.mxu0 0.0
  %3472 = vmatpush1.msra.mxu0 0.0
  %3473 = vmatprep.subr.mxu0 0.0
  %3474 = vmatpush1.msra.mxu0 0.0
  %3475 = vmatprep.subr.mxu0 0.0
  %3476 = vmatpush1.msra.mxu0 0.0
  %3477 = vmatprep.subr.mxu0 0.0
  %3478 = vmatpush1.msra.mxu0 0.0
  %3479 = vmatprep.subr.mxu0 0.0
  %3480 = vmatpush1.msra.mxu0 0.0
  %3481 = vmatprep.subr.mxu0 0.0
  %3482 = vmatpush1.msra.mxu0 0.0
  %3483 = vmatprep.subr.mxu0 0.0
  %3484 = vmatpush1.msra.mxu0 0.0
  %3485 = vmatprep.subr.mxu0 0.0
  %3486 = vmatpush1.msra.mxu0 0.0
  %3487 = vmatprep.subr.mxu0 0.0
  %3488 = vmatpush1.msra.mxu0 0.0
  %3489 = vmatprep.subr.mxu0 0.0
  %3490 = vmatpush1.msra.mxu0 0.0
  %3491 = vmatprep.subr.mxu0 0.0
  %3492 = vmatpush1.msra.mxu0 %v477
  %3493 = vmatprep.subr.mxu0 0.0
  %3494 = vmatpush1.msra.mxu0 %v476
  %3495 = vmatprep.subr.mxu0 0.0
  %3496 = vmatpush1.msra.mxu0 %v475
  %3497 = vmatprep.subr.mxu0 0.0
  %3498 = vmatpush1.msra.mxu0 %v474
  %3499 = vmatprep.subr.mxu0 0.0
  %3500 = vmatpush2.msra.mxu0 0.0
  %3501 = vmatprep.subr.mxu0 0.0
  %3502 = vmatpush2.msra.mxu0 0.0
  %3503 = vmatprep.subr.mxu0 0.0
  %3504 = vmatpush2.msra.mxu0 0.0
  %3505 = vmatprep.subr.mxu0 0.0
  %3506 = vmatpush2.msra.mxu0 0.0
  %3507 = vmatprep.subr.mxu0 0.0
  %3508 = vmatpush2.msra.mxu0 0.0
  %3509 = vmatprep.subr.mxu0 0.0
  %3510 = vmatpush2.msra.mxu0 0.0
  %3511 = vmatprep.subr.mxu0 0.0
  %3512 = vmatpush2.msra.mxu0 0.0
  %3513 = vmatprep.subr.mxu0 0.0
  %3514 = vmatpush2.msra.mxu0 0.0
  %3515 = vmatprep.subr.mxu0 0.0
  %3516 = vmatpush2.msra.mxu0 0.0
  %3517 = vmatprep.subr.mxu0 0.0
  %3518 = vmatpush2.msra.mxu0 0.0
  %3519 = vmatprep.subr.mxu0 0.0
  %3520 = vmatpush2.msra.mxu0 0.0
  %3521 = vmatprep.subr.mxu0 0.0
  %3522 = vmatpush2.msra.mxu0 0.0
  %3523 = vmatprep.subr.mxu0 0.0
  %3524 = vmatpush2.msra.mxu0 0.0
  %3525 = vmatprep.subr.mxu0 0.0
  %3526 = vmatpush2.msra.mxu0 0.0
  %3527 = vmatprep.subr.mxu0 0.0
  %3528 = vmatpush2.msra.mxu0 0.0
  %3529 = vmatprep.subr.mxu0 0.0
  %3530 = vmatpush2.msra.mxu0 0.0
  %3531 = vmatprep.mubr.f32.mxu0 0.0
  %3532 = vmatmul.mubr.f32.gmra.mxu0 %v3451
  %v3533 = vpop.f32.mrf.mxu0
  %v3534 = vadd.f32 0.0, %v3533
  %v3535 = vpop.f32.mrf.mxu0
  %3536 = vmatprep.mubr.f32.mxu0 0.0
  %3537 = vmatmul.mubr.f32.gmra.mxu0 %v3453
  %v3538 = vpop.f32.mrf.mxu0
  %v3539 = vadd.f32 0.0, %v3538
  %v3540 = vpop.f32.mrf.mxu0
  %3541 = vmatprep.mubr.f32.mxu0 0.0
  %3542 = vmatmul.mubr.f32.gmra.mxu0 %v3455
  %v3543 = vpop.f32.mrf.mxu0
  %v3544 = vadd.f32 0.0, %v3543
  %v3545 = vpop.f32.mrf.mxu0
  %3546 = vmatprep.mubr.f32.mxu0 0.0
  %3547 = vmatmul.mubr.f32.gmra.mxu0 %v3457
  %v3548 = vpop.f32.mrf.mxu0
  %v3549 = vadd.f32 0.0, %v3548
  %v3550 = vpop.f32.mrf.mxu0
  %3551 = vmatprep.mubr.f32.mxu0 0.0
  %3552 = vmatmul.mubr.f32.gmra.mxu0 %v3459
  %v3553 = vpop.f32.mrf.mxu0
  %v3554 = vadd.f32 0.0, %v3553
  %v3555 = vpop.f32.mrf.mxu0
  %3556 = vmatprep.mubr.f32.mxu0 0.0
  %3557 = vmatmul.mubr.f32.gmra.mxu0 %v3461
  %v3558 = vpop.f32.mrf.mxu0
  %v3559 = vadd.f32 0.0, %v3558
  %v3560 = vpop.f32.mrf.mxu0
  %3561 = vmatprep.mubr.f32.mxu0 0.0
  %3562 = vmatmul.mubr.f32.gmra.mxu0 %v3463
  %v3563 = vpop.f32.mrf.mxu0
  %v3564 = vadd.f32 0.0, %v3563
  %v3565 = vpop.f32.mrf.mxu0
  %3566 = vmatprep.mubr.f32.mxu0 0.0
  %3567 = vmatmul.mubr.f32.gmra.mxu0 %v3465
  %v3568 = vpop.f32.mrf.mxu0
  %v3569 = vadd.f32 0.0, %v3568
  %v3570 = vpop.f32.mrf.mxu0
  %3571 = vdwg.mxu0
  %v3572 = vadd.f32 %v2527, %v3534
  %v3573 = vadd.f32 %v2532, %v3539
  %v3574 = vadd.f32 %v2537, %v3544
  %v3575 = vadd.f32 %v2542, %v3549
  %v3576 = vadd.f32 %v2547, %v3554
  %v3577 = vadd.f32 %v2552, %v3559
  %v3578 = vadd.f32 %v2557, %v3564
  %v3579 = vadd.f32 %v2562, %v3569
  %v3580 = vlaneseq
  %v3581 = vshrl.u32 %v3580, 7
  %v3582 = vsub.s32 4, %v3581
  %v3583 = vrot.slane %v315, %v3582
  %v3584 = vadd.f32 %v3572, %v3583
  %v3585 = vadd.f32 %v3573, %v3583
  %v3586 = vadd.f32 %v3574, %v3583
  %v3587 = vadd.f32 %v3575, %v3583
  %v3588 = vadd.f32 %v3576, %v3583
  %v3589 = vadd.f32 %v3577, %v3583
  %v3590 = vadd.f32 %v3578, %v3583
  %v3591 = vadd.f32 %v3579, %v3583
  %v3592 = vmax.f32 %v3584, 0.0
  %v3593 = vmax.f32 %v3585, 0.0
  %v3594 = vmax.f32 %v3586, 0.0
  %v3595 = vmax.f32 %v3587, 0.0
  %v3596 = vmax.f32 %v3588, 0.0
  %v3597 = vmax.f32 %v3589, 0.0
  %v3598 = vmax.f32 %v3590, 0.0
  %v3599 = vmax.f32 %v3591, 0.0
  %v3600 = vlaneseq
  %v3601 = vshrl.u32 %v3600, 7
  %v3602 = vsub.s32 5, %v3601
  %v3603 = vrot.slane %v315, %v3602
  %3612 = vrot.lane.b32.xlu0 %v466, 64
  %v3613 = vpop.permute.xlu0 %3612
  %3614 = vrot.lane.b32.xlu0 %v467, 64
  %v3615 = vpop.permute.xlu0 %3614
  %3616 = vrot.lane.b32.xlu0 %v468, 64
  %v3617 = vpop.permute.xlu0 %3616
  %3618 = vrot.lane.b32.xlu0 %v469, 64
  %v3619 = vpop.permute.xlu0 %3618
  %3620 = vrot.lane.b32.xlu0 %v470, 64
  %v3621 = vpop.permute.xlu0 %3620
  %3622 = vrot.lane.b32.xlu0 %v471, 64
  %v3623 = vpop.permute.xlu0 %3622
  %3624 = vrot.lane.b32.xlu0 %v472, 64
  %v3625 = vpop.permute.xlu0 %3624
  %3626 = vrot.lane.b32.xlu0 %v473, 64
  %v3627 = vpop.permute.xlu0 %3626
  %v3637 = vsel %vm502, %v3592, 0
  %v3640 = vsel %vm502, %v3593, 0
  %v3643 = vsel %vm502, %v3594, 0
  %v3646 = vsel %vm502, %v3595, 0
  %v3649 = vsel %vm502, %v3596, 0
  %v3652 = vsel %vm502, %v3597, 0
  %v3655 = vsel %vm502, %v3598, 0
  %v3658 = vsel %vm502, %v3599, 0
  %3660 = vmatprep.subr.mxu0 0.0
  %3661 = vmatpush1.msra.mxu0 0.0
  %3662 = vmatprep.subr.mxu0 0.0
  %3663 = vmatpush1.msra.mxu0 0.0
  %3664 = vmatprep.subr.mxu0 0.0
  %3665 = vmatpush1.msra.mxu0 0.0
  %3666 = vmatprep.subr.mxu0 0.0
  %3667 = vmatpush1.msra.mxu0 0.0
  %3668 = vmatprep.subr.mxu0 0.0
  %3669 = vmatpush1.msra.mxu0 0.0
  %3670 = vmatprep.subr.mxu0 0.0
  %3671 = vmatpush1.msra.mxu0 0.0
  %3672 = vmatprep.subr.mxu0 0.0
  %3673 = vmatpush1.msra.mxu0 0.0
  %3674 = vmatprep.subr.mxu0 0.0
  %3675 = vmatpush1.msra.mxu0 0.0
  %3676 = vmatprep.subr.mxu0 0.0
  %3677 = vmatpush1.msra.mxu0 %v3627
  %3678 = vmatprep.subr.mxu0 0.0
  %3679 = vmatpush1.msra.mxu0 %v3625
  %3680 = vmatprep.subr.mxu0 0.0
  %3681 = vmatpush1.msra.mxu0 %v3623
  %3682 = vmatprep.subr.mxu0 0.0
  %3683 = vmatpush1.msra.mxu0 %v3621
  %3684 = vmatprep.subr.mxu0 0.0
  %3685 = vmatpush1.msra.mxu0 %v3619
  %3686 = vmatprep.subr.mxu0 0.0
  %3687 = vmatpush1.msra.mxu0 %v3617
  %3688 = vmatprep.subr.mxu0 0.0
  %3689 = vmatpush1.msra.mxu0 %v3615
  %3690 = vmatprep.subr.mxu0 0.0
  %3691 = vmatpush1.msra.mxu0 %v3613
  %3692 = vmatprep.subr.mxu0 0.0
  %3693 = vmatpush2.msra.mxu0 0.0
  %3694 = vmatprep.subr.mxu0 0.0
  %3695 = vmatpush2.msra.mxu0 0.0
  %3696 = vmatprep.subr.mxu0 0.0
  %3697 = vmatpush2.msra.mxu0 0.0
  %3698 = vmatprep.subr.mxu0 0.0
  %3699 = vmatpush2.msra.mxu0 0.0
  %3700 = vmatprep.subr.mxu0 0.0
  %3701 = vmatpush2.msra.mxu0 0.0
  %3702 = vmatprep.subr.mxu0 0.0
  %3703 = vmatpush2.msra.mxu0 0.0
  %3704 = vmatprep.subr.mxu0 0.0
  %3705 = vmatpush2.msra.mxu0 0.0
  %3706 = vmatprep.subr.mxu0 0.0
  %3707 = vmatpush2.msra.mxu0 0.0
  %3708 = vmatprep.subr.mxu0 0.0
  %3709 = vmatpush2.msra.mxu0 0.0
  %3710 = vmatprep.subr.mxu0 0.0
  %3711 = vmatpush2.msra.mxu0 0.0
  %3712 = vmatprep.subr.mxu0 0.0
  %3713 = vmatpush2.msra.mxu0 0.0
  %3714 = vmatprep.subr.mxu0 0.0
  %3715 = vmatpush2.msra.mxu0 0.0
  %3716 = vmatprep.subr.mxu0 0.0
  %3717 = vmatpush2.msra.mxu0 0.0
  %3718 = vmatprep.subr.mxu0 0.0
  %3719 = vmatpush2.msra.mxu0 0.0
  %3720 = vmatprep.subr.mxu0 0.0
  %3721 = vmatpush2.msra.mxu0 0.0
  %3722 = vmatprep.subr.mxu0 0.0
  %3723 = vmatpush2.msra.mxu0 0.0
  %3724 = vmatprep.mubr.f32.mxu0 0.0
  %3725 = vmatmul.mubr.f32.gmra.mxu0 %v3637
  %v3726 = vpop.f32.mrf.mxu0
  %v3727 = vadd.f32 %v3603, %v3726
  %v3728 = vpop.f32.mrf.mxu0
  %3729 = vmatprep.mubr.f32.mxu0 0.0
  %3730 = vmatmul.mubr.f32.gmra.mxu0 %v3640
  %v3731 = vpop.f32.mrf.mxu0
  %v3732 = vadd.f32 %v3603, %v3731
  %v3733 = vpop.f32.mrf.mxu0
  %3734 = vmatprep.mubr.f32.mxu0 0.0
  %3735 = vmatmul.mubr.f32.gmra.mxu0 %v3643
  %v3736 = vpop.f32.mrf.mxu0
  %v3737 = vadd.f32 %v3603, %v3736
  %v3738 = vpop.f32.mrf.mxu0
  %3739 = vmatprep.mubr.f32.mxu0 0.0
  %3740 = vmatmul.mubr.f32.gmra.mxu0 %v3646
  %v3741 = vpop.f32.mrf.mxu0
  %v3742 = vadd.f32 %v3603, %v3741
  %v3743 = vpop.f32.mrf.mxu0
  %3744 = vmatprep.mubr.f32.mxu0 0.0
  %3745 = vmatmul.mubr.f32.gmra.mxu0 %v3649
  %v3746 = vpop.f32.mrf.mxu0
  %v3747 = vadd.f32 %v3603, %v3746
  %v3748 = vpop.f32.mrf.mxu0
  %3749 = vmatprep.mubr.f32.mxu0 0.0
  %3750 = vmatmul.mubr.f32.gmra.mxu0 %v3652
  %v3751 = vpop.f32.mrf.mxu0
  %v3752 = vadd.f32 %v3603, %v3751
  %v3753 = vpop.f32.mrf.mxu0
  %3754 = vmatprep.mubr.f32.mxu0 0.0
  %3755 = vmatmul.mubr.f32.gmra.mxu0 %v3655
  %v3756 = vpop.f32.mrf.mxu0
  %v3757 = vadd.f32 %v3603, %v3756
  %v3758 = vpop.f32.mrf.mxu0
  %3759 = vmatprep.mubr.f32.mxu0 0.0
  %3760 = vmatmul.mubr.f32.gmra.mxu0 %v3658
  %v3761 = vpop.f32.mrf.mxu0
  %v3762 = vadd.f32 %v3603, %v3761
  %v3763 = vpop.f32.mrf.mxu0
  %3764 = vdwg.mxu0
  %3773 = vrot.lane.b32.xlu0 %v3727, 96
  %v3774 = vpop.permute.xlu0 %3773
  %3775 = vrot.lane.b32.xlu0 %v3732, 96
  %v3776 = vpop.permute.xlu0 %3775
  %3777 = vrot.lane.b32.xlu0 %v3737, 96
  %v3778 = vpop.permute.xlu0 %3777
  %3779 = vrot.lane.b32.xlu0 %v3742, 96
  %v3780 = vpop.permute.xlu0 %3779
  %3781 = vrot.lane.b32.xlu0 %v3747, 96
  %v3782 = vpop.permute.xlu0 %3781
  %3783 = vrot.lane.b32.xlu0 %v3752, 96
  %v3784 = vpop.permute.xlu0 %3783
  %3785 = vrot.lane.b32.xlu0 %v3757, 96
  %v3786 = vpop.permute.xlu0 %3785
  %3787 = vrot.lane.b32.xlu0 %v3762, 96
  %v3788 = vpop.permute.xlu0 %3787
  %vm3797 = vcmask 1048320
  %3798 = vst.msk [vmem:[%s6] sm:$0xff] %vm3797, %v3774
  %3799 = vst.msk [vmem:[%s6 + $0x8] sm:$0xff] %vm3797, %v3776
  %3800 = vst.msk [vmem:[%s6 + $0x10] sm:$0xff] %vm3797, %v3778
  %3801 = vst.msk [vmem:[%s6 + $0x18] sm:$0xff] %vm3797, %v3780
  %3802 = vst.msk [vmem:[%s6 + $0x20] sm:$0xff] %vm3797, %v3782
  %3803 = vst.msk [vmem:[%s6 + $0x28] sm:$0xff] %vm3797, %v3784
  %3804 = vst.msk [vmem:[%s6 + $0x30] sm:$0xff] %vm3797, %v3786
  %3805 = vst.msk [vmem:[%s6 + $0x38] sm:$0xff] %vm3797, %v3788
  // Predicated region
  $region26: #{gnn_triangles_forward.1} parent=0 // pred_check
    _
  $region27: #{gnn_triangles_forward.1} parent=0 // pred_check_branch
    %3807 = sbr.rel (0) target = $region29
  $region28: #{gnn_triangles_forward.1} parent=0 // pred_region
    _
  $region29: #{gnn_triangles_forward.1} parent=0 // pred_fallthru
    _
  // Predicated region
  $region30: #{gnn_triangles_forward.1} parent=0 // pred_check
    _
  $region31: #{gnn_triangles_forward.1} parent=0 // pred_check_branch
    %3809 = sbr.rel (0) target = $region33
  $region32: #{gnn_triangles_forward.1} parent=0 // pred_region
    _
  $region33: #{gnn_triangles_forward.1} parent=0 // pred_fallthru
    _

</llo_original>
